<compile_context>
chip_gen: v7x
topology: tpu7x:2x2x1
jax: 0.10.0
libtpu: 0.0.40
codegen_flags: <defaults>
</compile_context>

<pallas_src>
import functools
import math

import jax
import jax.numpy as jnp
from jax.experimental import pallas as pl
from jax.experimental.pallas import tpu as pltpu

# ---- small synthetic BERT config (lane-dense dims) ----
VOCAB = 30522
MARKER = 6                 # resize_token_embeddings(vocab + marker)
HIDDEN = 128
N_HEADS = 2
HEAD_DIM = HIDDEN // N_HEADS
DH_PAD = ((HEAD_DIM + 127) // 128) * 128   # per-head block padded to 128-lane multiple
INTERMEDIATE = 512
N_LAYERS = 2
MAX_POS = 64
OUT_SIZE = 128             # config.encoder_output_size
E1_TOK = 30522             # entity-start marker 1
E2_TOK = 30524             # entity-start marker 2
LN_EPS = 1e-12
GELU_C = 0.7978845608028654


# ---------------- in-kernel helpers ----------------

def _layernorm(x, g, b):
    mean = jnp.mean(x, axis=-1, keepdims=True)
    var = jnp.mean(jnp.square(x - mean), axis=-1, keepdims=True)
    return (x - mean) * jax.lax.rsqrt(var + LN_EPS) * g + b


def _gelu(x):
    # tanh-approx GELU (matches the pure-JAX reference below); computed in f32.
    return 0.5 * x * (1.0 + jnp.tanh(GELU_C * (x + 0.044715 * x * x * x)))


# ---------------- fused encoder kernel ----------------

def _encoder_kernel(idx_ref,                       # SMEM [2*B] flat marker row indices
                    h0_ref,                        # HBM ref [BS, H] (memory_space=ANY)
                    emb_g_ref, emb_b_ref,          # [1, H]
                    wqkv_ref, bqkv_ref,            # [H, nh*3*DP] bf16 / [1, nh*3*DP] f32
                    wo_ref, bo_ref,                # [nh*DP, H] bf16 / [1, H] f32
                    ln1g_ref, ln1b_ref,
                    w1_ref, b1_ref, w2_ref, b2_ref,
                    ln2g_ref, ln2b_ref,
                    ltw_ref, ltb_ref,              # [2H, OUT] f32 / [1, OUT] f32
                    out_ref, h_scratch, *, n_heads, batch, dh_pad):
    layer = pl.program_id(0)
    n_layers = pl.num_programs(0)
    bs, hid = h_scratch.shape                      # [B*S, H]
    b = batch
    s = bs // b

    # --- step 0: copy h0 from HBM once, embedding LayerNorm into resident scratch ---
    @pl.when(layer == 0)
    def _():
        pltpu.sync_copy(h0_ref, h_scratch)
        h_scratch[...] = _layernorm(h_scratch[...], emb_g_ref[...], emb_b_ref[...])

    x = h_scratch[...]                             # [BS, H] f32 residual stream
    xb = x.astype(jnp.bfloat16)

    # --- fused, head-major, lane-padded QKV projection (1/sqrt(Dh) folded into Q) ---
    qkv = jnp.dot(xb, wqkv_ref[...],
                  preferred_element_type=jnp.float32) + bqkv_ref[...]   # [BS, nh*3*DP]

    # --- per-head attention; head slices are 128-lane aligned (no relayout) ---
    ctx_heads = []
    for h in range(n_heads):
        base = h * 3 * dh_pad
        qh = qkv[:, base:base + dh_pad].reshape(b, s, dh_pad).astype(jnp.bfloat16)
        kh = qkv[:, base + dh_pad:base + 2 * dh_pad].reshape(b, s, dh_pad).astype(jnp.bfloat16)
        vh = qkv[:, base + 2 * dh_pad:base + 3 * dh_pad].reshape(b, s, dh_pad).astype(jnp.bfloat16)
        sc = jnp.einsum("bqd,bkd->bqk", qh, kh,
                        preferred_element_type=jnp.float32)             # [B, S, S] f32
        m = jnp.max(sc, axis=-1, keepdims=True)
        p = jnp.exp(sc - m)
        p = p / jnp.sum(p, axis=-1, keepdims=True)                      # exact divide (f32)
        ctx = jnp.einsum("bqk,bkd->bqd", p.astype(jnp.bfloat16), vh,
                         preferred_element_type=jnp.float32)            # [B, S, DP]
        ctx_heads.append(ctx.reshape(bs, dh_pad))

    # --- single K = nh*DP output projection (one lane-concat, one matmul) ---
    ctx_all = jnp.concatenate(ctx_heads, axis=-1).astype(jnp.bfloat16)  # [BS, nh*DP]
    attn = jnp.dot(ctx_all, wo_ref[...],
                   preferred_element_type=jnp.float32) + bo_ref[...]    # [BS, H]

    # --- residual + LN (f32) ---
    h1 = _layernorm(attn + x, ln1g_ref[...], ln1b_ref[...])

    # --- FFN (GELU) + residual + LN, write back to resident scratch ---
    ff = _gelu(jnp.dot(h1.astype(jnp.bfloat16), w1_ref[...],
                       preferred_element_type=jnp.float32) + b1_ref[...])
    ff = jnp.dot(ff.astype(jnp.bfloat16), w2_ref[...],
                 preferred_element_type=jnp.float32) + b2_ref[...]
    h_scratch[...] = _layernorm(ff + h1, ln2g_ref[...], ln2b_ref[...])

    # --- last step: entity-marker gather (iota-mask reduce on resident activation)
    #     + linear_transform (kept f32 for accuracy; tiny) ---
    @pl.when(layer == n_layers - 1)
    def _():
        hfin = h_scratch[...]                                            # [BS, H] f32
        row_ids = jax.lax.broadcasted_iota(jnp.int32, (bs, 1), 0)

        def gather_row(flat_idx):
            return jnp.sum(jnp.where(row_ids == flat_idx, hfin, 0.0),
                           axis=0, keepdims=True)                        # [1, H]

        f1 = jnp.concatenate([gather_row(idx_ref[i]) for i in range(b)], axis=0)      # [B, H]
        f2 = jnp.concatenate([gather_row(idx_ref[b + i]) for i in range(b)], axis=0)  # [B, H]
        w = ltw_ref[...]                                                 # [2H, OUT]
        out = (jnp.dot(f1, w[:hid, :], preferred_element_type=jnp.float32)
               + jnp.dot(f2, w[hid:, :], preferred_element_type=jnp.float32)
               + ltb_ref[...])
        out_ref[...] = out.astype(out_ref.dtype)


# -------- parameter packing (head-major padded QKV, scale fold, bf16, layer stack) -----

def _pack_params(params):
    scale = 1.0 / math.sqrt(HEAD_DIM)
    dh, dp, nh = HEAD_DIM, DH_PAD, N_HEADS
    layers = params["layers"]

    def pack_qkv_w(l):
        wq = l["q"][0] * scale
        wk, wv = l["k"][0], l["v"][0]
        blocks = []
        for h in range(nh):
            for w in (wq, wk, wv):
                blk = w[:, h * dh:(h + 1) * dh]
                blocks.append(jnp.pad(blk, ((0, 0), (0, dp - dh))))
        return jnp.concatenate(blocks, axis=1).astype(jnp.bfloat16)      # [H, nh*3*DP]

    def pack_qkv_b(l):
        bq = l["q"][1] * scale
        bk, bv = l["k"][1], l["v"][1]
        segs = []
        for h in range(nh):
            for bvec in (bq, bk, bv):
                segs.append(jnp.pad(bvec[h * dh:(h + 1) * dh], (0, dp - dh)))
        return jnp.concatenate(segs, axis=0)[None, :]                    # [1, nh*3*DP] f32

    def pack_wo(l):
        wo = l["o"][0]
        blocks = []
        for h in range(nh):
            blk = wo[h * dh:(h + 1) * dh, :]
            blocks.append(jnp.pad(blk, ((0, dp - dh), (0, 0))))
        return jnp.concatenate(blocks, axis=0).astype(jnp.bfloat16)      # [nh*DP, H]

    def stack(fn):
        return jnp.stack([fn(l) for l in layers], axis=0)

    return dict(
        wqkv=stack(pack_qkv_w),                                          # bf16
        bqkv=stack(pack_qkv_b),                                          # f32
        wo=stack(pack_wo),                                               # bf16
        bo=stack(lambda l: l["o"][1][None, :]),                          # f32
        ln1g=stack(lambda l: l["attn_ln_g"][None, :]),
        ln1b=stack(lambda l: l["attn_ln_b"][None, :]),
        w1=stack(lambda l: l["ffn1"][0].astype(jnp.bfloat16)),           # [L, H, I] bf16
        b1=stack(lambda l: l["ffn1"][1][None, :]),
        w2=stack(lambda l: l["ffn2"][0].astype(jnp.bfloat16)),           # [L, I, H] bf16
        b2=stack(lambda l: l["ffn2"][1][None, :]),
        ln2g=stack(lambda l: l["out_ln_g"][None, :]),
        ln2b=stack(lambda l: l["out_ln_b"][None, :]),
    )


# ---------------- Pallas forward ----------------

def bert_encoder_forward_pallas(params, input_ids):
    B, S = input_ids.shape
    H = HIDDEN
    BS = B * S

    # entity-marker positions (first occurrence), flattened row indices into [BS, H].
    # NOTE: like np.argwhere(...)[0][0], markers are assumed present; argmax silently
    # returns 0 if absent (PyTorch would raise).
    e11 = jnp.argmax(input_ids == E1_TOK, axis=1).astype(jnp.int32)      # [B]
    e21 = jnp.argmax(input_ids == E2_TOK, axis=1).astype(jnp.int32)      # [B]
    rows = jnp.arange(B, dtype=jnp.int32) * S
    marker_idx = jnp.concatenate([rows + e11, rows + e21], axis=0)       # [2B] int32

    # embeddings (gather is XLA glue; everything after runs in ONE pallas_call)
    h0 = (jnp.take(params["word_emb"], input_ids, axis=0)
          + params["pos_emb"][None, :S, :]
          + params["type_emb"][0][None, None, :]).reshape(BS, H).astype(jnp.float32)

    pk = _pack_params(params)
    L = pk["wqkv"].shape[0]
    QKV_W = pk["wqkv"].shape[-1]     # n_heads * 3 * DH_PAD
    OP_K = pk["wo"].shape[-2]        # n_heads * DH_PAD

    def const_spec(shape):           # same block every grid step (kept resident)
        n = len(shape)
        return pl.BlockSpec(shape, lambda l, idx, _n=n: (0,) * _n)

    def layer_spec(shape):           # one layer's slice of a [L, ...] stack, squeezed
        n = len(shape)
        return pl.BlockSpec((pl.Squeezed(),) + tuple(shape),
                            lambda l, idx, _n=n: (l,) + (0,) * _n)

    in_specs = [
        pl.BlockSpec(memory_space=pl.ANY),                     # h0 (stays in HBM)
        const_spec((1, H)), const_spec((1, H)),                # emb LN gamma / beta
        layer_spec((H, QKV_W)), layer_spec((1, QKV_W)),        # fused padded QKV
        layer_spec((OP_K, H)), layer_spec((1, H)),             # output proj (padded rows)
        layer_spec((1, H)), layer_spec((1, H)),                # attn LN gamma / beta
        layer_spec((H, INTERMEDIATE)), layer_spec((1, INTERMEDIATE)),   # FFN1
        layer_spec((INTERMEDIATE, H)), layer_spec((1, H)),     # FFN2
        layer_spec((1, H)), layer_spec((1, H)),                # out LN gamma / beta
        const_spec((2 * H, OUT_SIZE)), const_spec((1, OUT_SIZE)),       # linear_transform
    ]

    kernel = functools.partial(_encoder_kernel, n_heads=N_HEADS, batch=B, dh_pad=DH_PAD)

    return pl.pallas_call(
        kernel,
        out_shape=jax.ShapeDtypeStruct((B, OUT_SIZE), jnp.float32),
        grid_spec=pltpu.PrefetchScalarGridSpec(
            num_scalar_prefetch=1,                 # marker_idx -> SMEM
            grid=(L,),
            in_specs=in_specs,
            out_specs=pl.BlockSpec((B, OUT_SIZE), lambda l, idx: (0, 0)),
            scratch_shapes=[pltpu.VMEM((BS, H), jnp.float32)],
        ),
        compiler_params=pltpu.CompilerParams(
            dimension_semantics=("arbitrary",)),   # sequential dependence across layers
    )(marker_idx,
      h0,
      params["emb_ln_g"].reshape(1, H), params["emb_ln_b"].reshape(1, H),
      pk["wqkv"], pk["bqkv"], pk["wo"], pk["bo"],
      pk["ln1g"], pk["ln1b"], pk["w1"], pk["b1"], pk["w2"], pk["b2"],
      pk["ln2g"], pk["ln2b"],
      params["lt_w"], params["lt_b"].reshape(1, OUT_SIZE))


# ---------------- plain-JAX reference (for correctness check) ----------------

def _ln_ref(x, g, b):
    mean = jnp.mean(x, axis=-1, keepdims=True)
    var = jnp.mean(jnp.square(x - mean), axis=-1, keepdims=True)
    return (x - mean) * jax.lax.rsqrt(var + LN_EPS) * g + b


def _gelu_ref(x):
    return 0.5 * x * (1.0 + jnp.tanh(GELU_C * (x + 0.044715 * x * x * x)))


def bert_encoder_forward_ref(params, input_ids):
    B, S = input_ids.shape
    e11 = jnp.argmax(input_ids == E1_TOK, axis=1)
    e21 = jnp.argmax(input_ids == E2_TOK, axis=1)
    h = (jnp.take(params["word_emb"], input_ids, axis=0)
         + params["pos_emb"][None, :S, :]
         + params["type_emb"][0][None, None, :])
    h = _ln_ref(h, params["emb_ln_g"], params["emb_ln_b"])
    for lyr in params["layers"]:
        x = h
        q = (x @ lyr["q"][0] + lyr["q"][1]).reshape(B, S, N_HEADS, HEAD_DIM)
        k = (x @ lyr["k"][0] + lyr["k"][1]).reshape(B, S, N_HEADS, HEAD_DIM)
        v = (x @ lyr["v"][0] + lyr["v"][1]).reshape(B, S, N_HEADS, HEAD_DIM)
        sc = jnp.einsum("bqhd,bkhd->bhqk", q, k) / math.sqrt(HEAD_DIM)
        p = jax.nn.softmax(sc, axis=-1)
        ctx = jnp.einsum("bhqk,bkhd->bqhd", p, v).reshape(B, S, HIDDEN)
        attn = ctx @ lyr["o"][0] + lyr["o"][1]
        h1 = _ln_ref(attn + x, lyr["attn_ln_g"], lyr["attn_ln_b"])
        ff = _gelu_ref(h1 @ lyr["ffn1"][0] + lyr["ffn1"][1])
        ff = ff @ lyr["ffn2"][0] + lyr["ffn2"][1]
        h = _ln_ref(ff + h1, lyr["out_ln_g"], lyr["out_ln_b"])
    h1e = jnp.take_along_axis(h, e11[:, None, None], axis=1)[:, 0, :]
    h2e = jnp.take_along_axis(h, e21[:, None, None], axis=1)[:, 0, :]
    feat = jnp.concatenate([h1e, h2e], axis=-1)                           # [B, 2H]
    return feat @ params["lt_w"] + params["lt_b"]


# ---------------- parameter init ----------------

def init_params(key):
    keys = iter(jax.random.split(key, 64))

    def dense(kin, kout):
        w = jax.random.normal(next(keys), (kin, kout), jnp.float32) * 0.02
        bias = jax.random.normal(next(keys), (kout,), jnp.float32) * 0.02
        return w, bias

    params = {
        "word_emb": jax.random.normal(next(keys), (VOCAB + MARKER, HIDDEN),
                                      jnp.float32) * 0.02,
        "pos_emb": jax.random.normal(next(keys), (MAX_POS, HIDDEN), jnp.float32) * 0.02,
        "type_emb": jax.random.normal(next(keys), (2, HIDDEN), jnp.float32) * 0.02,
        "emb_ln_g": jnp.ones((HIDDEN,), jnp.float32),
        "emb_ln_b": jnp.zeros((HIDDEN,), jnp.float32),
    }
    layers = []
    for _ in range(N_LAYERS):
        layers.append({
            "q": dense(HIDDEN, HIDDEN),
            "k": dense(HIDDEN, HIDDEN),
            "v": dense(HIDDEN, HIDDEN),
            "o": dense(HIDDEN, HIDDEN),
            "attn_ln_g": jnp.ones((HIDDEN,), jnp.float32),
            "attn_ln_b": jnp.zeros((HIDDEN,), jnp.float32),
            "ffn1": dense(HIDDEN, INTERMEDIATE),
            "ffn2": dense(INTERMEDIATE, HIDDEN),
            "out_ln_g": jnp.ones((HIDDEN,), jnp.float32),
            "out_ln_b": jnp.zeros((HIDDEN,), jnp.float32),
        })
    params["layers"] = layers
    # linear_transform = nn.Linear(hidden * 2, output_size, bias=True)  (entity_marker)
    params["lt_w"], params["lt_b"] = dense(2 * HIDDEN, OUT_SIZE)
    return params


if __name__ == "__main__":
    key = jax.random.PRNGKey(0)
    pkey, ikey = jax.random.split(key)
    params = init_params(pkey)

    B, S = 2, 32
    input_ids = jax.random.randint(ikey, (B, S), 0, 1000, dtype=jnp.int32)
    # plant entity markers (entity_marker pattern)
    input_ids = input_ids.at[0, 2].set(E1_TOK).at[0, 6].set(E2_TOK)
    input_ids = input_ids.at[1, 3].set(E1_TOK).at[1, 9].set(E2_TOK)

    fwd = jax.jit(bert_encoder_forward_pallas)
    out = jax.block_until_ready(fwd(params, input_ids))

    ref = bert_encoder_forward_ref(params, input_ids)
    assert out.shape == (B, OUT_SIZE), out.shape
    err = float(jnp.max(jnp.abs(out - ref)))
    # tolerance covers bf16 MXU operands (f32 accumulation / LN / softmax / residuals);
    # output magnitude is O(0.3), observed error is O(1e-3).
    assert err < 2e-2, err
    print("KERNEL_OK")
</pallas_src>

<mosaic_0001>
module attributes {stable_mosaic.version = 11 : i64} {
  func.func @_encoder_kernel(%arg0: i32, %arg1: memref<4xi32, #tpu.memory_space<smem>>, %arg2: memref<64x128xf32, #tpu.memory_space<any>>, %arg3: memref<1x128xf32, #tpu.memory_space<vmem>>, %arg4: memref<1x128xf32, #tpu.memory_space<vmem>>, %arg5: memref<1x128x768xbf16, #tpu.memory_space<vmem>>, %arg6: memref<1x1x768xf32, #tpu.memory_space<vmem>>, %arg7: memref<1x256x128xbf16, #tpu.memory_space<vmem>>, %arg8: memref<1x1x128xf32, #tpu.memory_space<vmem>>, %arg9: memref<1x1x128xf32, #tpu.memory_space<vmem>>, %arg10: memref<1x1x128xf32, #tpu.memory_space<vmem>>, %arg11: memref<1x128x512xbf16, #tpu.memory_space<vmem>>, %arg12: memref<1x1x512xf32, #tpu.memory_space<vmem>>, %arg13: memref<1x512x128xbf16, #tpu.memory_space<vmem>>, %arg14: memref<1x1x128xf32, #tpu.memory_space<vmem>>, %arg15: memref<1x1x128xf32, #tpu.memory_space<vmem>>, %arg16: memref<1x1x128xf32, #tpu.memory_space<vmem>>, %arg17: memref<256x128xf32, #tpu.memory_space<vmem>>, %arg18: memref<1x128xf32, #tpu.memory_space<vmem>>, %arg19: memref<2x128xf32, #tpu.memory_space<vmem>>, %arg20: memref<64x128xf32, #tpu.memory_space<vmem>>) attributes {dimension_semantics = [#tpu.dimension_semantics<arbitrary>], iteration_bounds = array<i64: 2>, scalar_prefetch = 1 : i64, scratch_operands = 1 : i64, tpu.core_type = #tpu.core_type<tc>, window_params = [{}, {pipeline_mode = #tpu.pipeline_mode<synchronous>, transform_indices = @transform_1, window_bounds = array<i64: 1, 128>}, {pipeline_mode = #tpu.pipeline_mode<synchronous>, transform_indices = @transform_2, window_bounds = array<i64: 1, 128>}, {transform_indices = @transform_3, window_bounds = array<i64: 1, 128, 768>}, {transform_indices = @transform_4, window_bounds = array<i64: 1, 1, 768>}, {transform_indices = @transform_5, window_bounds = array<i64: 1, 256, 128>}, {transform_indices = @transform_6, window_bounds = array<i64: 1, 1, 128>}, {transform_indices = @transform_7, window_bounds = array<i64: 1, 1, 128>}, {transform_indices = @transform_8, window_bounds = array<i64: 1, 1, 128>}, {transform_indices = @transform_9, window_bounds = array<i64: 1, 128, 512>}, {transform_indices = @transform_10, window_bounds = array<i64: 1, 1, 512>}, {transform_indices = @transform_11, window_bounds = array<i64: 1, 512, 128>}, {transform_indices = @transform_12, window_bounds = array<i64: 1, 1, 128>}, {transform_indices = @transform_13, window_bounds = array<i64: 1, 1, 128>}, {transform_indices = @transform_14, window_bounds = array<i64: 1, 1, 128>}, {pipeline_mode = #tpu.pipeline_mode<synchronous>, transform_indices = @transform_15, window_bounds = array<i64: 256, 128>}, {pipeline_mode = #tpu.pipeline_mode<synchronous>, transform_indices = @transform_16, window_bounds = array<i64: 1, 128>}, {pipeline_mode = #tpu.pipeline_mode<synchronous>, transform_indices = @transform_17, window_bounds = array<i64: 2, 128>}]} {
    %c0_i32 = arith.constant 0 : i32
    %0 = arith.cmpi eq, %arg0, %c0_i32 : i32
    %1 = arith.extui %0 : i1 to i32
    %c0_i32_0 = arith.constant 0 : i32
    %2 = arith.cmpi ne, %1, %c0_i32_0 : i32
    scf.if %2 {
      "tpu.region"() ({
        %178 = tpu.sem_alloc : memref<!tpu.dma_semaphore, #tpu.memory_space<semaphore_mem>>
        tpu.enqueue_dma source(%arg2 : memref<64x128xf32, #tpu.memory_space<any>>) target(%arg20 : memref<64x128xf32, #tpu.memory_space<vmem>>) target_semaphore(%178 : memref<!tpu.dma_semaphore, #tpu.memory_space<semaphore_mem>>)
        tpu.wait_dma2 semaphore(%178 : memref<!tpu.dma_semaphore, #tpu.memory_space<semaphore_mem>>) src(%arg2 : memref<64x128xf32, #tpu.memory_space<any>>) dst(%arg20 : memref<64x128xf32, #tpu.memory_space<vmem>>)
        tpu.yield
      }) : () -> ()
      %c0_66 = arith.constant 0 : index
      %c0_67 = arith.constant 0 : index
      %152 = vector.load %arg20[%c0_66, %c0_67] : memref<64x128xf32, #tpu.memory_space<vmem>>, vector<64x128xf32>
      %c0_68 = arith.constant 0 : index
      %c0_69 = arith.constant 0 : index
      %153 = vector.load %arg3[%c0_68, %c0_69] : memref<1x128xf32, #tpu.memory_space<vmem>>, vector<1x128xf32>
      %c0_70 = arith.constant 0 : index
      %c0_71 = arith.constant 0 : index
      %154 = vector.load %arg4[%c0_70, %c0_71] : memref<1x128xf32, #tpu.memory_space<vmem>>, vector<1x128xf32>
      %cst_72 = arith.constant dense<0.000000e+00> : vector<64xf32>
      %155 = vector.multi_reduction <add>, %152, %cst_72 [1] : vector<64x128xf32> to vector<64xf32>
      %156 = vector.shape_cast %155 : vector<64xf32> to vector<64x1xf32>
      %cst_73 = arith.constant 1.280000e+02 : f32
      %157 = vector.broadcast %cst_73 : f32 to vector<64x1xf32>
      %158 = arith.divf %156, %157 : vector<64x1xf32>
      %159 = vector.broadcast %158 : vector<64x1xf32> to vector<64x128xf32>
      %160 = arith.subf %152, %159 : vector<64x128xf32>
      %161 = arith.mulf %160, %160 : vector<64x128xf32>
      %cst_74 = arith.constant dense<0.000000e+00> : vector<64xf32>
      %162 = vector.multi_reduction <add>, %161, %cst_74 [1] : vector<64x128xf32> to vector<64xf32>
      %163 = vector.shape_cast %162 : vector<64xf32> to vector<64x1xf32>
      %cst_75 = arith.constant 1.280000e+02 : f32
      %164 = vector.broadcast %cst_75 : f32 to vector<64x1xf32>
      %165 = arith.divf %163, %164 : vector<64x1xf32>
      %166 = vector.broadcast %158 : vector<64x1xf32> to vector<64x128xf32>
      %167 = arith.subf %152, %166 : vector<64x128xf32>
      %cst_76 = arith.constant 9.99999996E-13 : f32
      %168 = vector.broadcast %cst_76 : f32 to vector<64x1xf32>
      %169 = arith.addf %165, %168 : vector<64x1xf32>
      %170 = math.rsqrt %169 : vector<64x1xf32>
      %171 = vector.broadcast %170 : vector<64x1xf32> to vector<64x128xf32>
      %172 = arith.mulf %167, %171 : vector<64x128xf32>
      %173 = vector.broadcast %153 : vector<1x128xf32> to vector<64x128xf32>
      %174 = arith.mulf %172, %173 : vector<64x128xf32>
      %175 = vector.broadcast %154 : vector<1x128xf32> to vector<64x128xf32>
      %176 = arith.addf %174, %175 : vector<64x128xf32>
      %c0_77 = arith.constant 0 : index
      %c0_78 = arith.constant 0 : index
      %177 = vector.load %arg20[%c0_77, %c0_78] : memref<64x128xf32, #tpu.memory_space<vmem>>, vector<64x128xf32>
      tpu.vector_store %arg20[%c0_77, %c0_78], %176 {strides = array<i32>} : memref<64x128xf32, #tpu.memory_space<vmem>>, vector<64x128xf32>,
    } else {
    }
    %c0 = arith.constant 0 : index
    %c0_1 = arith.constant 0 : index
    %3 = vector.load %arg20[%c0, %c0_1] : memref<64x128xf32, #tpu.memory_space<vmem>>, vector<64x128xf32>
    %4 = arith.truncf %3 : vector<64x128xf32> to vector<64x128xbf16>
    %c0_2 = arith.constant 0 : index
    %c0_3 = arith.constant 0 : index
    %c0_4 = arith.constant 0 : index
    %5 = vector.load %arg5[%c0_2, %c0_3, %c0_4] : memref<1x128x768xbf16, #tpu.memory_space<vmem>>, vector<1x128x768xbf16>
    %6 = vector.shape_cast %5 : vector<1x128x768xbf16> to vector<128x768xbf16>
    %cst = arith.constant dense<0.000000e+00> : vector<64x768xf32>
    %7 = tpu.matmul %4, %6, %cst {dimension_numbers = #tpu.dot_dimension_numbers<[1], [0], [0], [1], [0, 0, 1, 1], [], []>} : vector<64x128xbf16>, vector<128x768xbf16>, vector<64x768xf32> -> vector<64x768xf32>
    %c0_5 = arith.constant 0 : index
    %c0_6 = arith.constant 0 : index
    %c0_7 = arith.constant 0 : index
    %8 = vector.load %arg6[%c0_5, %c0_6, %c0_7] : memref<1x1x768xf32, #tpu.memory_space<vmem>>, vector<1x1x768xf32>
    %9 = vector.shape_cast %8 : vector<1x1x768xf32> to vector<1x768xf32>
    %10 = vector.broadcast %9 : vector<1x768xf32> to vector<64x768xf32>
    %11 = arith.addf %7, %10 : vector<64x768xf32>
    %12 = vector.extract_strided_slice %11 {offsets = [0, 0], sizes = [64, 128], strides = [1, 1]} : vector<64x768xf32> to vector<64x128xf32>
    %13 = vector.shape_cast %12 : vector<64x128xf32> to vector<2x32x128xf32>
    %14 = arith.truncf %13 : vector<2x32x128xf32> to vector<2x32x128xbf16>
    %15 = vector.extract_strided_slice %11 {offsets = [0, 128], sizes = [64, 128], strides = [1, 1]} : vector<64x768xf32> to vector<64x128xf32>
    %16 = vector.shape_cast %15 : vector<64x128xf32> to vector<2x32x128xf32>
    %17 = arith.truncf %16 : vector<2x32x128xf32> to vector<2x32x128xbf16>
    %18 = vector.extract_strided_slice %11 {offsets = [0, 256], sizes = [64, 128], strides = [1, 1]} : vector<64x768xf32> to vector<64x128xf32>
    %19 = vector.shape_cast %18 : vector<64x128xf32> to vector<2x32x128xf32>
    %20 = arith.truncf %19 : vector<2x32x128xf32> to vector<2x32x128xbf16>
    "tpu.trace_start"() <{level = 10 : i32, message = "bqd,bkd->bqk"}> : () -> ()
    %cst_8 = arith.constant dense<0.000000e+00> : vector<2x32x32xf32>
    %21 = tpu.matmul %14, %17, %cst_8 {dimension_numbers = #tpu.dot_dimension_numbers<[2], [2], [1], [1], [0, 0, 0, 1, 1, 1], [0], [0]>} : vector<2x32x128xbf16>, vector<2x32x128xbf16>, vector<2x32x32xf32> -> vector<2x32x32xf32>
    "tpu.trace_stop"() : () -> ()
    %cst_9 = arith.constant dense<0xFF800000> : vector<2x32xf32>
    %22 = vector.multi_reduction <maximumf>, %21, %cst_9 [2] : vector<2x32x32xf32> to vector<2x32xf32>
    %23 = vector.shape_cast %22 : vector<2x32xf32> to vector<2x32x1xf32>
    %24 = vector.broadcast %23 : vector<2x32x1xf32> to vector<2x32x32xf32>
    %25 = arith.subf %21, %24 : vector<2x32x32xf32>
    %26 = math.exp %25 : vector<2x32x32xf32>
    %cst_10 = arith.constant dense<0.000000e+00> : vector<2x32xf32>
    %27 = vector.multi_reduction <add>, %26, %cst_10 [2] : vector<2x32x32xf32> to vector<2x32xf32>
    %28 = vector.shape_cast %27 : vector<2x32xf32> to vector<2x32x1xf32>
    %29 = vector.broadcast %28 : vector<2x32x1xf32> to vector<2x32x32xf32>
    %30 = arith.divf %26, %29 : vector<2x32x32xf32>
    %31 = arith.truncf %30 : vector<2x32x32xf32> to vector<2x32x32xbf16>
    "tpu.trace_start"() <{level = 10 : i32, message = "bqk,bkd->bqd"}> : () -> ()
    %cst_11 = arith.constant dense<0.000000e+00> : vector<2x32x128xf32>
    %32 = tpu.matmul %31, %20, %cst_11 {dimension_numbers = #tpu.dot_dimension_numbers<[2], [1], [1], [2], [0, 0, 0, 1, 1, 2], [0], [0]>} : vector<2x32x32xbf16>, vector<2x32x128xbf16>, vector<2x32x128xf32> -> vector<2x32x128xf32>
    "tpu.trace_stop"() : () -> ()
    %33 = vector.shape_cast %32 : vector<2x32x128xf32> to vector<64x128xf32>
    %34 = vector.extract_strided_slice %11 {offsets = [0, 384], sizes = [64, 128], strides = [1, 1]} : vector<64x768xf32> to vector<64x128xf32>
    %35 = vector.shape_cast %34 : vector<64x128xf32> to vector<2x32x128xf32>
    %36 = arith.truncf %35 : vector<2x32x128xf32> to vector<2x32x128xbf16>
    %37 = vector.extract_strided_slice %11 {offsets = [0, 512], sizes = [64, 128], strides = [1, 1]} : vector<64x768xf32> to vector<64x128xf32>
    %38 = vector.shape_cast %37 : vector<64x128xf32> to vector<2x32x128xf32>
    %39 = arith.truncf %38 : vector<2x32x128xf32> to vector<2x32x128xbf16>
    %40 = vector.extract_strided_slice %11 {offsets = [0, 640], sizes = [64, 128], strides = [1, 1]} : vector<64x768xf32> to vector<64x128xf32>
    %41 = vector.shape_cast %40 : vector<64x128xf32> to vector<2x32x128xf32>
    %42 = arith.truncf %41 : vector<2x32x128xf32> to vector<2x32x128xbf16>
    "tpu.trace_start"() <{level = 10 : i32, message = "bqd,bkd->bqk"}> : () -> ()
    %cst_12 = arith.constant dense<0.000000e+00> : vector<2x32x32xf32>
    %43 = tpu.matmul %36, %39, %cst_12 {dimension_numbers = #tpu.dot_dimension_numbers<[2], [2], [1], [1], [0, 0, 0, 1, 1, 1], [0], [0]>} : vector<2x32x128xbf16>, vector<2x32x128xbf16>, vector<2x32x32xf32> -> vector<2x32x32xf32>
    "tpu.trace_stop"() : () -> ()
    %cst_13 = arith.constant dense<0xFF800000> : vector<2x32xf32>
    %44 = vector.multi_reduction <maximumf>, %43, %cst_13 [2] : vector<2x32x32xf32> to vector<2x32xf32>
    %45 = vector.shape_cast %44 : vector<2x32xf32> to vector<2x32x1xf32>
    %46 = vector.broadcast %45 : vector<2x32x1xf32> to vector<2x32x32xf32>
    %47 = arith.subf %43, %46 : vector<2x32x32xf32>
    %48 = math.exp %47 : vector<2x32x32xf32>
    %cst_14 = arith.constant dense<0.000000e+00> : vector<2x32xf32>
    %49 = vector.multi_reduction <add>, %48, %cst_14 [2] : vector<2x32x32xf32> to vector<2x32xf32>
    %50 = vector.shape_cast %49 : vector<2x32xf32> to vector<2x32x1xf32>
    %51 = vector.broadcast %50 : vector<2x32x1xf32> to vector<2x32x32xf32>
    %52 = arith.divf %48, %51 : vector<2x32x32xf32>
    %53 = arith.truncf %52 : vector<2x32x32xf32> to vector<2x32x32xbf16>
    "tpu.trace_start"() <{level = 10 : i32, message = "bqk,bkd->bqd"}> : () -> ()
    %cst_15 = arith.constant dense<0.000000e+00> : vector<2x32x128xf32>
    %54 = tpu.matmul %53, %42, %cst_15 {dimension_numbers = #tpu.dot_dimension_numbers<[2], [1], [1], [2], [0, 0, 0, 1, 1, 2], [0], [0]>} : vector<2x32x32xbf16>, vector<2x32x128xbf16>, vector<2x32x128xf32> -> vector<2x32x128xf32>
    "tpu.trace_stop"() : () -> ()
    %55 = vector.shape_cast %54 : vector<2x32x128xf32> to vector<64x128xf32>
    %56 = tpu.concatenate %33, %55 in 1 : vector<64x128xf32>, vector<64x128xf32> -> vector<64x256xf32>
    %57 = arith.truncf %56 : vector<64x256xf32> to vector<64x256xbf16>
    %c0_16 = arith.constant 0 : index
    %c0_17 = arith.constant 0 : index
    %c0_18 = arith.constant 0 : index
    %58 = vector.load %arg7[%c0_16, %c0_17, %c0_18] : memref<1x256x128xbf16, #tpu.memory_space<vmem>>, vector<1x256x128xbf16>
    %59 = vector.shape_cast %58 : vector<1x256x128xbf16> to vector<256x128xbf16>
    %cst_19 = arith.constant dense<0.000000e+00> : vector<64x128xf32>
    %60 = tpu.matmul %57, %59, %cst_19 {dimension_numbers = #tpu.dot_dimension_numbers<[1], [0], [0], [1], [0, 0, 1, 1], [], []>} : vector<64x256xbf16>, vector<256x128xbf16>, vector<64x128xf32> -> vector<64x128xf32>
    %c0_20 = arith.constant 0 : index
    %c0_21 = arith.constant 0 : index
    %c0_22 = arith.constant 0 : index
    %61 = vector.load %arg8[%c0_20, %c0_21, %c0_22] : memref<1x1x128xf32, #tpu.memory_space<vmem>>, vector<1x1x128xf32>
    %62 = vector.shape_cast %61 : vector<1x1x128xf32> to vector<1x128xf32>
    %63 = vector.broadcast %62 : vector<1x128xf32> to vector<64x128xf32>
    %64 = arith.addf %60, %63 : vector<64x128xf32>
    %65 = arith.addf %64, %3 : vector<64x128xf32>
    %c0_23 = arith.constant 0 : index
    %c0_24 = arith.constant 0 : index
    %c0_25 = arith.constant 0 : index
    %66 = vector.load %arg9[%c0_23, %c0_24, %c0_25] : memref<1x1x128xf32, #tpu.memory_space<vmem>>, vector<1x1x128xf32>
    %67 = vector.shape_cast %66 : vector<1x1x128xf32> to vector<1x128xf32>
    %c0_26 = arith.constant 0 : index
    %c0_27 = arith.constant 0 : index
    %c0_28 = arith.constant 0 : index
    %68 = vector.load %arg10[%c0_26, %c0_27, %c0_28] : memref<1x1x128xf32, #tpu.memory_space<vmem>>, vector<1x1x128xf32>
    %69 = vector.shape_cast %68 : vector<1x1x128xf32> to vector<1x128xf32>
    %cst_29 = arith.constant dense<0.000000e+00> : vector<64xf32>
    %70 = vector.multi_reduction <add>, %65, %cst_29 [1] : vector<64x128xf32> to vector<64xf32>
    %71 = vector.shape_cast %70 : vector<64xf32> to vector<64x1xf32>
    %cst_30 = arith.constant 1.280000e+02 : f32
    %72 = vector.broadcast %cst_30 : f32 to vector<64x1xf32>
    %73 = arith.divf %71, %72 : vector<64x1xf32>
    %74 = vector.broadcast %73 : vector<64x1xf32> to vector<64x128xf32>
    %75 = arith.subf %65, %74 : vector<64x128xf32>
    %76 = arith.mulf %75, %75 : vector<64x128xf32>
    %cst_31 = arith.constant dense<0.000000e+00> : vector<64xf32>
    %77 = vector.multi_reduction <add>, %76, %cst_31 [1] : vector<64x128xf32> to vector<64xf32>
    %78 = vector.shape_cast %77 : vector<64xf32> to vector<64x1xf32>
    %cst_32 = arith.constant 1.280000e+02 : f32
    %79 = vector.broadcast %cst_32 : f32 to vector<64x1xf32>
    %80 = arith.divf %78, %79 : vector<64x1xf32>
    %81 = vector.broadcast %73 : vector<64x1xf32> to vector<64x128xf32>
    %82 = arith.subf %65, %81 : vector<64x128xf32>
    %cst_33 = arith.constant 9.99999996E-13 : f32
    %83 = vector.broadcast %cst_33 : f32 to vector<64x1xf32>
    %84 = arith.addf %80, %83 : vector<64x1xf32>
    %85 = math.rsqrt %84 : vector<64x1xf32>
    %86 = vector.broadcast %85 : vector<64x1xf32> to vector<64x128xf32>
    %87 = arith.mulf %82, %86 : vector<64x128xf32>
    %88 = vector.broadcast %67 : vector<1x128xf32> to vector<64x128xf32>
    %89 = arith.mulf %87, %88 : vector<64x128xf32>
    %90 = vector.broadcast %69 : vector<1x128xf32> to vector<64x128xf32>
    %91 = arith.addf %89, %90 : vector<64x128xf32>
    %92 = arith.truncf %91 : vector<64x128xf32> to vector<64x128xbf16>
    %c0_34 = arith.constant 0 : index
    %c0_35 = arith.constant 0 : index
    %c0_36 = arith.constant 0 : index
    %93 = vector.load %arg11[%c0_34, %c0_35, %c0_36] : memref<1x128x512xbf16, #tpu.memory_space<vmem>>, vector<1x128x512xbf16>
    %94 = vector.shape_cast %93 : vector<1x128x512xbf16> to vector<128x512xbf16>
    %cst_37 = arith.constant dense<0.000000e+00> : vector<64x512xf32>
    %95 = tpu.matmul %92, %94, %cst_37 {dimension_numbers = #tpu.dot_dimension_numbers<[1], [0], [0], [1], [0, 0, 1, 1], [], []>} : vector<64x128xbf16>, vector<128x512xbf16>, vector<64x512xf32> -> vector<64x512xf32>
    %c0_38 = arith.constant 0 : index
    %c0_39 = arith.constant 0 : index
    %c0_40 = arith.constant 0 : index
    %96 = vector.load %arg12[%c0_38, %c0_39, %c0_40] : memref<1x1x512xf32, #tpu.memory_space<vmem>>, vector<1x1x512xf32>
    %97 = vector.shape_cast %96 : vector<1x1x512xf32> to vector<1x512xf32>
    %98 = vector.broadcast %97 : vector<1x512xf32> to vector<64x512xf32>
    %99 = arith.addf %95, %98 : vector<64x512xf32>
    %cst_41 = arith.constant 5.000000e-01 : f32
    %100 = vector.broadcast %cst_41 : f32 to vector<64x512xf32>
    %101 = arith.mulf %100, %99 : vector<64x512xf32>
    %cst_42 = arith.constant 4.471500e-02 : f32
    %102 = vector.broadcast %cst_42 : f32 to vector<64x512xf32>
    %103 = arith.mulf %102, %99 : vector<64x512xf32>
    %104 = arith.mulf %103, %99 : vector<64x512xf32>
    %105 = arith.mulf %104, %99 : vector<64x512xf32>
    %106 = arith.addf %99, %105 : vector<64x512xf32>
    %cst_43 = arith.constant 0.797884583 : f32
    %107 = vector.broadcast %cst_43 : f32 to vector<64x512xf32>
    %108 = arith.mulf %107, %106 : vector<64x512xf32>
    %109 = math.tanh %108 : vector<64x512xf32>
    %cst_44 = arith.constant 1.000000e+00 : f32
    %110 = vector.broadcast %cst_44 : f32 to vector<64x512xf32>
    %111 = arith.addf %110, %109 : vector<64x512xf32>
    %112 = arith.mulf %101, %111 : vector<64x512xf32>
    %113 = arith.truncf %112 : vector<64x512xf32> to vector<64x512xbf16>
    %c0_45 = arith.constant 0 : index
    %c0_46 = arith.constant 0 : index
    %c0_47 = arith.constant 0 : index
    %114 = vector.load %arg13[%c0_45, %c0_46, %c0_47] : memref<1x512x128xbf16, #tpu.memory_space<vmem>>, vector<1x512x128xbf16>
    %115 = vector.shape_cast %114 : vector<1x512x128xbf16> to vector<512x128xbf16>
    %cst_48 = arith.constant dense<0.000000e+00> : vector<64x128xf32>
    %116 = tpu.matmul %113, %115, %cst_48 {dimension_numbers = #tpu.dot_dimension_numbers<[1], [0], [0], [1], [0, 0, 1, 1], [], []>} : vector<64x512xbf16>, vector<512x128xbf16>, vector<64x128xf32> -> vector<64x128xf32>
    %c0_49 = arith.constant 0 : index
    %c0_50 = arith.constant 0 : index
    %c0_51 = arith.constant 0 : index
    %117 = vector.load %arg14[%c0_49, %c0_50, %c0_51] : memref<1x1x128xf32, #tpu.memory_space<vmem>>, vector<1x1x128xf32>
    %118 = vector.shape_cast %117 : vector<1x1x128xf32> to vector<1x128xf32>
    %119 = vector.broadcast %118 : vector<1x128xf32> to vector<64x128xf32>
    %120 = arith.addf %116, %119 : vector<64x128xf32>
    %121 = arith.addf %120, %91 : vector<64x128xf32>
    %c0_52 = arith.constant 0 : index
    %c0_53 = arith.constant 0 : index
    %c0_54 = arith.constant 0 : index
    %122 = vector.load %arg15[%c0_52, %c0_53, %c0_54] : memref<1x1x128xf32, #tpu.memory_space<vmem>>, vector<1x1x128xf32>
    %123 = vector.shape_cast %122 : vector<1x1x128xf32> to vector<1x128xf32>
    %c0_55 = arith.constant 0 : index
    %c0_56 = arith.constant 0 : index
    %c0_57 = arith.constant 0 : index
    %124 = vector.load %arg16[%c0_55, %c0_56, %c0_57] : memref<1x1x128xf32, #tpu.memory_space<vmem>>, vector<1x1x128xf32>
    %125 = vector.shape_cast %124 : vector<1x1x128xf32> to vector<1x128xf32>
    %cst_58 = arith.constant dense<0.000000e+00> : vector<64xf32>
    %126 = vector.multi_reduction <add>, %121, %cst_58 [1] : vector<64x128xf32> to vector<64xf32>
    %127 = vector.shape_cast %126 : vector<64xf32> to vector<64x1xf32>
    %cst_59 = arith.constant 1.280000e+02 : f32
    %128 = vector.broadcast %cst_59 : f32 to vector<64x1xf32>
    %129 = arith.divf %127, %128 : vector<64x1xf32>
    %130 = vector.broadcast %129 : vector<64x1xf32> to vector<64x128xf32>
    %131 = arith.subf %121, %130 : vector<64x128xf32>
    %132 = arith.mulf %131, %131 : vector<64x128xf32>
    %cst_60 = arith.constant dense<0.000000e+00> : vector<64xf32>
    %133 = vector.multi_reduction <add>, %132, %cst_60 [1] : vector<64x128xf32> to vector<64xf32>
    %134 = vector.shape_cast %133 : vector<64xf32> to vector<64x1xf32>
    %cst_61 = arith.constant 1.280000e+02 : f32
    %135 = vector.broadcast %cst_61 : f32 to vector<64x1xf32>
    %136 = arith.divf %134, %135 : vector<64x1xf32>
    %137 = vector.broadcast %129 : vector<64x1xf32> to vector<64x128xf32>
    %138 = arith.subf %121, %137 : vector<64x128xf32>
    %cst_62 = arith.constant 9.99999996E-13 : f32
    %139 = vector.broadcast %cst_62 : f32 to vector<64x1xf32>
    %140 = arith.addf %136, %139 : vector<64x1xf32>
    %141 = math.rsqrt %140 : vector<64x1xf32>
    %142 = vector.broadcast %141 : vector<64x1xf32> to vector<64x128xf32>
    %143 = arith.mulf %138, %142 : vector<64x128xf32>
    %144 = vector.broadcast %123 : vector<1x128xf32> to vector<64x128xf32>
    %145 = arith.mulf %143, %144 : vector<64x128xf32>
    %146 = vector.broadcast %125 : vector<1x128xf32> to vector<64x128xf32>
    %147 = arith.addf %145, %146 : vector<64x128xf32>
    %c0_63 = arith.constant 0 : index
    %c0_64 = arith.constant 0 : index
    %148 = vector.load %arg20[%c0_63, %c0_64] : memref<64x128xf32, #tpu.memory_space<vmem>>, vector<64x128xf32>
    tpu.vector_store %arg20[%c0_63, %c0_64], %147 {strides = array<i32>} : memref<64x128xf32, #tpu.memory_space<vmem>>, vector<64x128xf32>,
    %c1_i32 = arith.constant 1 : i32
    %149 = arith.cmpi eq, %arg0, %c1_i32 : i32
    %150 = arith.extui %149 : i1 to i32
    %c0_i32_65 = arith.constant 0 : i32
    %151 = arith.cmpi ne, %150, %c0_i32_65 : i32
    scf.if %151 {
      %c0_66 = arith.constant 0 : index
      %c0_67 = arith.constant 0 : index
      %152 = vector.load %arg20[%c0_66, %c0_67] : memref<64x128xf32, #tpu.memory_space<vmem>>, vector<64x128xf32>
      %153 = tpu.iota {dimensions = array<i32: 0>} : vector<64x1xi32>
      %c0_68 = arith.constant 0 : index
      %154 = memref.load %arg1[%c0_68] : memref<4xi32, #tpu.memory_space<smem>>
      %155 = vector.broadcast %154 : i32 to vector<64x1xi32>
      %156 = arith.cmpi eq, %153, %155 : vector<64x1xi32>
      %cst_69 = arith.constant 0.000000e+00 : f32
      %157 = vector.shape_cast %156 : vector<64x1xi1> to vector<64x1xi1>
      %158 = vector.broadcast %157 : vector<64x1xi1> to vector<64x128xi1>
      %159 = vector.broadcast %cst_69 : f32 to vector<64x128xf32>
      %160 = arith.select %158, %152, %159 : vector<64x128xi1>, vector<64x128xf32>
      %cst_70 = arith.constant dense<0.000000e+00> : vector<128xf32>
      %161 = vector.multi_reduction <add>, %160, %cst_70 [0] : vector<64x128xf32> to vector<128xf32>
      %162 = vector.shape_cast %161 : vector<128xf32> to vector<1x128xf32>
      %c1 = arith.constant 1 : index
      %163 = memref.load %arg1[%c1] : memref<4xi32, #tpu.memory_space<smem>>
      %164 = vector.broadcast %163 : i32 to vector<64x1xi32>
      %165 = arith.cmpi eq, %153, %164 : vector<64x1xi32>
      %cst_71 = arith.constant 0.000000e+00 : f32
      %166 = vector.shape_cast %165 : vector<64x1xi1> to vector<64x1xi1>
      %167 = vector.broadcast %166 : vector<64x1xi1> to vector<64x128xi1>
      %168 = vector.broadcast %cst_71 : f32 to vector<64x128xf32>
      %169 = arith.select %167, %152, %168 : vector<64x128xi1>, vector<64x128xf32>
      %cst_72 = arith.constant dense<0.000000e+00> : vector<128xf32>
      %170 = vector.multi_reduction <add>, %169, %cst_72 [0] : vector<64x128xf32> to vector<128xf32>
      %171 = vector.shape_cast %170 : vector<128xf32> to vector<1x128xf32>
      %172 = tpu.concatenate %162, %171 in 0 : vector<1x128xf32>, vector<1x128xf32> -> vector<2x128xf32>
      %c2 = arith.constant 2 : index
      %173 = memref.load %arg1[%c2] : memref<4xi32, #tpu.memory_space<smem>>
      %174 = vector.broadcast %173 : i32 to vector<64x1xi32>
      %175 = arith.cmpi eq, %153, %174 : vector<64x1xi32>
      %cst_73 = arith.constant 0.000000e+00 : f32
      %176 = vector.shape_cast %175 : vector<64x1xi1> to vector<64x1xi1>
      %177 = vector.broadcast %176 : vector<64x1xi1> to vector<64x128xi1>
      %178 = vector.broadcast %cst_73 : f32 to vector<64x128xf32>
      %179 = arith.select %177, %152, %178 : vector<64x128xi1>, vector<64x128xf32>
      %cst_74 = arith.constant dense<0.000000e+00> : vector<128xf32>
      %180 = vector.multi_reduction <add>, %179, %cst_74 [0] : vector<64x128xf32> to vector<128xf32>
      %181 = vector.shape_cast %180 : vector<128xf32> to vector<1x128xf32>
      %c3 = arith.constant 3 : index
      %182 = memref.load %arg1[%c3] : memref<4xi32, #tpu.memory_space<smem>>
      %183 = vector.broadcast %182 : i32 to vector<64x1xi32>
      %184 = arith.cmpi eq, %153, %183 : vector<64x1xi32>
      %cst_75 = arith.constant 0.000000e+00 : f32
      %185 = vector.shape_cast %184 : vector<64x1xi1> to vector<64x1xi1>
      %186 = vector.broadcast %185 : vector<64x1xi1> to vector<64x128xi1>
      %187 = vector.broadcast %cst_75 : f32 to vector<64x128xf32>
      %188 = arith.select %186, %152, %187 : vector<64x128xi1>, vector<64x128xf32>
      %cst_76 = arith.constant dense<0.000000e+00> : vector<128xf32>
      %189 = vector.multi_reduction <add>, %188, %cst_76 [0] : vector<64x128xf32> to vector<128xf32>
      %190 = vector.shape_cast %189 : vector<128xf32> to vector<1x128xf32>
      %191 = tpu.concatenate %181, %190 in 0 : vector<1x128xf32>, vector<1x128xf32> -> vector<2x128xf32>
      %c0_77 = arith.constant 0 : index
      %c0_78 = arith.constant 0 : index
      %192 = vector.load %arg17[%c0_77, %c0_78] : memref<256x128xf32, #tpu.memory_space<vmem>>, vector<256x128xf32>
      %193 = vector.extract_strided_slice %192 {offsets = [0, 0], sizes = [128, 128], strides = [1, 1]} : vector<256x128xf32> to vector<128x128xf32>
      %cst_79 = arith.constant dense<0.000000e+00> : vector<2x128xf32>
      %194 = tpu.matmul %172, %193, %cst_79 {dimension_numbers = #tpu.dot_dimension_numbers<[1], [0], [0], [1], [0, 0, 1, 1], [], []>} : vector<2x128xf32>, vector<128x128xf32>, vector<2x128xf32> -> vector<2x128xf32>
      %195 = vector.extract_strided_slice %192 {offsets = [128, 0], sizes = [128, 128], strides = [1, 1]} : vector<256x128xf32> to vector<128x128xf32>
      %cst_80 = arith.constant dense<0.000000e+00> : vector<2x128xf32>
      %196 = tpu.matmul %191, %195, %cst_80 {dimension_numbers = #tpu.dot_dimension_numbers<[1], [0], [0], [1], [0, 0, 1, 1], [], []>} : vector<2x128xf32>, vector<128x128xf32>, vector<2x128xf32> -> vector<2x128xf32>
      %197 = arith.addf %194, %196 : vector<2x128xf32>
      %c0_81 = arith.constant 0 : index
      %c0_82 = arith.constant 0 : index
      %198 = vector.load %arg18[%c0_81, %c0_82] : memref<1x128xf32, #tpu.memory_space<vmem>>, vector<1x128xf32>
      %199 = vector.broadcast %198 : vector<1x128xf32> to vector<2x128xf32>
      %200 = arith.addf %197, %199 : vector<2x128xf32>
      %c0_83 = arith.constant 0 : index
      %c0_84 = arith.constant 0 : index
      %201 = vector.load %arg19[%c0_83, %c0_84] : memref<2x128xf32, #tpu.memory_space<vmem>>, vector<2x128xf32>
      tpu.vector_store %arg19[%c0_83, %c0_84], %200 {strides = array<i32>} : memref<2x128xf32, #tpu.memory_space<vmem>>, vector<2x128xf32>,
    } else {
    }
    return
  }
  func.func @transform_1(%arg0: i32, %arg1: memref<4xi32, #tpu.memory_space<smem>>) -> (i32, i32) {
    %c0_i32 = arith.constant 0 : i32
    %c0_i32_0 = arith.constant 0 : i32
    %c0_i32_1 = arith.constant 0 : i32
    return %c0_i32, %c0_i32_0 : i32, i32
  }
  func.func @transform_2(%arg0: i32, %arg1: memref<4xi32, #tpu.memory_space<smem>>) -> (i32, i32) {
    %c0_i32 = arith.constant 0 : i32
    %c0_i32_0 = arith.constant 0 : i32
    %c0_i32_1 = arith.constant 0 : i32
    return %c0_i32, %c0_i32_0 : i32, i32
  }
  func.func @transform_3(%arg0: i32, %arg1: memref<4xi32, #tpu.memory_space<smem>>) -> (i32, i32, i32) {
    %c0_i32 = arith.constant 0 : i32
    %c0_i32_0 = arith.constant 0 : i32
    %c0_i32_1 = arith.constant 0 : i32
    return %arg0, %c0_i32, %c0_i32_0 : i32, i32, i32
  }
  func.func @transform_4(%arg0: i32, %arg1: memref<4xi32, #tpu.memory_space<smem>>) -> (i32, i32, i32) {
    %c0_i32 = arith.constant 0 : i32
    %c0_i32_0 = arith.constant 0 : i32
    %c0_i32_1 = arith.constant 0 : i32
    return %arg0, %c0_i32, %c0_i32_0 : i32, i32, i32
  }
  func.func @transform_5(%arg0: i32, %arg1: memref<4xi32, #tpu.memory_space<smem>>) -> (i32, i32, i32) {
    %c0_i32 = arith.constant 0 : i32
    %c0_i32_0 = arith.constant 0 : i32
    %c0_i32_1 = arith.constant 0 : i32
    return %arg0, %c0_i32, %c0_i32_0 : i32, i32, i32
  }
  func.func @transform_6(%arg0: i32, %arg1: memref<4xi32, #tpu.memory_space<smem>>) -> (i32, i32, i32) {
    %c0_i32 = arith.constant 0 : i32
    %c0_i32_0 = arith.constant 0 : i32
    %c0_i32_1 = arith.constant 0 : i32
    return %arg0, %c0_i32, %c0_i32_0 : i32, i32, i32
  }
  func.func @transform_7(%arg0: i32, %arg1: memref<4xi32, #tpu.memory_space<smem>>) -> (i32, i32, i32) {
    %c0_i32 = arith.constant 0 : i32
    %c0_i32_0 = arith.constant 0 : i32
    %c0_i32_1 = arith.constant 0 : i32
    return %arg0, %c0_i32, %c0_i32_0 : i32, i32, i32
  }
  func.func @transform_8(%arg0: i32, %arg1: memref<4xi32, #tpu.memory_space<smem>>) -> (i32, i32, i32) {
    %c0_i32 = arith.constant 0 : i32
    %c0_i32_0 = arith.constant 0 : i32
    %c0_i32_1 = arith.constant 0 : i32
    return %arg0, %c0_i32, %c0_i32_0 : i32, i32, i32
  }
  func.func @transform_9(%arg0: i32, %arg1: memref<4xi32, #tpu.memory_space<smem>>) -> (i32, i32, i32) {
    %c0_i32 = arith.constant 0 : i32
    %c0_i32_0 = arith.constant 0 : i32
    %c0_i32_1 = arith.constant 0 : i32
    return %arg0, %c0_i32, %c0_i32_0 : i32, i32, i32
  }
  func.func @transform_10(%arg0: i32, %arg1: memref<4xi32, #tpu.memory_space<smem>>) -> (i32, i32, i32) {
    %c0_i32 = arith.constant 0 : i32
    %c0_i32_0 = arith.constant 0 : i32
    %c0_i32_1 = arith.constant 0 : i32
    return %arg0, %c0_i32, %c0_i32_0 : i32, i32, i32
  }
  func.func @transform_11(%arg0: i32, %arg1: memref<4xi32, #tpu.memory_space<smem>>) -> (i32, i32, i32) {
    %c0_i32 = arith.constant 0 : i32
    %c0_i32_0 = arith.constant 0 : i32
    %c0_i32_1 = arith.constant 0 : i32
    return %arg0, %c0_i32, %c0_i32_0 : i32, i32, i32
  }
  func.func @transform_12(%arg0: i32, %arg1: memref<4xi32, #tpu.memory_space<smem>>) -> (i32, i32, i32) {
    %c0_i32 = arith.constant 0 : i32
    %c0_i32_0 = arith.constant 0 : i32
    %c0_i32_1 = arith.constant 0 : i32
    return %arg0, %c0_i32, %c0_i32_0 : i32, i32, i32
  }
  func.func @transform_13(%arg0: i32, %arg1: memref<4xi32, #tpu.memory_space<smem>>) -> (i32, i32, i32) {
    %c0_i32 = arith.constant 0 : i32
    %c0_i32_0 = arith.constant 0 : i32
    %c0_i32_1 = arith.constant 0 : i32
    return %arg0, %c0_i32, %c0_i32_0 : i32, i32, i32
  }
  func.func @transform_14(%arg0: i32, %arg1: memref<4xi32, #tpu.memory_space<smem>>) -> (i32, i32, i32) {
    %c0_i32 = arith.constant 0 : i32
    %c0_i32_0 = arith.constant 0 : i32
    %c0_i32_1 = arith.constant 0 : i32
    return %arg0, %c0_i32, %c0_i32_0 : i32, i32, i32
  }
  func.func @transform_15(%arg0: i32, %arg1: memref<4xi32, #tpu.memory_space<smem>>) -> (i32, i32) {
    %c0_i32 = arith.constant 0 : i32
    %c0_i32_0 = arith.constant 0 : i32
    %c0_i32_1 = arith.constant 0 : i32
    return %c0_i32, %c0_i32_0 : i32, i32
  }
  func.func @transform_16(%arg0: i32, %arg1: memref<4xi32, #tpu.memory_space<smem>>) -> (i32, i32) {
    %c0_i32 = arith.constant 0 : i32
    %c0_i32_0 = arith.constant 0 : i32
    %c0_i32_1 = arith.constant 0 : i32
    return %c0_i32, %c0_i32_0 : i32, i32
  }
  func.func @transform_17(%arg0: i32, %arg1: memref<4xi32, #tpu.memory_space<smem>>) -> (i32, i32) {
    %c0_i32 = arith.constant 0 : i32
    %c0_i32_0 = arith.constant 0 : i32
    %c0_i32_1 = arith.constant 0 : i32
    return %c0_i32, %c0_i32_0 : i32, i32
  }
}

</mosaic_0001>

<llo_original>
// kernel: custom-call
$region0: #{custom-call}
  %s0 = inlined_call_operand.vmem [shape: f32[768], index: 0, kind: output, shape index: {}]

// kernel: bert_encoder_forward_pallas.1
$region0: #{bert_encoder_forward_pallas.1}
  #allocation0 [shape = 'u32[]', space=smem, size = 0x4, offset = 0x4, fixed_abs, tag = 'smem constant byte address 0x4 - core index']
  #allocation1 [shape = 'u32[144,128]{1,0:T(1,128)}', space=vmem, size = 0x12000, scoped, tag = 'internal scratch']
  #allocation2 [shape = 'f32[64,128]{1,0:T(8,128)}', space=vmem, size = 0x8000, scoped, tag = 'scratch operand']
  #allocation3 [shape = 's32[1]{0}', space=sflag, size = 0x4, scoped, tag = 'scoped memory for bert_encoder_forward_pallas.1']
  #allocation4 [shape = 'u8[512]{0}', space=smem, size = 0x200, scoped, tag = 'prefetched SMEM operand 0']
  #allocation15 [shape = 's32[]', space=sflag, size = 0x4, offset = 0, fixed_abs, tag = 'sflag constant byte address 0x0 - dummy sync flag']
  %s0 = inlined_call_operand.vmem [shape: s32[4], index: 0, kind: input, shape index: {}]
  %s1 = inlined_call_operand.vmem [shape: f32[64,128], index: 1, kind: input, shape index: {}]
  %s2 = inlined_call_operand.hbm [shape: f32[1,128], index: 2, kind: input, shape index: {}]
  %s3 = inlined_call_operand.hbm [shape: f32[1,128], index: 3, kind: input, shape index: {}]
  %s4 = inlined_call_operand.vmem [shape: bf16[2,128,768], index: 4, kind: input, shape index: {}]
  %s5 = inlined_call_operand.vmem [shape: f32[2,1,768], index: 5, kind: input, shape index: {}]
  %s6 = inlined_call_operand.vmem [shape: bf16[2,256,128], index: 6, kind: input, shape index: {}]
  %s7 = inlined_call_operand.vmem [shape: f32[2,1,128], index: 7, kind: input, shape index: {}]
  %s8 = inlined_call_operand.vmem [shape: f32[2,1,128], index: 8, kind: input, shape index: {}]
  %s9 = inlined_call_operand.vmem [shape: f32[2,1,128], index: 9, kind: input, shape index: {}]
  %s10 = inlined_call_operand.vmem [shape: bf16[2,128,512], index: 10, kind: input, shape index: {}]
  %s11 = inlined_call_operand.vmem [shape: f32[2,1,512], index: 11, kind: input, shape index: {}]
  %s12 = inlined_call_operand.vmem [shape: bf16[2,512,128], index: 12, kind: input, shape index: {}]
  %s13 = inlined_call_operand.vmem [shape: f32[2,1,128], index: 13, kind: input, shape index: {}]
  %s14 = inlined_call_operand.vmem [shape: f32[2,1,128], index: 14, kind: input, shape index: {}]
  %s15 = inlined_call_operand.vmem [shape: f32[2,1,128], index: 15, kind: input, shape index: {}]
  %s16 = inlined_call_operand.hbm [shape: f32[256,128], index: 16, kind: input, shape index: {}]
  %s17 = inlined_call_operand.hbm [shape: f32[1,128], index: 17, kind: input, shape index: {}]
  %s18 = inlined_call_operand.hbm [shape: f32[2,128], index: 18, kind: output, shape index: {}]
  %s19 = sld [smem:[#allocation0]]
  $region156: #{bert_encoder_forward_pallas.1} parent=0
    _
  %s21 = ssub.s32 1, %s19
  %s22 = scalar_select 0, %s21, %s19
  %s23 = sshll.u32 %s0, 4
  %s24 = int_to_ptr.vmem [resolvable:$true] %s23
  %26 = dma.vmem_to_smem %s24, 16, [#allocation4], [#allocation3]
  %27 = dma.done [#allocation3], 16
  %28 = sfence
  $region1: #{bert_encoder_forward_pallas.1} parent=0
    #allocation5 [shape = 'u8[512]{0}', space=vmem, size = 0x400, scoped, tag = 'input window, operand 2, single buffered']
    #allocation6 [shape = 's32[2]{0}', space=sflag, size = 0x8, scoped, tag = 'scoped memory for bert_encoder_forward_pallas.1']
    #allocation7 [shape = 's32[2]{0}', space=sflag, size = 0x8, scoped, tag = 'scoped memory for bert_encoder_forward_pallas.1']
    #allocation8 [shape = 'u8[512]{0}', space=vmem, size = 0x400, scoped, tag = 'input window, operand 3, single buffered']
    #allocation9 [shape = 's32[1]{0}', space=sflag, size = 0x4, scoped, tag = 'scoped memory for bert_encoder_forward_pallas.1']
    #allocation10 [shape = 'u8[131072]{0}', space=vmem, size = 0x20000, scoped, tag = 'input window, operand 16, single buffered']
    #allocation11 [shape = 'u8[512]{0}', space=vmem, size = 0x400, scoped, tag = 'input window, operand 17, single buffered']
    #allocation12 [shape = 's32[1]{0}', space=sflag, size = 0x4, scoped, tag = 'scoped memory for bert_encoder_forward_pallas.1']
    #allocation13 [shape = 'u8[1024]{0}', space=vmem, size = 0x400, scoped, tag = 'output window, operand 0, single buffered']
    %29 = vsyncpa [#allocation6], 0
    %30 = vsyncpa [#allocation9], 0
    %31 = vsyncpa [#allocation12], 0
    %32 = vsyncpa [#allocation7], 0
    loop: start=0, step=1, limit=4
    $region2: #{bert_encoder_forward_pallas.1} parent=1 // loop_pre_header
      _
    $region3: #{bert_encoder_forward_pallas.1} parent=1 // loop_header
      %s34 = sphi 0, %s38
      %p35 = scmp.ge.s32.totalorder %s34, 4
      %s42 = sphi 0, %s42
      %s44 = sphi 0, %s42
      %s45 = sphi 0, %s44
      %s59 = sphi 0, %s45
      %s63 = sphi 0, %s63
      %s65 = sphi 0, %s63
      %s66 = sphi 0, %s65
      %s80 = sphi 0, %s66
      %s86 = sphi 0, %s88
      %s89 = sphi 0, %s86
      %s90 = sphi 0, %s89
      %s106 = sphi 0, %s90
      %s112 = sphi 0, %s114
      %s115 = sphi 0, %s112
      %s116 = sphi 0, %s115
      %s132 = sphi 0, %s116
      %s138 = sphi 0, %s140
      %s141 = sphi 0, %s138
      %s142 = sphi 0, %s141
      %s158 = sphi 0, %s142
      %s164 = sphi 0, %s166
      %s167 = sphi 0, %s164
      %s168 = sphi 0, %s167
      %s184 = sphi 0, %s168
      %s190 = sphi 0, %s192
      %s193 = sphi 0, %s190
      %s194 = sphi 0, %s193
      %s210 = sphi 0, %s194
      %s216 = sphi 0, %s218
      %s219 = sphi 0, %s216
      %s220 = sphi 0, %s219
      %s236 = sphi 0, %s220
      %s242 = sphi 0, %s244
      %s245 = sphi 0, %s242
      %s246 = sphi 0, %s245
      %s262 = sphi 0, %s246
      %s268 = sphi 0, %s270
      %s271 = sphi 0, %s268
      %s272 = sphi 0, %s271
      %s288 = sphi 0, %s272
      %s294 = sphi 0, %s296
      %s297 = sphi 0, %s294
      %s298 = sphi 0, %s297
      %s314 = sphi 0, %s298
      %s320 = sphi 0, %s322
      %s323 = sphi 0, %s320
      %s324 = sphi 0, %s323
      %s340 = sphi 0, %s324
      %s346 = sphi 0, %s348
      %s349 = sphi 0, %s346
      %s350 = sphi 0, %s349
      %s366 = sphi 0, %s350
      %s372 = sphi 0, %s374
      %s375 = sphi 0, %s372
      %s376 = sphi 0, %s375
      %s392 = sphi 0, %s376
      %s396 = sphi 0, %s396
      %s398 = sphi 0, %s396
      %s399 = sphi 0, %s398
      %s413 = sphi 0, %s399
      %s417 = sphi 0, %s417
      %s419 = sphi 0, %s417
      %s420 = sphi 0, %s419
      %s434 = sphi 0, %s420
      %s438 = sphi 0, %s438
      %s440 = sphi 0, %s438
      %s441 = sphi 0, %s440
      %s455 = sphi 0, %s441
    $region4: #{bert_encoder_forward_pallas.1} parent=1 // loop_header_branch
      %37 = sbr.rel (%p35) target = $region8
    $region5: #{bert_encoder_forward_pallas.1} parent=1 // loop_body
      %s39 = ssub.s32 %s34, 1
      %s40 = ssub.s32 %s34, 2
      %s41 = sadd.s32 %s34, 1
      %s43 = sadd.s32 %s42, 1
      %p46 = scmp.eq.s32.totalorder %s34, 1
      %p47 = scmp.ne.s32.totalorder %s42, %s44
      %p48 = scmp.eq.s32.totalorder %s34, 0
      %p49 = por %p47, %p48
      %p50 = scmp.ne.s32.totalorder %s42, %s44
      %p51 = scmp.eq.s32.totalorder %s39, 1
      %p52 = por %p50, %p51
      %p53 = scmp.ne.s32.totalorder %s44, %s45
      %p54 = scmp.eq.s32.totalorder %s39, 0
      %p55 = por %p53, %p54
      %p56 = scmp.ne.s32.totalorder %s44, %s45
      %p57 = scmp.eq.s32.totalorder %s40, 1
      %p58 = por %p56, %p57
      %p60 = scmp.ne.s32.totalorder %s45, %s59
      %p61 = scmp.eq.s32.totalorder %s40, 0
      %p62 = por %p60, %p61
      %s64 = sadd.s32 %s63, 1
      %p67 = scmp.eq.s32.totalorder %s34, 1
      %p68 = scmp.ne.s32.totalorder %s63, %s65
      %p69 = scmp.eq.s32.totalorder %s34, 0
      %p70 = por %p68, %p69
      %p71 = scmp.ne.s32.totalorder %s63, %s65
      %p72 = scmp.eq.s32.totalorder %s39, 1
      %p73 = por %p71, %p72
      %p74 = scmp.ne.s32.totalorder %s65, %s66
      %p75 = scmp.eq.s32.totalorder %s39, 0
      %p76 = por %p74, %p75
      %p77 = scmp.ne.s32.totalorder %s65, %s66
      %p78 = scmp.eq.s32.totalorder %s40, 1
      %p79 = por %p77, %p78
      %p81 = scmp.ne.s32.totalorder %s66, %s80
      %p82 = scmp.eq.s32.totalorder %s40, 0
      %p83 = por %p81, %p82
      %s84 = ssub.s32 %s34, %s41
      %p85 = scmp.eq.s32.totalorder %s84, 0
      %s87 = sadd.s32 %s86, 1
      %s88 = scalar_select %p85, %s86, %s87
      %p91 = pneg %p85
      %p92 = scmp.eq.s32.totalorder %s34, 1
      %p93 = por %p91, %p92
      %p94 = scmp.ne.s32.totalorder %s86, %s89
      %p95 = scmp.eq.s32.totalorder %s34, 0
      %p96 = por %p94, %p95
      %p97 = scmp.ne.s32.totalorder %s86, %s89
      %p98 = scmp.eq.s32.totalorder %s39, 1
      %p99 = por %p97, %p98
      %p100 = scmp.ne.s32.totalorder %s89, %s90
      %p101 = scmp.eq.s32.totalorder %s39, 0
      %p102 = por %p100, %p101
      %p103 = scmp.ne.s32.totalorder %s89, %s90
      %p104 = scmp.eq.s32.totalorder %s40, 1
      %p105 = por %p103, %p104
      %p107 = scmp.ne.s32.totalorder %s90, %s106
      %p108 = scmp.eq.s32.totalorder %s40, 0
      %p109 = por %p107, %p108
      %s110 = ssub.s32 %s34, %s41
      %p111 = scmp.eq.s32.totalorder %s110, 0
      %s113 = sadd.s32 %s112, 1
      %s114 = scalar_select %p111, %s112, %s113
      %p117 = pneg %p111
      %p118 = scmp.eq.s32.totalorder %s34, 1
      %p119 = por %p117, %p118
      %p120 = scmp.ne.s32.totalorder %s112, %s115
      %p121 = scmp.eq.s32.totalorder %s34, 0
      %p122 = por %p120, %p121
      %p123 = scmp.ne.s32.totalorder %s112, %s115
      %p124 = scmp.eq.s32.totalorder %s39, 1
      %p125 = por %p123, %p124
      %p126 = scmp.ne.s32.totalorder %s115, %s116
      %p127 = scmp.eq.s32.totalorder %s39, 0
      %p128 = por %p126, %p127
      %p129 = scmp.ne.s32.totalorder %s115, %s116
      %p130 = scmp.eq.s32.totalorder %s40, 1
      %p131 = por %p129, %p130
      %p133 = scmp.ne.s32.totalorder %s116, %s132
      %p134 = scmp.eq.s32.totalorder %s40, 0
      %p135 = por %p133, %p134
      %s136 = ssub.s32 %s34, %s41
      %p137 = scmp.eq.s32.totalorder %s136, 0
      %s139 = sadd.s32 %s138, 1
      %s140 = scalar_select %p137, %s138, %s139
      %p143 = pneg %p137
      %p144 = scmp.eq.s32.totalorder %s34, 1
      %p145 = por %p143, %p144
      %p146 = scmp.ne.s32.totalorder %s138, %s141
      %p147 = scmp.eq.s32.totalorder %s34, 0
      %p148 = por %p146, %p147
      %p149 = scmp.ne.s32.totalorder %s138, %s141
      %p150 = scmp.eq.s32.totalorder %s39, 1
      %p151 = por %p149, %p150
      %p152 = scmp.ne.s32.totalorder %s141, %s142
      %p153 = scmp.eq.s32.totalorder %s39, 0
      %p154 = por %p152, %p153
      %p155 = scmp.ne.s32.totalorder %s141, %s142
      %p156 = scmp.eq.s32.totalorder %s40, 1
      %p157 = por %p155, %p156
      %p159 = scmp.ne.s32.totalorder %s142, %s158
      %p160 = scmp.eq.s32.totalorder %s40, 0
      %p161 = por %p159, %p160
      %s162 = ssub.s32 %s34, %s41
      %p163 = scmp.eq.s32.totalorder %s162, 0
      %s165 = sadd.s32 %s164, 1
      %s166 = scalar_select %p163, %s164, %s165
      %p169 = pneg %p163
      %p170 = scmp.eq.s32.totalorder %s34, 1
      %p171 = por %p169, %p170
      %p172 = scmp.ne.s32.totalorder %s164, %s167
      %p173 = scmp.eq.s32.totalorder %s34, 0
      %p174 = por %p172, %p173
      %p175 = scmp.ne.s32.totalorder %s164, %s167
      %p176 = scmp.eq.s32.totalorder %s39, 1
      %p177 = por %p175, %p176
      %p178 = scmp.ne.s32.totalorder %s167, %s168
      %p179 = scmp.eq.s32.totalorder %s39, 0
      %p180 = por %p178, %p179
      %p181 = scmp.ne.s32.totalorder %s167, %s168
      %p182 = scmp.eq.s32.totalorder %s40, 1
      %p183 = por %p181, %p182
      %p185 = scmp.ne.s32.totalorder %s168, %s184
      %p186 = scmp.eq.s32.totalorder %s40, 0
      %p187 = por %p185, %p186
      %s188 = ssub.s32 %s34, %s41
      %p189 = scmp.eq.s32.totalorder %s188, 0
      %s191 = sadd.s32 %s190, 1
      %s192 = scalar_select %p189, %s190, %s191
      %p195 = pneg %p189
      %p196 = scmp.eq.s32.totalorder %s34, 1
      %p197 = por %p195, %p196
      %p198 = scmp.ne.s32.totalorder %s190, %s193
      %p199 = scmp.eq.s32.totalorder %s34, 0
      %p200 = por %p198, %p199
      %p201 = scmp.ne.s32.totalorder %s190, %s193
      %p202 = scmp.eq.s32.totalorder %s39, 1
      %p203 = por %p201, %p202
      %p204 = scmp.ne.s32.totalorder %s193, %s194
      %p205 = scmp.eq.s32.totalorder %s39, 0
      %p206 = por %p204, %p205
      %p207 = scmp.ne.s32.totalorder %s193, %s194
      %p208 = scmp.eq.s32.totalorder %s40, 1
      %p209 = por %p207, %p208
      %p211 = scmp.ne.s32.totalorder %s194, %s210
      %p212 = scmp.eq.s32.totalorder %s40, 0
      %p213 = por %p211, %p212
      %s214 = ssub.s32 %s34, %s41
      %p215 = scmp.eq.s32.totalorder %s214, 0
      %s217 = sadd.s32 %s216, 1
      %s218 = scalar_select %p215, %s216, %s217
      %p221 = pneg %p215
      %p222 = scmp.eq.s32.totalorder %s34, 1
      %p223 = por %p221, %p222
      %p224 = scmp.ne.s32.totalorder %s216, %s219
      %p225 = scmp.eq.s32.totalorder %s34, 0
      %p226 = por %p224, %p225
      %p227 = scmp.ne.s32.totalorder %s216, %s219
      %p228 = scmp.eq.s32.totalorder %s39, 1
      %p229 = por %p227, %p228
      %p230 = scmp.ne.s32.totalorder %s219, %s220
      %p231 = scmp.eq.s32.totalorder %s39, 0
      %p232 = por %p230, %p231
      %p233 = scmp.ne.s32.totalorder %s219, %s220
      %p234 = scmp.eq.s32.totalorder %s40, 1
      %p235 = por %p233, %p234
      %p237 = scmp.ne.s32.totalorder %s220, %s236
      %p238 = scmp.eq.s32.totalorder %s40, 0
      %p239 = por %p237, %p238
      %s240 = ssub.s32 %s34, %s41
      %p241 = scmp.eq.s32.totalorder %s240, 0
      %s243 = sadd.s32 %s242, 1
      %s244 = scalar_select %p241, %s242, %s243
      %p247 = pneg %p241
      %p248 = scmp.eq.s32.totalorder %s34, 1
      %p249 = por %p247, %p248
      %p250 = scmp.ne.s32.totalorder %s242, %s245
      %p251 = scmp.eq.s32.totalorder %s34, 0
      %p252 = por %p250, %p251
      %p253 = scmp.ne.s32.totalorder %s242, %s245
      %p254 = scmp.eq.s32.totalorder %s39, 1
      %p255 = por %p253, %p254
      %p256 = scmp.ne.s32.totalorder %s245, %s246
      %p257 = scmp.eq.s32.totalorder %s39, 0
      %p258 = por %p256, %p257
      %p259 = scmp.ne.s32.totalorder %s245, %s246
      %p260 = scmp.eq.s32.totalorder %s40, 1
      %p261 = por %p259, %p260
      %p263 = scmp.ne.s32.totalorder %s246, %s262
      %p264 = scmp.eq.s32.totalorder %s40, 0
      %p265 = por %p263, %p264
      %s266 = ssub.s32 %s34, %s41
      %p267 = scmp.eq.s32.totalorder %s266, 0
      %s269 = sadd.s32 %s268, 1
      %s270 = scalar_select %p267, %s268, %s269
      %p273 = pneg %p267
      %p274 = scmp.eq.s32.totalorder %s34, 1
      %p275 = por %p273, %p274
      %p276 = scmp.ne.s32.totalorder %s268, %s271
      %p277 = scmp.eq.s32.totalorder %s34, 0
      %p278 = por %p276, %p277
      %p279 = scmp.ne.s32.totalorder %s268, %s271
      %p280 = scmp.eq.s32.totalorder %s39, 1
      %p281 = por %p279, %p280
      %p282 = scmp.ne.s32.totalorder %s271, %s272
      %p283 = scmp.eq.s32.totalorder %s39, 0
      %p284 = por %p282, %p283
      %p285 = scmp.ne.s32.totalorder %s271, %s272
      %p286 = scmp.eq.s32.totalorder %s40, 1
      %p287 = por %p285, %p286
      %p289 = scmp.ne.s32.totalorder %s272, %s288
      %p290 = scmp.eq.s32.totalorder %s40, 0
      %p291 = por %p289, %p290
      %s292 = ssub.s32 %s34, %s41
      %p293 = scmp.eq.s32.totalorder %s292, 0
      %s295 = sadd.s32 %s294, 1
      %s296 = scalar_select %p293, %s294, %s295
      %p299 = pneg %p293
      %p300 = scmp.eq.s32.totalorder %s34, 1
      %p301 = por %p299, %p300
      %p302 = scmp.ne.s32.totalorder %s294, %s297
      %p303 = scmp.eq.s32.totalorder %s34, 0
      %p304 = por %p302, %p303
      %p305 = scmp.ne.s32.totalorder %s294, %s297
      %p306 = scmp.eq.s32.totalorder %s39, 1
      %p307 = por %p305, %p306
      %p308 = scmp.ne.s32.totalorder %s297, %s298
      %p309 = scmp.eq.s32.totalorder %s39, 0
      %p310 = por %p308, %p309
      %p311 = scmp.ne.s32.totalorder %s297, %s298
      %p312 = scmp.eq.s32.totalorder %s40, 1
      %p313 = por %p311, %p312
      %p315 = scmp.ne.s32.totalorder %s298, %s314
      %p316 = scmp.eq.s32.totalorder %s40, 0
      %p317 = por %p315, %p316
      %s318 = ssub.s32 %s34, %s41
      %p319 = scmp.eq.s32.totalorder %s318, 0
      %s321 = sadd.s32 %s320, 1
      %s322 = scalar_select %p319, %s320, %s321
      %p325 = pneg %p319
      %p326 = scmp.eq.s32.totalorder %s34, 1
      %p327 = por %p325, %p326
      %p328 = scmp.ne.s32.totalorder %s320, %s323
      %p329 = scmp.eq.s32.totalorder %s34, 0
      %p330 = por %p328, %p329
      %p331 = scmp.ne.s32.totalorder %s320, %s323
      %p332 = scmp.eq.s32.totalorder %s39, 1
      %p333 = por %p331, %p332
      %p334 = scmp.ne.s32.totalorder %s323, %s324
      %p335 = scmp.eq.s32.totalorder %s39, 0
      %p336 = por %p334, %p335
      %p337 = scmp.ne.s32.totalorder %s323, %s324
      %p338 = scmp.eq.s32.totalorder %s40, 1
      %p339 = por %p337, %p338
      %p341 = scmp.ne.s32.totalorder %s324, %s340
      %p342 = scmp.eq.s32.totalorder %s40, 0
      %p343 = por %p341, %p342
      %s344 = ssub.s32 %s34, %s41
      %p345 = scmp.eq.s32.totalorder %s344, 0
      %s347 = sadd.s32 %s346, 1
      %s348 = scalar_select %p345, %s346, %s347
      %p351 = pneg %p345
      %p352 = scmp.eq.s32.totalorder %s34, 1
      %p353 = por %p351, %p352
      %p354 = scmp.ne.s32.totalorder %s346, %s349
      %p355 = scmp.eq.s32.totalorder %s34, 0
      %p356 = por %p354, %p355
      %p357 = scmp.ne.s32.totalorder %s346, %s349
      %p358 = scmp.eq.s32.totalorder %s39, 1
      %p359 = por %p357, %p358
      %p360 = scmp.ne.s32.totalorder %s349, %s350
      %p361 = scmp.eq.s32.totalorder %s39, 0
      %p362 = por %p360, %p361
      %p363 = scmp.ne.s32.totalorder %s349, %s350
      %p364 = scmp.eq.s32.totalorder %s40, 1
      %p365 = por %p363, %p364
      %p367 = scmp.ne.s32.totalorder %s350, %s366
      %p368 = scmp.eq.s32.totalorder %s40, 0
      %p369 = por %p367, %p368
      %s370 = ssub.s32 %s34, %s41
      %p371 = scmp.eq.s32.totalorder %s370, 0
      %s373 = sadd.s32 %s372, 1
      %s374 = scalar_select %p371, %s372, %s373
      %p377 = pneg %p371
      %p378 = scmp.eq.s32.totalorder %s34, 1
      %p379 = por %p377, %p378
      %p380 = scmp.ne.s32.totalorder %s372, %s375
      %p381 = scmp.eq.s32.totalorder %s34, 0
      %p382 = por %p380, %p381
      %p383 = scmp.ne.s32.totalorder %s372, %s375
      %p384 = scmp.eq.s32.totalorder %s39, 1
      %p385 = por %p383, %p384
      %p386 = scmp.ne.s32.totalorder %s375, %s376
      %p387 = scmp.eq.s32.totalorder %s39, 0
      %p388 = por %p386, %p387
      %p389 = scmp.ne.s32.totalorder %s375, %s376
      %p390 = scmp.eq.s32.totalorder %s40, 1
      %p391 = por %p389, %p390
      %p393 = scmp.ne.s32.totalorder %s376, %s392
      %p394 = scmp.eq.s32.totalorder %s40, 0
      %p395 = por %p393, %p394
      %s397 = sadd.s32 %s396, 1
      %p400 = scmp.eq.s32.totalorder %s34, 1
      %p401 = scmp.ne.s32.totalorder %s396, %s398
      %p402 = scmp.eq.s32.totalorder %s34, 0
      %p403 = por %p401, %p402
      %p404 = scmp.ne.s32.totalorder %s396, %s398
      %p405 = scmp.eq.s32.totalorder %s39, 1
      %p406 = por %p404, %p405
      %p407 = scmp.ne.s32.totalorder %s398, %s399
      %p408 = scmp.eq.s32.totalorder %s39, 0
      %p409 = por %p407, %p408
      %p410 = scmp.ne.s32.totalorder %s398, %s399
      %p411 = scmp.eq.s32.totalorder %s40, 1
      %p412 = por %p410, %p411
      %p414 = scmp.ne.s32.totalorder %s399, %s413
      %p415 = scmp.eq.s32.totalorder %s40, 0
      %p416 = por %p414, %p415
      %s418 = sadd.s32 %s417, 1
      %p421 = scmp.eq.s32.totalorder %s34, 1
      %p422 = scmp.ne.s32.totalorder %s417, %s419
      %p423 = scmp.eq.s32.totalorder %s34, 0
      %p424 = por %p422, %p423
      %p425 = scmp.ne.s32.totalorder %s417, %s419
      %p426 = scmp.eq.s32.totalorder %s39, 1
      %p427 = por %p425, %p426
      %p428 = scmp.ne.s32.totalorder %s419, %s420
      %p429 = scmp.eq.s32.totalorder %s39, 0
      %p430 = por %p428, %p429
      %p431 = scmp.ne.s32.totalorder %s419, %s420
      %p432 = scmp.eq.s32.totalorder %s40, 1
      %p433 = por %p431, %p432
      %p435 = scmp.ne.s32.totalorder %s420, %s434
      %p436 = scmp.eq.s32.totalorder %s40, 0
      %p437 = por %p435, %p436
      %s439 = sadd.s32 %s438, 1
      %p442 = scmp.eq.s32.totalorder %s34, 1
      %p443 = scmp.ne.s32.totalorder %s438, %s440
      %p444 = scmp.eq.s32.totalorder %s34, 0
      %p445 = por %p443, %p444
      %p446 = scmp.ne.s32.totalorder %s438, %s440
      %p447 = scmp.eq.s32.totalorder %s39, 1
      %p448 = por %p446, %p447
      %p449 = scmp.ne.s32.totalorder %s440, %s441
      %p450 = scmp.eq.s32.totalorder %s39, 0
      %p451 = por %p449, %p450
      %p452 = scmp.ne.s32.totalorder %s440, %s441
      %p453 = scmp.eq.s32.totalorder %s40, 1
      %p454 = por %p452, %p453
      %p456 = scmp.ne.s32.totalorder %s441, %s455
      %p457 = scmp.eq.s32.totalorder %s40, 0
      %p458 = por %p456, %p457
      %p459 = scmp.le.s32.totalorder 1, %s34
      %p460 = scmp.lt.s32.totalorder %s34, 3
      %p461 = pnand %p459, %p460
      %p462 = pneg %p461
      // Predicated region
      $region9: #{bert_encoder_forward_pallas.1} parent=5 // pred_check
        _
      $region10: #{bert_encoder_forward_pallas.1} parent=5 // pred_check_branch
        %464 = sbr.rel (%p461) target = $region12
      $region11: #{bert_encoder_forward_pallas.1} parent=5 // pred_region
        %s465 = ssub.s32 %s34, 1
        // Predicated region
        $region13: #{bert_encoder_forward_pallas.1} parent=11 // pred_check
          %p466 = pneg %p55
        $region14: #{bert_encoder_forward_pallas.1} parent=11 // pred_check_branch
          %468 = sbr.rel (%p466) target = $region16
        $region15: #{bert_encoder_forward_pallas.1} parent=11 // pred_region
          %s470 = ssub.s32 16, 16
          %471 = vsyncadd [#allocation6], %s470
          %s473 = sshll.u32 [#allocation5], 4
          %s474 = int_to_ptr.vmem [resolvable:$true] %s473
          %476 = dma.hbm_to_vmem [thread:$0]  %s2, 16, %s474, [#allocation6]
        $region16: #{bert_encoder_forward_pallas.1} parent=11 // pred_fallthru
          _
        // Predicated region
        $region17: #{bert_encoder_forward_pallas.1} parent=11 // pred_check
          %p477 = pneg %p76
        $region18: #{bert_encoder_forward_pallas.1} parent=11 // pred_check_branch
          %479 = sbr.rel (%p477) target = $region20
        $region19: #{bert_encoder_forward_pallas.1} parent=11 // pred_region
          %s481 = ssub.s32 16, 16
          %482 = vsyncadd [#allocation9], %s481
          %s484 = sshll.u32 [#allocation8], 4
          %s485 = int_to_ptr.vmem [resolvable:$true] %s484
          %487 = dma.hbm_to_vmem [thread:$0]  %s3, 16, %s485, [#allocation9]
        $region20: #{bert_encoder_forward_pallas.1} parent=11 // pred_fallthru
          _
        // Predicated region
        $region21: #{bert_encoder_forward_pallas.1} parent=11 // pred_check
          %p488 = pneg %p409
        $region22: #{bert_encoder_forward_pallas.1} parent=11 // pred_check_branch
          %490 = sbr.rel (%p488) target = $region24
        $region23: #{bert_encoder_forward_pallas.1} parent=11 // pred_region
          %s492 = ssub.s32 4096, 4096
          %493 = vsyncadd [#allocation9], %s492
          %s494 = sshll.u32 [#allocation10], 4
          %s495 = int_to_ptr.vmem [resolvable:$true] %s494
          %500 = dma.hbm_to_vmem [thread:$0]  %s16, 4096, %s495, [#allocation9], 128, 128, 8
        $region24: #{bert_encoder_forward_pallas.1} parent=11 // pred_fallthru
          _
        // Predicated region
        $region25: #{bert_encoder_forward_pallas.1} parent=11 // pred_check
          %p501 = pneg %p430
        $region26: #{bert_encoder_forward_pallas.1} parent=11 // pred_check_branch
          %503 = sbr.rel (%p501) target = $region28
        $region27: #{bert_encoder_forward_pallas.1} parent=11 // pred_region
          %s505 = ssub.s32 16, 16
          %506 = vsyncadd [#allocation12], %s505
          %s508 = sshll.u32 [#allocation11], 4
          %s509 = int_to_ptr.vmem [resolvable:$true] %s508
          %511 = dma.hbm_to_vmem [thread:$0]  %s17, 16, %s509, [#allocation12]
        $region28: #{bert_encoder_forward_pallas.1} parent=11 // pred_fallthru
          _
      $region12: #{bert_encoder_forward_pallas.1} parent=5 // pred_fallthru
        _
      %p512 = scmp.lt.s32.totalorder %s34, 2
      // Predicated region
      $region29: #{bert_encoder_forward_pallas.1} parent=5 // pred_check
        %p513 = pneg %p512
      $region30: #{bert_encoder_forward_pallas.1} parent=5 // pred_check_branch
        %515 = sbr.rel (%p513) target = $region32
      $region31: #{bert_encoder_forward_pallas.1} parent=5 // pred_region
        // Predicated region
        $region33: #{bert_encoder_forward_pallas.1} parent=31 // pred_check
          %p516 = pneg %p96
        $region34: #{bert_encoder_forward_pallas.1} parent=31 // pred_check_branch
          %518 = sbr.rel (%p516) target = $region36
        $region35: #{bert_encoder_forward_pallas.1} parent=31 // pred_region
          %p519 = scmp.lt.s32.totalorder %s34, 1
          %s520 = scalar_select %p519, %s34, 1
          %s521 = smul.addr %s520, 96
          %s522 = smul.addr %s521, 4
          %s523 = scalar_lea.vmem %s4, %s522
        $region36: #{bert_encoder_forward_pallas.1} parent=31 // pred_fallthru
          _
        // Predicated region
        $region37: #{bert_encoder_forward_pallas.1} parent=31 // pred_check
          %p524 = pneg %p122
        $region38: #{bert_encoder_forward_pallas.1} parent=31 // pred_check_branch
          %526 = sbr.rel (%p524) target = $region40
        $region39: #{bert_encoder_forward_pallas.1} parent=31 // pred_region
          %p527 = scmp.lt.s32.totalorder %s34, 1
          %s528 = scalar_select %p527, %s34, 1
          %s529 = smul.addr %s528, 6
          %s530 = scalar_lea.vmem %s5, %s529
        $region40: #{bert_encoder_forward_pallas.1} parent=31 // pred_fallthru
          _
        // Predicated region
        $region41: #{bert_encoder_forward_pallas.1} parent=31 // pred_check
          %p531 = pneg %p148
        $region42: #{bert_encoder_forward_pallas.1} parent=31 // pred_check_branch
          %533 = sbr.rel (%p531) target = $region44
        $region43: #{bert_encoder_forward_pallas.1} parent=31 // pred_region
          %p534 = scmp.lt.s32.totalorder %s34, 1
          %s535 = scalar_select %p534, %s34, 1
          %s536 = smul.addr %s535, 32
          %s537 = smul.addr %s536, 4
          %s538 = scalar_lea.vmem %s6, %s537
        $region44: #{bert_encoder_forward_pallas.1} parent=31 // pred_fallthru
          _
        // Predicated region
        $region45: #{bert_encoder_forward_pallas.1} parent=31 // pred_check
          %p539 = pneg %p174
        $region46: #{bert_encoder_forward_pallas.1} parent=31 // pred_check_branch
          %541 = sbr.rel (%p539) target = $region48
        $region47: #{bert_encoder_forward_pallas.1} parent=31 // pred_region
          %p542 = scmp.lt.s32.totalorder %s34, 1
          %s543 = scalar_select %p542, %s34, 1
          %s544 = scalar_lea.vmem %s7, %s543
        $region48: #{bert_encoder_forward_pallas.1} parent=31 // pred_fallthru
          _
        // Predicated region
        $region49: #{bert_encoder_forward_pallas.1} parent=31 // pred_check
          %p545 = pneg %p200
        $region50: #{bert_encoder_forward_pallas.1} parent=31 // pred_check_branch
          %547 = sbr.rel (%p545) target = $region52
        $region51: #{bert_encoder_forward_pallas.1} parent=31 // pred_region
          %p548 = scmp.lt.s32.totalorder %s34, 1
          %s549 = scalar_select %p548, %s34, 1
          %s550 = scalar_lea.vmem %s8, %s549
        $region52: #{bert_encoder_forward_pallas.1} parent=31 // pred_fallthru
          _
        // Predicated region
        $region53: #{bert_encoder_forward_pallas.1} parent=31 // pred_check
          %p551 = pneg %p226
        $region54: #{bert_encoder_forward_pallas.1} parent=31 // pred_check_branch
          %553 = sbr.rel (%p551) target = $region56
        $region55: #{bert_encoder_forward_pallas.1} parent=31 // pred_region
          %p554 = scmp.lt.s32.totalorder %s34, 1
          %s555 = scalar_select %p554, %s34, 1
          %s556 = scalar_lea.vmem %s9, %s555
        $region56: #{bert_encoder_forward_pallas.1} parent=31 // pred_fallthru
          _
        // Predicated region
        $region57: #{bert_encoder_forward_pallas.1} parent=31 // pred_check
          %p557 = pneg %p252
        $region58: #{bert_encoder_forward_pallas.1} parent=31 // pred_check_branch
          %559 = sbr.rel (%p557) target = $region60
        $region59: #{bert_encoder_forward_pallas.1} parent=31 // pred_region
          %p560 = scmp.lt.s32.totalorder %s34, 1
          %s561 = scalar_select %p560, %s34, 1
          %s562 = smul.addr %s561, 64
          %s563 = smul.addr %s562, 4
          %s564 = scalar_lea.vmem %s10, %s563
        $region60: #{bert_encoder_forward_pallas.1} parent=31 // pred_fallthru
          _
        // Predicated region
        $region61: #{bert_encoder_forward_pallas.1} parent=31 // pred_check
          %p565 = pneg %p278
        $region62: #{bert_encoder_forward_pallas.1} parent=31 // pred_check_branch
          %567 = sbr.rel (%p565) target = $region64
        $region63: #{bert_encoder_forward_pallas.1} parent=31 // pred_region
          %p568 = scmp.lt.s32.totalorder %s34, 1
          %s569 = scalar_select %p568, %s34, 1
          %s570 = smul.addr %s569, 4
          %s571 = scalar_lea.vmem %s11, %s570
        $region64: #{bert_encoder_forward_pallas.1} parent=31 // pred_fallthru
          _
        // Predicated region
        $region65: #{bert_encoder_forward_pallas.1} parent=31 // pred_check
          %p572 = pneg %p304
        $region66: #{bert_encoder_forward_pallas.1} parent=31 // pred_check_branch
          %574 = sbr.rel (%p572) target = $region68
        $region67: #{bert_encoder_forward_pallas.1} parent=31 // pred_region
          %p575 = scmp.lt.s32.totalorder %s34, 1
          %s576 = scalar_select %p575, %s34, 1
          %s577 = smul.addr %s576, 64
          %s578 = smul.addr %s577, 4
          %s579 = scalar_lea.vmem %s12, %s578
        $region68: #{bert_encoder_forward_pallas.1} parent=31 // pred_fallthru
          _
        // Predicated region
        $region69: #{bert_encoder_forward_pallas.1} parent=31 // pred_check
          %p580 = pneg %p330
        $region70: #{bert_encoder_forward_pallas.1} parent=31 // pred_check_branch
          %582 = sbr.rel (%p580) target = $region72
        $region71: #{bert_encoder_forward_pallas.1} parent=31 // pred_region
          %p583 = scmp.lt.s32.totalorder %s34, 1
          %s584 = scalar_select %p583, %s34, 1
          %s585 = scalar_lea.vmem %s13, %s584
        $region72: #{bert_encoder_forward_pallas.1} parent=31 // pred_fallthru
          _
        // Predicated region
        $region73: #{bert_encoder_forward_pallas.1} parent=31 // pred_check
          %p586 = pneg %p356
        $region74: #{bert_encoder_forward_pallas.1} parent=31 // pred_check_branch
          %588 = sbr.rel (%p586) target = $region76
        $region75: #{bert_encoder_forward_pallas.1} parent=31 // pred_region
          %p589 = scmp.lt.s32.totalorder %s34, 1
          %s590 = scalar_select %p589, %s34, 1
          %s591 = scalar_lea.vmem %s14, %s590
        $region76: #{bert_encoder_forward_pallas.1} parent=31 // pred_fallthru
          _
        // Predicated region
        $region77: #{bert_encoder_forward_pallas.1} parent=31 // pred_check
          %p592 = pneg %p382
        $region78: #{bert_encoder_forward_pallas.1} parent=31 // pred_check_branch
          %594 = sbr.rel (%p592) target = $region80
        $region79: #{bert_encoder_forward_pallas.1} parent=31 // pred_region
          %p595 = scmp.lt.s32.totalorder %s34, 1
          %s596 = scalar_select %p595, %s34, 1
          %s597 = scalar_lea.vmem %s15, %s596
        $region80: #{bert_encoder_forward_pallas.1} parent=31 // pred_fallthru
          _
      $region32: #{bert_encoder_forward_pallas.1} parent=5 // pred_fallthru
        _
      %p598 = scmp.le.s32.totalorder 1, %s34
      %p599 = scmp.lt.s32.totalorder %s34, 3
      %p600 = pnand %p598, %p599
      %p601 = pneg %p600
      // Predicated region
      $region81: #{bert_encoder_forward_pallas.1} parent=5 // pred_check
        _
      $region82: #{bert_encoder_forward_pallas.1} parent=5 // pred_check_branch
        %603 = sbr.rel (%p600) target = $region84
      $region83: #{bert_encoder_forward_pallas.1} parent=5 // pred_region
        %s604 = ssub.s32 %s34, 1
        // Predicated region
        $region85: #{bert_encoder_forward_pallas.1} parent=83 // pred_check
          %p605 = pneg %p55
        $region86: #{bert_encoder_forward_pallas.1} parent=83 // pred_check_branch
          %607 = sbr.rel (%p605) target = $region88
        $region87: #{bert_encoder_forward_pallas.1} parent=83 // pred_region
          %608 = dma.done [#allocation6], 16
        $region88: #{bert_encoder_forward_pallas.1} parent=83 // pred_fallthru
          _
        // Predicated region
        $region89: #{bert_encoder_forward_pallas.1} parent=83 // pred_check
          %p609 = pneg %p76
        $region90: #{bert_encoder_forward_pallas.1} parent=83 // pred_check_branch
          %611 = sbr.rel (%p609) target = $region92
        $region91: #{bert_encoder_forward_pallas.1} parent=83 // pred_region
          %612 = dma.done [#allocation9], 16
        $region92: #{bert_encoder_forward_pallas.1} parent=83 // pred_fallthru
          _
        // Predicated region
        $region93: #{bert_encoder_forward_pallas.1} parent=83 // pred_check
          %p613 = pneg %p409
        $region94: #{bert_encoder_forward_pallas.1} parent=83 // pred_check_branch
          %615 = sbr.rel (%p613) target = $region96
        $region95: #{bert_encoder_forward_pallas.1} parent=83 // pred_region
          %616 = dma.done [#allocation9], 4096
        $region96: #{bert_encoder_forward_pallas.1} parent=83 // pred_fallthru
          _
        // Predicated region
        $region97: #{bert_encoder_forward_pallas.1} parent=83 // pred_check
          %p617 = pneg %p430
        $region98: #{bert_encoder_forward_pallas.1} parent=83 // pred_check_branch
          %619 = sbr.rel (%p617) target = $region100
        $region99: #{bert_encoder_forward_pallas.1} parent=83 // pred_region
          %620 = dma.done [#allocation12], 16
        $region100: #{bert_encoder_forward_pallas.1} parent=83 // pred_fallthru
          _
        %p621 = pneg %p55
        %p622 = pneg %p52
        %p623 = pneg %p76
        %p624 = pneg %p73
        %p625 = scmp.lt.s32.totalorder %s39, 1
        %s626 = scalar_select %p625, %s39, 1
        %s627 = smul.addr %s626, 96
        %s628 = smul.addr %s627, 4
        %s629 = scalar_lea.vmem %s4, %s628
        %p630 = pneg %p102
        %p631 = pneg %p99
        %p632 = scmp.lt.s32.totalorder %s39, 1
        %s633 = scalar_select %p632, %s39, 1
        %s634 = smul.addr %s633, 6
        %s635 = scalar_lea.vmem %s5, %s634
        %p636 = pneg %p128
        %p637 = pneg %p125
        %p638 = scmp.lt.s32.totalorder %s39, 1
        %s639 = scalar_select %p638, %s39, 1
        %s640 = smul.addr %s639, 32
        %s641 = smul.addr %s640, 4
        %s642 = scalar_lea.vmem %s6, %s641
        %p643 = pneg %p154
        %p644 = pneg %p151
        %p645 = scmp.lt.s32.totalorder %s39, 1
        %s646 = scalar_select %p645, %s39, 1
        %s647 = scalar_lea.vmem %s7, %s646
        %p648 = pneg %p180
        %p649 = pneg %p177
        %p650 = scmp.lt.s32.totalorder %s39, 1
        %s651 = scalar_select %p650, %s39, 1
        %s652 = scalar_lea.vmem %s8, %s651
        %p653 = pneg %p206
        %p654 = pneg %p203
        %p655 = scmp.lt.s32.totalorder %s39, 1
        %s656 = scalar_select %p655, %s39, 1
        %s657 = scalar_lea.vmem %s9, %s656
        %p658 = pneg %p232
        %p659 = pneg %p229
        %p660 = scmp.lt.s32.totalorder %s39, 1
        %s661 = scalar_select %p660, %s39, 1
        %s662 = smul.addr %s661, 64
        %s663 = smul.addr %s662, 4
        %s664 = scalar_lea.vmem %s10, %s663
        %p665 = pneg %p258
        %p666 = pneg %p255
        %p667 = scmp.lt.s32.totalorder %s39, 1
        %s668 = scalar_select %p667, %s39, 1
        %s669 = smul.addr %s668, 4
        %s670 = scalar_lea.vmem %s11, %s669
        %p671 = pneg %p284
        %p672 = pneg %p281
        %p673 = scmp.lt.s32.totalorder %s39, 1
        %s674 = scalar_select %p673, %s39, 1
        %s675 = smul.addr %s674, 64
        %s676 = smul.addr %s675, 4
        %s677 = scalar_lea.vmem %s12, %s676
        %p678 = pneg %p310
        %p679 = pneg %p307
        %p680 = scmp.lt.s32.totalorder %s39, 1
        %s681 = scalar_select %p680, %s39, 1
        %s682 = scalar_lea.vmem %s13, %s681
        %p683 = pneg %p336
        %p684 = pneg %p333
        %p685 = scmp.lt.s32.totalorder %s39, 1
        %s686 = scalar_select %p685, %s39, 1
        %s687 = scalar_lea.vmem %s14, %s686
        %p688 = pneg %p362
        %p689 = pneg %p359
        %p690 = scmp.lt.s32.totalorder %s39, 1
        %s691 = scalar_select %p690, %s39, 1
        %s692 = scalar_lea.vmem %s15, %s691
        %p693 = pneg %p388
        %p694 = pneg %p385
        %p695 = pneg %p409
        %p696 = pneg %p406
        %p697 = pneg %p430
        %p698 = pneg %p427
        %p699 = pneg %p451
        %p700 = pneg %p448
        %p701 = scmp.lt.s32.totalorder %s39, 1
        %s702 = scalar_select %p701, %s39, 1
        %s703 = smul.addr %s702, 96
        %s704 = smul.addr %s703, 4
        %s705 = scalar_lea.vmem %s4, %s704
        %p706 = scmp.lt.s32.totalorder %s39, 1
        %s707 = scalar_select %p706, %s39, 1
        %s708 = smul.addr %s707, 6
        %s709 = scalar_lea.vmem %s5, %s708
        %p710 = scmp.lt.s32.totalorder %s39, 1
        %s711 = scalar_select %p710, %s39, 1
        %s712 = smul.addr %s711, 32
        %s713 = smul.addr %s712, 4
        %s714 = scalar_lea.vmem %s6, %s713
        %p715 = scmp.lt.s32.totalorder %s39, 1
        %s716 = scalar_select %p715, %s39, 1
        %s717 = scalar_lea.vmem %s7, %s716
        %p718 = scmp.lt.s32.totalorder %s39, 1
        %s719 = scalar_select %p718, %s39, 1
        %s720 = scalar_lea.vmem %s8, %s719
        %p721 = scmp.lt.s32.totalorder %s39, 1
        %s722 = scalar_select %p721, %s39, 1
        %s723 = scalar_lea.vmem %s9, %s722
        %p724 = scmp.lt.s32.totalorder %s39, 1
        %s725 = scalar_select %p724, %s39, 1
        %s726 = smul.addr %s725, 64
        %s727 = smul.addr %s726, 4
        %s728 = scalar_lea.vmem %s10, %s727
        %p729 = scmp.lt.s32.totalorder %s39, 1
        %s730 = scalar_select %p729, %s39, 1
        %s731 = smul.addr %s730, 4
        %s732 = scalar_lea.vmem %s11, %s731
        %p733 = scmp.lt.s32.totalorder %s39, 1
        %s734 = scalar_select %p733, %s39, 1
        %s735 = smul.addr %s734, 64
        %s736 = smul.addr %s735, 4
        %s737 = scalar_lea.vmem %s12, %s736
        %p738 = scmp.lt.s32.totalorder %s39, 1
        %s739 = scalar_select %p738, %s39, 1
        %s740 = scalar_lea.vmem %s13, %s739
        %p741 = scmp.lt.s32.totalorder %s39, 1
        %s742 = scalar_select %p741, %s39, 1
        %s743 = scalar_lea.vmem %s14, %s742
        %p744 = scmp.lt.s32.totalorder %s39, 1
        %s745 = scalar_select %p744, %s39, 1
        %s746 = scalar_lea.vmem %s15, %s745
        %p748 = scmp.eq.s32.totalorder %s39, 0
        // Predicated region
        $region101: #{bert_encoder_forward_pallas.1} parent=83 // pred_check
          %p749 = pneg %p748
        $region102: #{bert_encoder_forward_pallas.1} parent=83 // pred_check_branch
          %751 = sbr.rel (%p749) target = $region104
        $region103: #{bert_encoder_forward_pallas.1} parent=83 // pred_region
          $region105: #{bert_encoder_forward_pallas.1} parent=103
            #allocation14 [shape = 's32[1]{0}', space=sflag, size = 0x4, scoped, tag = 'scoped memory for bert_encoder_forward_pallas.1']
            %p753 = scmp.lt.u32.totalorder 64, 8
            %p754 = pneg %p753
            // Predicated region
            $region106: #{bert_encoder_forward_pallas.1} parent=105 // pred_check
              _
            $region107: #{bert_encoder_forward_pallas.1} parent=105 // pred_check_branch
              %756 = sbr.rel (%p753) target = $region109
            $region108: #{bert_encoder_forward_pallas.1} parent=105 // pred_region
              %s771 = sand.u32 64, 7
              %p772 = scmp.eq.s32.totalorder %s771, 0
              // Predicated region
              $region121: #{bert_encoder_forward_pallas.1} parent=108 // pred_check
                %p773 = pneg %p772
              $region122: #{bert_encoder_forward_pallas.1} parent=108 // pred_check_branch
                %775 = sbr.rel (%p773) target = $region124
              $region123: #{bert_encoder_forward_pallas.1} parent=108 // pred_region
                loop: start=0, step=1, limit=1
                $region125: #{bert_encoder_forward_pallas.1} parent=123 // loop_pre_header
                  _
                $region126: #{bert_encoder_forward_pallas.1} parent=123 // loop_header
                  %s777 = sphi 0, %s781
                  %p778 = scmp.ge.s32.totalorder %s777, 1
                  %s782 = sphi %s1, %s1
                  %s783 = sphi [#allocation2], [#allocation2]
                $region127: #{bert_encoder_forward_pallas.1} parent=123 // loop_header_branch
                  %780 = sbr.rel (%p778) target = $region131
                $region128: #{bert_encoder_forward_pallas.1} parent=123 // loop_body
                  %v784 = vld [vmem:[%s782] sm:$0xff]
                  %785 = vst [vmem:[%s783] sm:$0xff] %v784
                  %v786 = vld [vmem:[%s782 + $0x8] sm:$0xff]
                  %787 = vst [vmem:[%s783 + $0x8] sm:$0xff] %v786
                  %v788 = vld [vmem:[%s782 + $0x10] sm:$0xff]
                  %789 = vst [vmem:[%s783 + $0x10] sm:$0xff] %v788
                  %v790 = vld [vmem:[%s782 + $0x18] sm:$0xff]
                  %791 = vst [vmem:[%s783 + $0x18] sm:$0xff] %v790
                  %v792 = vld [vmem:[%s782 + $0x20] sm:$0xff]
                  %793 = vst [vmem:[%s783 + $0x20] sm:$0xff] %v792
                  %v794 = vld [vmem:[%s782 + $0x28] sm:$0xff]
                  %795 = vst [vmem:[%s783 + $0x28] sm:$0xff] %v794
                  %v796 = vld [vmem:[%s782 + $0x30] sm:$0xff]
                  %797 = vst [vmem:[%s783 + $0x30] sm:$0xff] %v796
                  %v798 = vld [vmem:[%s782 + $0x38] sm:$0xff]
                  %799 = vst [vmem:[%s783 + $0x38] sm:$0xff] %v798
                $region129: #{bert_encoder_forward_pallas.1} parent=123 // loop_footer
                  %s781 = sadd.s32 1, %s777
                $region130: #{bert_encoder_forward_pallas.1} parent=123 // loop_footer_branch
                  %776 = sbr.rel target = $region126
                $region131: #{bert_encoder_forward_pallas.1} parent=123 // loop_exit
                  _
              $region124: #{bert_encoder_forward_pallas.1} parent=108 // pred_fallthru
                _
              %p800 = pneg %p772
              // Predicated region
              $region132: #{bert_encoder_forward_pallas.1} parent=108 // pred_check
                _
              $region133: #{bert_encoder_forward_pallas.1} parent=108 // pred_check_branch
                %802 = sbr.rel (%p772) target = $region135
              $region134: #{bert_encoder_forward_pallas.1} parent=108 // pred_region
                %s803 = sand.u32 64, 7
              $region135: #{bert_encoder_forward_pallas.1} parent=108 // pred_fallthru
                _
            $region109: #{bert_encoder_forward_pallas.1} parent=105 // pred_fallthru
              _
            // Predicated region
            $region110: #{bert_encoder_forward_pallas.1} parent=105 // pred_check
              %p757 = pneg %p753
            $region111: #{bert_encoder_forward_pallas.1} parent=105 // pred_check_branch
              %759 = sbr.rel (%p757) target = $region113
            $region112: #{bert_encoder_forward_pallas.1} parent=105 // pred_region
              %s760 = sshllo.u32 0, 64
              loop: start=0, step=1, limit=1
              $region114: #{bert_encoder_forward_pallas.1} parent=112 // loop_pre_header
                _
              $region115: #{bert_encoder_forward_pallas.1} parent=112 // loop_header
                %s762 = sphi 0, %s766
                %p763 = scmp.ge.s32.totalorder %s762, 1
                %s767 = sphi %s1, %s1
                %s768 = sphi [#allocation2], [#allocation2]
              $region116: #{bert_encoder_forward_pallas.1} parent=112 // loop_header_branch
                %765 = sbr.rel (%p763) target = $region120
              $region117: #{bert_encoder_forward_pallas.1} parent=112 // loop_body
                %v769 = vld [vmem:[%s767] sm:%s760]
                %770 = vst [vmem:[%s768] sm:%s760] %v769
              $region118: #{bert_encoder_forward_pallas.1} parent=112 // loop_footer
                %s766 = sadd.s32 1, %s762
              $region119: #{bert_encoder_forward_pallas.1} parent=112 // loop_footer_branch
                %761 = sbr.rel target = $region115
              $region120: #{bert_encoder_forward_pallas.1} parent=112 // loop_exit
                _
            $region113: #{bert_encoder_forward_pallas.1} parent=105 // pred_fallthru
              _
            // Predicated region
            $region136: #{bert_encoder_forward_pallas.1} parent=105 // pred_check
              _
            $region137: #{bert_encoder_forward_pallas.1} parent=105 // pred_check_branch
              %806 = sbr.rel (0) target = $region139
            $region138: #{bert_encoder_forward_pallas.1} parent=105 // pred_region
              %807 = vsyncadd [#allocation14], 1024
            $region139: #{bert_encoder_forward_pallas.1} parent=105 // pred_fallthru
              _
            %s808 = smul.u32 64, 1
            %s809 = sshll.u32 %s808, 4
            %810 = dma.done [#allocation14], %s809
          %v811 = vld [vmem:[#allocation2] sm:$0xff]
          %v812 = vld [vmem:[#allocation2 + $0x8] sm:$0xff]
          %v813 = vld [vmem:[#allocation2 + $0x10] sm:$0xff]
          %v814 = vld [vmem:[#allocation2 + $0x18] sm:$0xff]
          %v815 = vld [vmem:[#allocation2 + $0x20] sm:$0xff]
          %v816 = vld [vmem:[#allocation2 + $0x28] sm:$0xff]
          %v817 = vld [vmem:[#allocation2 + $0x30] sm:$0xff]
          %v818 = vld [vmem:[#allocation2 + $0x38] sm:$0xff]
          %v819 = vld [vmem:[#allocation5] sm:$0x1]
          %v820 = vld [vmem:[#allocation8] sm:$0x1]
          %821 = vadd.xlane.f32.xlu0 %v811
          %v822 = vpop.xlane.xlu0 %821
          %823 = vadd.xlane.f32.xlu0 %v812
          %v824 = vpop.xlane.xlu0 %823
          %825 = vadd.xlane.f32.xlu0 %v813
          %v826 = vpop.xlane.xlu0 %825
          %827 = vadd.xlane.f32.xlu0 %v814
          %v828 = vpop.xlane.xlu0 %827
          %829 = vadd.xlane.f32.xlu0 %v815
          %v830 = vpop.xlane.xlu0 %829
          %831 = vadd.xlane.f32.xlu0 %v816
          %v832 = vpop.xlane.xlu0 %831
          %833 = vadd.xlane.f32.xlu0 %v817
          %v834 = vpop.xlane.xlu0 %833
          %835 = vadd.xlane.f32.xlu0 %v818
          %v836 = vpop.xlane.xlu0 %835
          %v837 = vrcp.pop 128.0
          %v838 = vmul.f32 %v822, %v837
          %v839 = vmul.f32 %v824, %v837
          %v840 = vmul.f32 %v826, %v837
          %v841 = vmul.f32 %v828, %v837
          %v842 = vmul.f32 %v830, %v837
          %v843 = vmul.f32 %v832, %v837
          %v844 = vmul.f32 %v834, %v837
          %v845 = vmul.f32 %v836, %v837
          %v846 = vsub.f32 %v811, %v838
          %v847 = vsub.f32 %v812, %v839
          %v848 = vsub.f32 %v813, %v840
          %v849 = vsub.f32 %v814, %v841
          %v850 = vsub.f32 %v815, %v842
          %v851 = vsub.f32 %v816, %v843
          %v852 = vsub.f32 %v817, %v844
          %v853 = vsub.f32 %v818, %v845
          %v854 = vmul.f32 %v846, %v846
          %v855 = vmul.f32 %v847, %v847
          %v856 = vmul.f32 %v848, %v848
          %v857 = vmul.f32 %v849, %v849
          %v858 = vmul.f32 %v850, %v850
          %v859 = vmul.f32 %v851, %v851
          %v860 = vmul.f32 %v852, %v852
          %v861 = vmul.f32 %v853, %v853
          %862 = vadd.xlane.f32.xlu0 %v854
          %v863 = vpop.xlane.xlu0 %862
          %864 = vadd.xlane.f32.xlu0 %v855
          %v865 = vpop.xlane.xlu0 %864
          %866 = vadd.xlane.f32.xlu0 %v856
          %v867 = vpop.xlane.xlu0 %866
          %868 = vadd.xlane.f32.xlu0 %v857
          %v869 = vpop.xlane.xlu0 %868
          %870 = vadd.xlane.f32.xlu0 %v858
          %v871 = vpop.xlane.xlu0 %870
          %872 = vadd.xlane.f32.xlu0 %v859
          %v873 = vpop.xlane.xlu0 %872
          %874 = vadd.xlane.f32.xlu0 %v860
          %v875 = vpop.xlane.xlu0 %874
          %876 = vadd.xlane.f32.xlu0 %v861
          %v877 = vpop.xlane.xlu0 %876
          %v878 = vmul.f32 %v863, %v837
          %v879 = vmul.f32 %v865, %v837
          %v880 = vmul.f32 %v867, %v837
          %v881 = vmul.f32 %v869, %v837
          %v882 = vmul.f32 %v871, %v837
          %v883 = vmul.f32 %v873, %v837
          %v884 = vmul.f32 %v875, %v837
          %v885 = vmul.f32 %v877, %v837
          %v886 = vadd.f32 %v878, 1e-12
          %v887 = vadd.f32 %v879, 1e-12
          %v888 = vadd.f32 %v880, 1e-12
          %v889 = vadd.f32 %v881, 1e-12
          %v890 = vadd.f32 %v882, 1e-12
          %v891 = vadd.f32 %v883, 1e-12
          %v892 = vadd.f32 %v884, 1e-12
          %v893 = vadd.f32 %v885, 1e-12
          %v894 = vrsqrt.pop %v886
          %v895 = vrsqrt.pop %v887
          %v896 = vrsqrt.pop %v888
          %v897 = vrsqrt.pop %v889
          %v898 = vrsqrt.pop %v890
          %v899 = vrsqrt.pop %v891
          %v900 = vrsqrt.pop %v892
          %v901 = vrsqrt.pop %v893
          %v902 = vmul.f32 %v846, %v894
          %v903 = vmul.f32 %v847, %v895
          %v904 = vmul.f32 %v848, %v896
          %v905 = vmul.f32 %v849, %v897
          %v906 = vmul.f32 %v850, %v898
          %v907 = vmul.f32 %v851, %v899
          %v908 = vmul.f32 %v852, %v900
          %v909 = vmul.f32 %v853, %v901
          %v911 = vlaneseq
          %v912 = vshrl.u32 %v911, 7
          %v913 = vsub.s32 0, %v912
          %v914 = vrot.slane %v819, %v913
          %v916 = vmul.f32 %v902, %v914
          %v917 = vmul.f32 %v903, %v914
          %v918 = vmul.f32 %v904, %v914
          %v919 = vmul.f32 %v905, %v914
          %v920 = vmul.f32 %v906, %v914
          %v921 = vmul.f32 %v907, %v914
          %v922 = vmul.f32 %v908, %v914
          %v923 = vmul.f32 %v909, %v914
          %v925 = vlaneseq
          %v926 = vshrl.u32 %v925, 7
          %v927 = vsub.s32 0, %v926
          %v928 = vrot.slane %v820, %v927
          %v930 = vadd.f32 %v916, %v928
          %v931 = vadd.f32 %v917, %v928
          %v932 = vadd.f32 %v918, %v928
          %v933 = vadd.f32 %v919, %v928
          %v934 = vadd.f32 %v920, %v928
          %v935 = vadd.f32 %v921, %v928
          %v936 = vadd.f32 %v922, %v928
          %v937 = vadd.f32 %v923, %v928
          %938 = vst [vmem:[#allocation2] sm:$0xff] %v930
          %939 = vst [vmem:[#allocation2 + $0x8] sm:$0xff] %v931
          %940 = vst [vmem:[#allocation2 + $0x10] sm:$0xff] %v932
          %941 = vst [vmem:[#allocation2 + $0x18] sm:$0xff] %v933
          %942 = vst [vmem:[#allocation2 + $0x20] sm:$0xff] %v934
          %943 = vst [vmem:[#allocation2 + $0x28] sm:$0xff] %v935
          %944 = vst [vmem:[#allocation2 + $0x30] sm:$0xff] %v936
          %945 = vst [vmem:[#allocation2 + $0x38] sm:$0xff] %v937
        $region104: #{bert_encoder_forward_pallas.1} parent=83 // pred_fallthru
          _
        %v946 = vld [vmem:[#allocation2] sm:$0xff]
        %v947 = vld [vmem:[#allocation2 + $0x8] sm:$0xff]
        %v948 = vld [vmem:[#allocation2 + $0x10] sm:$0xff]
        %v949 = vld [vmem:[#allocation2 + $0x18] sm:$0xff]
        %v950 = vld [vmem:[#allocation2 + $0x20] sm:$0xff]
        %v951 = vld [vmem:[#allocation2 + $0x28] sm:$0xff]
        %v952 = vld [vmem:[#allocation2 + $0x30] sm:$0xff]
        %v953 = vld [vmem:[#allocation2 + $0x38] sm:$0xff]
        %v954 = vpack.c.bf16 %v947, %v946
        %v955 = vpack.c.bf16 %v949, %v948
        %v956 = vpack.c.bf16 %v951, %v950
        %v957 = vpack.c.bf16 %v953, %v952
        %v958 = vld [vmem:[%s705] sm:$0xff]
        %v959 = vld [vmem:[%s705 + $0x8] sm:$0xff]
        %v960 = vld [vmem:[%s705 + $0x10] sm:$0xff]
        %v961 = vld [vmem:[%s705 + $0x18] sm:$0xff]
        %v962 = vld [vmem:[%s705 + $0x20] sm:$0xff]
        %v963 = vld [vmem:[%s705 + $0x28] sm:$0xff]
        %v964 = vld [vmem:[%s705 + $0x30] sm:$0xff]
        %v965 = vld [vmem:[%s705 + $0x38] sm:$0xff]
        %v966 = vld [vmem:[%s705 + $0x40] sm:$0xff]
        %v967 = vld [vmem:[%s705 + $0x48] sm:$0xff]
        %v968 = vld [vmem:[%s705 + $0x50] sm:$0xff]
        %v969 = vld [vmem:[%s705 + $0x58] sm:$0xff]
        %v970 = vld [vmem:[%s705 + $0x60] sm:$0xff]
        %v971 = vld [vmem:[%s705 + $0x68] sm:$0xff]
        %v972 = vld [vmem:[%s705 + $0x70] sm:$0xff]
        %v973 = vld [vmem:[%s705 + $0x78] sm:$0xff]
        %v974 = vld [vmem:[%s705 + $0x80] sm:$0xff]
        %v975 = vld [vmem:[%s705 + $0x88] sm:$0xff]
        %v976 = vld [vmem:[%s705 + $0x90] sm:$0xff]
        %v977 = vld [vmem:[%s705 + $0x98] sm:$0xff]
        %v978 = vld [vmem:[%s705 + $0xa0] sm:$0xff]
        %v979 = vld [vmem:[%s705 + $0xa8] sm:$0xff]
        %v980 = vld [vmem:[%s705 + $0xb0] sm:$0xff]
        %v981 = vld [vmem:[%s705 + $0xb8] sm:$0xff]
        %v982 = vld [vmem:[%s705 + $0xc0] sm:$0xff]
        %v983 = vld [vmem:[%s705 + $0xc8] sm:$0xff]
        %v984 = vld [vmem:[%s705 + $0xd0] sm:$0xff]
        %v985 = vld [vmem:[%s705 + $0xd8] sm:$0xff]
        %v986 = vld [vmem:[%s705 + $0xe0] sm:$0xff]
        %v987 = vld [vmem:[%s705 + $0xe8] sm:$0xff]
        %v988 = vld [vmem:[%s705 + $0xf0] sm:$0xff]
        %v989 = vld [vmem:[%s705 + $0xf8] sm:$0xff]
        %v990 = vld [vmem:[%s705 + $0x100] sm:$0xff]
        %v991 = vld [vmem:[%s705 + $0x108] sm:$0xff]
        %v992 = vld [vmem:[%s705 + $0x110] sm:$0xff]
        %v993 = vld [vmem:[%s705 + $0x118] sm:$0xff]
        %v994 = vld [vmem:[%s705 + $0x120] sm:$0xff]
        %v995 = vld [vmem:[%s705 + $0x128] sm:$0xff]
        %v996 = vld [vmem:[%s705 + $0x130] sm:$0xff]
        %v997 = vld [vmem:[%s705 + $0x138] sm:$0xff]
        %v998 = vld [vmem:[%s705 + $0x140] sm:$0xff]
        %v999 = vld [vmem:[%s705 + $0x148] sm:$0xff]
        %v1000 = vld [vmem:[%s705 + $0x150] sm:$0xff]
        %v1001 = vld [vmem:[%s705 + $0x158] sm:$0xff]
        %v1002 = vld [vmem:[%s705 + $0x160] sm:$0xff]
        %v1003 = vld [vmem:[%s705 + $0x168] sm:$0xff]
        %v1004 = vld [vmem:[%s705 + $0x170] sm:$0xff]
        %v1005 = vld [vmem:[%s705 + $0x178] sm:$0xff]
        %v1006 = vld [vmem:[%s709] sm:$0x3f]
        %v1008 = vlaneseq
        %v1009 = vshrl.u32 %v1008, 7
        %v1010 = vsub.s32 0, %v1009
        %v1011 = vrot.slane %v1006, %v1010
        %v1012 = vlaneseq
        %v1013 = vshrl.u32 %v1012, 7
        %v1014 = vsub.s32 1, %v1013
        %v1015 = vrot.slane %v1006, %v1014
        %v1016 = vlaneseq
        %v1017 = vshrl.u32 %v1016, 7
        %v1018 = vsub.s32 2, %v1017
        %v1019 = vrot.slane %v1006, %v1018
        %v1020 = vlaneseq
        %v1021 = vshrl.u32 %v1020, 7
        %v1022 = vsub.s32 3, %v1021
        %v1023 = vrot.slane %v1006, %v1022
        %v1024 = vlaneseq
        %v1025 = vshrl.u32 %v1024, 7
        %v1026 = vsub.s32 4, %v1025
        %v1027 = vrot.slane %v1006, %v1026
        %v1028 = vlaneseq
        %v1029 = vshrl.u32 %v1028, 7
        %v1030 = vsub.s32 5, %v1029
        %v1031 = vrot.slane %v1006, %v1030
        %v1086 = vunpack.c.l.b16 %v958
        %v1087 = vunpack.c.h.b16 %v958
        %v1088 = vunpack.c.l.b16 %v959
        %v1089 = vunpack.c.h.b16 %v959
        %v1090 = vunpack.c.l.b16 %v960
        %v1091 = vunpack.c.h.b16 %v960
        %v1092 = vunpack.c.l.b16 %v961
        %v1093 = vunpack.c.h.b16 %v961
        %v1094 = vunpack.c.l.b16 %v962
        %v1095 = vunpack.c.h.b16 %v962
        %v1096 = vunpack.c.l.b16 %v963
        %v1097 = vunpack.c.h.b16 %v963
        %v1098 = vunpack.c.l.b16 %v964
        %v1099 = vunpack.c.h.b16 %v964
        %v1100 = vunpack.c.l.b16 %v965
        %v1101 = vunpack.c.h.b16 %v965
        %v1102 = vunpack.c.l.b16 %v966
        %v1103 = vunpack.c.h.b16 %v966
        %v1104 = vunpack.c.l.b16 %v967
        %v1105 = vunpack.c.h.b16 %v967
        %v1106 = vunpack.c.l.b16 %v968
        %v1107 = vunpack.c.h.b16 %v968
        %v1108 = vunpack.c.l.b16 %v969
        %v1109 = vunpack.c.h.b16 %v969
        %v1110 = vunpack.c.l.b16 %v970
        %v1111 = vunpack.c.h.b16 %v970
        %v1112 = vunpack.c.l.b16 %v971
        %v1113 = vunpack.c.h.b16 %v971
        %v1114 = vunpack.c.l.b16 %v972
        %v1115 = vunpack.c.h.b16 %v972
        %v1116 = vunpack.c.l.b16 %v973
        %v1117 = vunpack.c.h.b16 %v973
        %v1118 = vunpack.c.l.b16 %v974
        %v1119 = vunpack.c.h.b16 %v974
        %v1120 = vunpack.c.l.b16 %v975
        %v1121 = vunpack.c.h.b16 %v975
        %v1122 = vunpack.c.l.b16 %v976
        %v1123 = vunpack.c.h.b16 %v976
        %v1124 = vunpack.c.l.b16 %v977
        %v1125 = vunpack.c.h.b16 %v977
        %v1126 = vunpack.c.l.b16 %v978
        %v1127 = vunpack.c.h.b16 %v978
        %v1128 = vunpack.c.l.b16 %v979
        %v1129 = vunpack.c.h.b16 %v979
        %v1130 = vunpack.c.l.b16 %v980
        %v1131 = vunpack.c.h.b16 %v980
        %v1132 = vunpack.c.l.b16 %v981
        %v1133 = vunpack.c.h.b16 %v981
        %v1134 = vunpack.c.l.b16 %v982
        %v1135 = vunpack.c.h.b16 %v982
        %v1136 = vunpack.c.l.b16 %v983
        %v1137 = vunpack.c.h.b16 %v983
        %v1138 = vunpack.c.l.b16 %v984
        %v1139 = vunpack.c.h.b16 %v984
        %v1140 = vunpack.c.l.b16 %v985
        %v1141 = vunpack.c.h.b16 %v985
        %v1142 = vunpack.c.l.b16 %v986
        %v1143 = vunpack.c.h.b16 %v986
        %v1144 = vunpack.c.l.b16 %v987
        %v1145 = vunpack.c.h.b16 %v987
        %v1146 = vunpack.c.l.b16 %v988
        %v1147 = vunpack.c.h.b16 %v988
        %v1148 = vunpack.c.l.b16 %v989
        %v1149 = vunpack.c.h.b16 %v989
        %v1150 = vunpack.c.l.b16 %v990
        %v1151 = vunpack.c.h.b16 %v990
        %v1152 = vunpack.c.l.b16 %v991
        %v1153 = vunpack.c.h.b16 %v991
        %v1154 = vunpack.c.l.b16 %v992
        %v1155 = vunpack.c.h.b16 %v992
        %v1156 = vunpack.c.l.b16 %v993
        %v1157 = vunpack.c.h.b16 %v993
        %v1158 = vunpack.c.l.b16 %v994
        %v1159 = vunpack.c.h.b16 %v994
        %v1160 = vunpack.c.l.b16 %v995
        %v1161 = vunpack.c.h.b16 %v995
        %v1162 = vunpack.c.l.b16 %v996
        %v1163 = vunpack.c.h.b16 %v996
        %v1164 = vunpack.c.l.b16 %v997
        %v1165 = vunpack.c.h.b16 %v997
        %v1166 = vunpack.c.l.b16 %v998
        %v1167 = vunpack.c.h.b16 %v998
        %v1168 = vunpack.c.l.b16 %v999
        %v1169 = vunpack.c.h.b16 %v999
        %v1170 = vunpack.c.l.b16 %v1000
        %v1171 = vunpack.c.h.b16 %v1000
        %v1172 = vunpack.c.l.b16 %v1001
        %v1173 = vunpack.c.h.b16 %v1001
        %v1174 = vunpack.c.l.b16 %v1002
        %v1175 = vunpack.c.h.b16 %v1002
        %v1176 = vunpack.c.l.b16 %v1003
        %v1177 = vunpack.c.h.b16 %v1003
        %v1178 = vunpack.c.l.b16 %v1004
        %v1179 = vunpack.c.h.b16 %v1004
        %v1180 = vunpack.c.l.b16 %v1005
        %v1181 = vunpack.c.h.b16 %v1005
        %v1182 = vpack.c.b16 %v1092, %v1086
        %v1183 = vpack.c.b16 %v1093, %v1087
        %v1184 = vpack.c.b16 %v1094, %v1088
        %v1185 = vpack.c.b16 %v1095, %v1089
        %v1186 = vpack.c.b16 %v1096, %v1090
        %v1187 = vpack.c.b16 %v1097, %v1091
        %v1188 = vpack.c.b16 %v1104, %v1098
        %v1189 = vpack.c.b16 %v1105, %v1099
        %v1190 = vpack.c.b16 %v1106, %v1100
        %v1191 = vpack.c.b16 %v1107, %v1101
        %v1192 = vpack.c.b16 %v1108, %v1102
        %v1193 = vpack.c.b16 %v1109, %v1103
        %v1194 = vpack.c.b16 %v1116, %v1110
        %v1195 = vpack.c.b16 %v1117, %v1111
        %v1196 = vpack.c.b16 %v1118, %v1112
        %v1197 = vpack.c.b16 %v1119, %v1113
        %v1198 = vpack.c.b16 %v1120, %v1114
        %v1199 = vpack.c.b16 %v1121, %v1115
        %v1200 = vpack.c.b16 %v1128, %v1122
        %v1201 = vpack.c.b16 %v1129, %v1123
        %v1202 = vpack.c.b16 %v1130, %v1124
        %v1203 = vpack.c.b16 %v1131, %v1125
        %v1204 = vpack.c.b16 %v1132, %v1126
        %v1205 = vpack.c.b16 %v1133, %v1127
        %v1206 = vpack.c.b16 %v1140, %v1134
        %v1207 = vpack.c.b16 %v1141, %v1135
        %v1208 = vpack.c.b16 %v1142, %v1136
        %v1209 = vpack.c.b16 %v1143, %v1137
        %v1210 = vpack.c.b16 %v1144, %v1138
        %v1211 = vpack.c.b16 %v1145, %v1139
        %v1212 = vpack.c.b16 %v1152, %v1146
        %v1213 = vpack.c.b16 %v1153, %v1147
        %v1214 = vpack.c.b16 %v1154, %v1148
        %v1215 = vpack.c.b16 %v1155, %v1149
        %v1216 = vpack.c.b16 %v1156, %v1150
        %v1217 = vpack.c.b16 %v1157, %v1151
        %v1218 = vpack.c.b16 %v1164, %v1158
        %v1219 = vpack.c.b16 %v1165, %v1159
        %v1220 = vpack.c.b16 %v1166, %v1160
        %v1221 = vpack.c.b16 %v1167, %v1161
        %v1222 = vpack.c.b16 %v1168, %v1162
        %v1223 = vpack.c.b16 %v1169, %v1163
        %v1224 = vpack.c.b16 %v1176, %v1170
        %v1225 = vpack.c.b16 %v1177, %v1171
        %v1226 = vpack.c.b16 %v1178, %v1172
        %v1227 = vpack.c.b16 %v1179, %v1173
        %v1228 = vpack.c.b16 %v1180, %v1174
        %v1229 = vpack.c.b16 %v1181, %v1175
        %1278 = vmatprep.subr.bf16.mxu0 %v1183
        %1279 = vmatpush1.bf16.msra.mxu0 %v1182
        %1280 = vmatprep.subr.bf16.mxu0 %v1189
        %1281 = vmatpush1.bf16.msra.mxu0 %v1188
        %1282 = vmatprep.subr.bf16.mxu0 %v1195
        %1283 = vmatpush1.bf16.msra.mxu0 %v1194
        %1284 = vmatprep.subr.bf16.mxu0 %v1201
        %1285 = vmatpush1.bf16.msra.mxu0 %v1200
        %1286 = vmatprep.subr.bf16.mxu0 %v1207
        %1287 = vmatpush1.bf16.msra.mxu0 %v1206
        %1288 = vmatprep.subr.bf16.mxu0 %v1213
        %1289 = vmatpush1.bf16.msra.mxu0 %v1212
        %1290 = vmatprep.subr.bf16.mxu0 %v1219
        %1291 = vmatpush1.bf16.msra.mxu0 %v1218
        %1292 = vmatprep.subr.bf16.mxu0 %v1225
        %1293 = vmatpush1.bf16.msra.mxu0 %v1224
        %1294 = vmatprep.subr.bf16.mxu0 0
        %1295 = vmatpush1.bf16.msra.mxu0 0
        %1296 = vmatprep.subr.bf16.mxu0 0
        %1297 = vmatpush1.bf16.msra.mxu0 0
        %1298 = vmatprep.subr.bf16.mxu0 0
        %1299 = vmatpush1.bf16.msra.mxu0 0
        %1300 = vmatprep.subr.bf16.mxu0 0
        %1301 = vmatpush1.bf16.msra.mxu0 0
        %1302 = vmatprep.subr.bf16.mxu0 0
        %1303 = vmatpush1.bf16.msra.mxu0 0
        %1304 = vmatprep.subr.bf16.mxu0 0
        %1305 = vmatpush1.bf16.msra.mxu0 0
        %1306 = vmatprep.subr.bf16.mxu0 0
        %1307 = vmatpush1.bf16.msra.mxu0 0
        %1308 = vmatprep.subr.bf16.mxu0 0
        %1309 = vmatpush1.bf16.msra.mxu0 0
        %1310 = vmatprep.mubr.bf16.mxu0 0
        %1311 = vmatmul.mubr.bf16.gmra.mrb[0].mxu0 %v954
        %v1312 = vpop.f32.mrb[0].mxu0
        %v1313 = vadd.f32 %v1011, %v1312
        %v1314 = vpop.f32.mrb[0].mxu0
        %v1315 = vadd.f32 %v1015, %v1314
        %v1316 = vpop.f32.mrb[0].mxu0
        %v1317 = vadd.f32 %v1011, %v1316
        %v1318 = vpop.f32.mrb[0].mxu0
        %v1319 = vadd.f32 %v1015, %v1318
        %1320 = vmatprep.mubr.bf16.mxu0 0
        %1321 = vmatmul.mubr.bf16.gmra.mrb[0].mxu0 %v955
        %v1322 = vpop.f32.mrb[0].mxu0
        %v1323 = vadd.f32 %v1011, %v1322
        %v1324 = vpop.f32.mrb[0].mxu0
        %v1325 = vadd.f32 %v1015, %v1324
        %v1326 = vpop.f32.mrb[0].mxu0
        %v1327 = vadd.f32 %v1011, %v1326
        %v1328 = vpop.f32.mrb[0].mxu0
        %v1329 = vadd.f32 %v1015, %v1328
        %1330 = vmatprep.mubr.bf16.mxu0 0
        %1331 = vmatmul.mubr.bf16.gmra.mrb[0].mxu0 %v956
        %v1332 = vpop.f32.mrb[0].mxu0
        %v1333 = vadd.f32 %v1011, %v1332
        %v1334 = vpop.f32.mrb[0].mxu0
        %v1335 = vadd.f32 %v1015, %v1334
        %v1336 = vpop.f32.mrb[0].mxu0
        %v1337 = vadd.f32 %v1011, %v1336
        %v1338 = vpop.f32.mrb[0].mxu0
        %v1339 = vadd.f32 %v1015, %v1338
        %1340 = vmatprep.mubr.bf16.mxu0 0
        %1341 = vmatmul.mubr.bf16.gmra.mrb[0].mxu0 %v957
        %v1342 = vpop.f32.mrb[0].mxu0
        %v1343 = vadd.f32 %v1011, %v1342
        %v1344 = vpop.f32.mrb[0].mxu0
        %v1345 = vadd.f32 %v1015, %v1344
        %v1346 = vpop.f32.mrb[0].mxu0
        %v1347 = vadd.f32 %v1011, %v1346
        %v1348 = vpop.f32.mrb[0].mxu0
        %v1349 = vadd.f32 %v1015, %v1348
        %1350 = vdwg.mxu0
        %1351 = vmatprep.subr.bf16.mxu0 %v1185
        %1352 = vmatpush1.bf16.msra.mxu0 %v1184
        %1353 = vmatprep.subr.bf16.mxu0 %v1191
        %1354 = vmatpush1.bf16.msra.mxu0 %v1190
        %1355 = vmatprep.subr.bf16.mxu0 %v1197
        %1356 = vmatpush1.bf16.msra.mxu0 %v1196
        %1357 = vmatprep.subr.bf16.mxu0 %v1203
        %1358 = vmatpush1.bf16.msra.mxu0 %v1202
        %1359 = vmatprep.subr.bf16.mxu0 %v1209
        %1360 = vmatpush1.bf16.msra.mxu0 %v1208
        %1361 = vmatprep.subr.bf16.mxu0 %v1215
        %1362 = vmatpush1.bf16.msra.mxu0 %v1214
        %1363 = vmatprep.subr.bf16.mxu0 %v1221
        %1364 = vmatpush1.bf16.msra.mxu0 %v1220
        %1365 = vmatprep.subr.bf16.mxu0 %v1227
        %1366 = vmatpush1.bf16.msra.mxu0 %v1226
        %1367 = vmatprep.subr.bf16.mxu0 0
        %1368 = vmatpush1.bf16.msra.mxu0 0
        %1369 = vmatprep.subr.bf16.mxu0 0
        %1370 = vmatpush1.bf16.msra.mxu0 0
        %1371 = vmatprep.subr.bf16.mxu0 0
        %1372 = vmatpush1.bf16.msra.mxu0 0
        %1373 = vmatprep.subr.bf16.mxu0 0
        %1374 = vmatpush1.bf16.msra.mxu0 0
        %1375 = vmatprep.subr.bf16.mxu0 0
        %1376 = vmatpush1.bf16.msra.mxu0 0
        %1377 = vmatprep.subr.bf16.mxu0 0
        %1378 = vmatpush1.bf16.msra.mxu0 0
        %1379 = vmatprep.subr.bf16.mxu0 0
        %1380 = vmatpush1.bf16.msra.mxu0 0
        %1381 = vmatprep.subr.bf16.mxu0 0
        %1382 = vmatpush1.bf16.msra.mxu0 0
        %1383 = vmatprep.mubr.bf16.mxu0 0
        %1384 = vmatmul.mubr.bf16.gmra.mrb[0].mxu0 %v954
        %v1385 = vpop.f32.mrb[0].mxu0
        %v1386 = vadd.f32 %v1019, %v1385
        %v1387 = vpop.f32.mrb[0].mxu0
        %v1388 = vadd.f32 %v1023, %v1387
        %v1389 = vpop.f32.mrb[0].mxu0
        %v1390 = vadd.f32 %v1019, %v1389
        %v1391 = vpop.f32.mrb[0].mxu0
        %v1392 = vadd.f32 %v1023, %v1391
        %1393 = vmatprep.mubr.bf16.mxu0 0
        %1394 = vmatmul.mubr.bf16.gmra.mrb[0].mxu0 %v955
        %v1395 = vpop.f32.mrb[0].mxu0
        %v1396 = vadd.f32 %v1019, %v1395
        %v1397 = vpop.f32.mrb[0].mxu0
        %v1398 = vadd.f32 %v1023, %v1397
        %v1399 = vpop.f32.mrb[0].mxu0
        %v1400 = vadd.f32 %v1019, %v1399
        %v1401 = vpop.f32.mrb[0].mxu0
        %v1402 = vadd.f32 %v1023, %v1401
        %1403 = vmatprep.mubr.bf16.mxu0 0
        %1404 = vmatmul.mubr.bf16.gmra.mrb[0].mxu0 %v956
        %v1405 = vpop.f32.mrb[0].mxu0
        %v1406 = vadd.f32 %v1019, %v1405
        %v1407 = vpop.f32.mrb[0].mxu0
        %v1408 = vadd.f32 %v1023, %v1407
        %v1409 = vpop.f32.mrb[0].mxu0
        %v1410 = vadd.f32 %v1019, %v1409
        %v1411 = vpop.f32.mrb[0].mxu0
        %v1412 = vadd.f32 %v1023, %v1411
        %1413 = vmatprep.mubr.bf16.mxu0 0
        %1414 = vmatmul.mubr.bf16.gmra.mrb[0].mxu0 %v957
        %v1415 = vpop.f32.mrb[0].mxu0
        %v1416 = vadd.f32 %v1019, %v1415
        %v1417 = vpop.f32.mrb[0].mxu0
        %v1418 = vadd.f32 %v1023, %v1417
        %v1419 = vpop.f32.mrb[0].mxu0
        %v1420 = vadd.f32 %v1019, %v1419
        %v1421 = vpop.f32.mrb[0].mxu0
        %v1422 = vadd.f32 %v1023, %v1421
        %1423 = vdwg.mxu0
        %1424 = vmatprep.subr.bf16.mxu0 %v1187
        %1425 = vmatpush1.bf16.msra.mxu0 %v1186
        %1426 = vmatprep.subr.bf16.mxu0 %v1193
        %1427 = vmatpush1.bf16.msra.mxu0 %v1192
        %1428 = vmatprep.subr.bf16.mxu0 %v1199
        %1429 = vmatpush1.bf16.msra.mxu0 %v1198
        %1430 = vmatprep.subr.bf16.mxu0 %v1205
        %1431 = vmatpush1.bf16.msra.mxu0 %v1204
        %1432 = vmatprep.subr.bf16.mxu0 %v1211
        %1433 = vmatpush1.bf16.msra.mxu0 %v1210
        %1434 = vmatprep.subr.bf16.mxu0 %v1217
        %1435 = vmatpush1.bf16.msra.mxu0 %v1216
        %1436 = vmatprep.subr.bf16.mxu0 %v1223
        %1437 = vmatpush1.bf16.msra.mxu0 %v1222
        %1438 = vmatprep.subr.bf16.mxu0 %v1229
        %1439 = vmatpush1.bf16.msra.mxu0 %v1228
        %1440 = vmatprep.subr.bf16.mxu0 0
        %1441 = vmatpush1.bf16.msra.mxu0 0
        %1442 = vmatprep.subr.bf16.mxu0 0
        %1443 = vmatpush1.bf16.msra.mxu0 0
        %1444 = vmatprep.subr.bf16.mxu0 0
        %1445 = vmatpush1.bf16.msra.mxu0 0
        %1446 = vmatprep.subr.bf16.mxu0 0
        %1447 = vmatpush1.bf16.msra.mxu0 0
        %1448 = vmatprep.subr.bf16.mxu0 0
        %1449 = vmatpush1.bf16.msra.mxu0 0
        %1450 = vmatprep.subr.bf16.mxu0 0
        %1451 = vmatpush1.bf16.msra.mxu0 0
        %1452 = vmatprep.subr.bf16.mxu0 0
        %1453 = vmatpush1.bf16.msra.mxu0 0
        %1454 = vmatprep.subr.bf16.mxu0 0
        %1455 = vmatpush1.bf16.msra.mxu0 0
        %1456 = vmatprep.mubr.bf16.mxu0 0
        %1457 = vmatmul.mubr.bf16.gmra.mrb[0].mxu0 %v954
        %v1458 = vpop.f32.mrb[0].mxu0
        %v1459 = vadd.f32 %v1027, %v1458
        %v1460 = vpop.f32.mrb[0].mxu0
        %v1461 = vadd.f32 %v1031, %v1460
        %v1462 = vpop.f32.mrb[0].mxu0
        %v1463 = vadd.f32 %v1027, %v1462
        %v1464 = vpop.f32.mrb[0].mxu0
        %v1465 = vadd.f32 %v1031, %v1464
        %1466 = vmatprep.mubr.bf16.mxu0 0
        %1467 = vmatmul.mubr.bf16.gmra.mrb[0].mxu0 %v955
        %v1468 = vpop.f32.mrb[0].mxu0
        %v1469 = vadd.f32 %v1027, %v1468
        %v1470 = vpop.f32.mrb[0].mxu0
        %v1471 = vadd.f32 %v1031, %v1470
        %v1472 = vpop.f32.mrb[0].mxu0
        %v1473 = vadd.f32 %v1027, %v1472
        %v1474 = vpop.f32.mrb[0].mxu0
        %v1475 = vadd.f32 %v1031, %v1474
        %1476 = vmatprep.mubr.bf16.mxu0 0
        %1477 = vmatmul.mubr.bf16.gmra.mrb[0].mxu0 %v956
        %v1478 = vpop.f32.mrb[0].mxu0
        %v1479 = vadd.f32 %v1027, %v1478
        %v1480 = vpop.f32.mrb[0].mxu0
        %v1481 = vadd.f32 %v1031, %v1480
        %v1482 = vpop.f32.mrb[0].mxu0
        %v1483 = vadd.f32 %v1027, %v1482
        %v1484 = vpop.f32.mrb[0].mxu0
        %v1485 = vadd.f32 %v1031, %v1484
        %1486 = vmatprep.mubr.bf16.mxu0 0
        %1487 = vmatmul.mubr.bf16.gmra.mrb[0].mxu0 %v957
        %v1488 = vpop.f32.mrb[0].mxu0
        %v1489 = vadd.f32 %v1027, %v1488
        %v1490 = vpop.f32.mrb[0].mxu0
        %v1491 = vadd.f32 %v1031, %v1490
        %v1492 = vpop.f32.mrb[0].mxu0
        %v1493 = vadd.f32 %v1027, %v1492
        %v1494 = vpop.f32.mrb[0].mxu0
        %v1495 = vadd.f32 %v1031, %v1494
        %1496 = vdwg.mxu0
        %v1497 = vpack.c.bf16 %v1317, %v1313
        %v1498 = vpack.c.bf16 %v1327, %v1323
        %v1499 = vpack.c.bf16 %v1337, %v1333
        %v1500 = vpack.c.bf16 %v1347, %v1343
        %v1501 = vpack.c.bf16 %v1319, %v1315
        %v1502 = vpack.c.bf16 %v1329, %v1325
        %v1503 = vpack.c.bf16 %v1339, %v1335
        %v1504 = vpack.c.bf16 %v1349, %v1345
        %v1505 = vpack.c.bf16 %v1390, %v1386
        %v1506 = vpack.c.bf16 %v1400, %v1396
        %v1507 = vpack.c.bf16 %v1410, %v1406
        %v1508 = vpack.c.bf16 %v1420, %v1416
        %1509 = vmatprep.subr.bf16.mxu0 0
        %1510 = vmatpush1.bf16.xpose.msra.mxu0 %v1501
        %1511 = vmatprep.subr.bf16.mxu0 0
        %1512 = vmatpush1.bf16.xpose.msra.mxu0 %v1502
        %1513 = vmatprep.subr.bf16.mxu0 0
        %1514 = vmatpush1.bf16.xpose.msra.mxu0 0
        %1515 = vmatprep.subr.bf16.mxu0 0
        %1516 = vmatpush1.bf16.xpose.msra.mxu0 0
        %1517 = vmatprep.subr.bf16.mxu0 0
        %1518 = vmatpush1.bf16.xpose.msra.mxu0 0
        %1519 = vmatprep.subr.bf16.mxu0 0
        %1520 = vmatpush1.bf16.xpose.msra.mxu0 0
        %1521 = vmatprep.subr.bf16.mxu0 0
        %1522 = vmatpush1.bf16.xpose.msra.mxu0 0
        %1523 = vmatprep.subr.bf16.mxu0 0
        %1524 = vmatpush1.bf16.xpose.msra.mxu0 0
        %1525 = vmatprep.subr.bf16.mxu0 0
        %1526 = vmatpush1.bf16.xpose.msra.mxu0 0
        %1527 = vmatprep.subr.bf16.mxu0 0
        %1528 = vmatpush1.bf16.xpose.msra.mxu0 0
        %1529 = vmatprep.subr.bf16.mxu0 0
        %1530 = vmatpush1.bf16.xpose.msra.mxu0 0
        %1531 = vmatprep.subr.bf16.mxu0 0
        %1532 = vmatpush1.bf16.xpose.msra.mxu0 0
        %1533 = vmatprep.subr.bf16.mxu0 0
        %1534 = vmatpush1.bf16.xpose.msra.mxu0 0
        %1535 = vmatprep.subr.bf16.mxu0 0
        %1536 = vmatpush1.bf16.xpose.msra.mxu0 0
        %1537 = vmatprep.subr.bf16.mxu0 0
        %1538 = vmatpush1.bf16.xpose.msra.mxu0 0
        %1539 = vmatprep.subr.bf16.mxu0 0
        %1540 = vmatpush1.bf16.xpose.msra.mxu0 0
        %1541 = vmatprep.mubr.bf16.mxu0 0
        %1542 = vmatmul.mubr.bf16.gmra.mrb[0].mxu0 %v1497
        %v1543 = vpop.f32.mrb[0].mxu0
        %v1544 = vadd.f32 0.0, %v1543
        %v1545 = vpop.f32.mrb[0].mxu0
        %v1546 = vpop.f32.mrb[0].mxu0
        %v1547 = vadd.f32 0.0, %v1546
        %v1548 = vpop.f32.mrb[0].mxu0
        %1549 = vmatprep.mubr.bf16.mxu0 0
        %1550 = vmatmul.mubr.bf16.gmra.mrb[0].mxu0 %v1498
        %v1551 = vpop.f32.mrb[0].mxu0
        %v1552 = vadd.f32 0.0, %v1551
        %v1553 = vpop.f32.mrb[0].mxu0
        %v1554 = vpop.f32.mrb[0].mxu0
        %v1555 = vadd.f32 0.0, %v1554
        %v1556 = vpop.f32.mrb[0].mxu0
        %1557 = vdwg.mxu0
        %1558 = vmatprep.subr.bf16.mxu0 0
        %1559 = vmatpush1.bf16.xpose.msra.mxu0 %v1503
        %1560 = vmatprep.subr.bf16.mxu0 0
        %1561 = vmatpush1.bf16.xpose.msra.mxu0 %v1504
        %1562 = vmatprep.subr.bf16.mxu0 0
        %1563 = vmatpush1.bf16.xpose.msra.mxu0 0
        %1564 = vmatprep.subr.bf16.mxu0 0
        %1565 = vmatpush1.bf16.xpose.msra.mxu0 0
        %1566 = vmatprep.subr.bf16.mxu0 0
        %1567 = vmatpush1.bf16.xpose.msra.mxu0 0
        %1568 = vmatprep.subr.bf16.mxu0 0
        %1569 = vmatpush1.bf16.xpose.msra.mxu0 0
        %1570 = vmatprep.subr.bf16.mxu0 0
        %1571 = vmatpush1.bf16.xpose.msra.mxu0 0
        %1572 = vmatprep.subr.bf16.mxu0 0
        %1573 = vmatpush1.bf16.xpose.msra.mxu0 0
        %1574 = vmatprep.subr.bf16.mxu0 0
        %1575 = vmatpush1.bf16.xpose.msra.mxu0 0
        %1576 = vmatprep.subr.bf16.mxu0 0
        %1577 = vmatpush1.bf16.xpose.msra.mxu0 0
        %1578 = vmatprep.subr.bf16.mxu0 0
        %1579 = vmatpush1.bf16.xpose.msra.mxu0 0
        %1580 = vmatprep.subr.bf16.mxu0 0
        %1581 = vmatpush1.bf16.xpose.msra.mxu0 0
        %1582 = vmatprep.subr.bf16.mxu0 0
        %1583 = vmatpush1.bf16.xpose.msra.mxu0 0
        %1584 = vmatprep.subr.bf16.mxu0 0
        %1585 = vmatpush1.bf16.xpose.msra.mxu0 0
        %1586 = vmatprep.subr.bf16.mxu0 0
        %1587 = vmatpush1.bf16.xpose.msra.mxu0 0
        %1588 = vmatprep.subr.bf16.mxu0 0
        %1589 = vmatpush1.bf16.xpose.msra.mxu0 0
        %1590 = vmatprep.mubr.bf16.mxu0 0
        %1591 = vmatmul.mubr.bf16.gmra.mrb[0].mxu0 %v1499
        %v1592 = vpop.f32.mrb[0].mxu0
        %v1593 = vadd.f32 0.0, %v1592
        %v1594 = vpop.f32.mrb[0].mxu0
        %v1595 = vpop.f32.mrb[0].mxu0
        %v1596 = vadd.f32 0.0, %v1595
        %v1597 = vpop.f32.mrb[0].mxu0
        %1598 = vmatprep.mubr.bf16.mxu0 0
        %1599 = vmatmul.mubr.bf16.gmra.mrb[0].mxu0 %v1500
        %v1600 = vpop.f32.mrb[0].mxu0
        %v1601 = vadd.f32 0.0, %v1600
        %v1602 = vpop.f32.mrb[0].mxu0
        %v1603 = vpop.f32.mrb[0].mxu0
        %v1604 = vadd.f32 0.0, %v1603
        %v1605 = vpop.f32.mrb[0].mxu0
        %1606 = vdwg.mxu0
        %vm1607 = vcmask 261120
        %v1608 = vsel %vm1607, %v1544, -inf
        %1609 = vmax.xlane.f32.xlu0 %v1608
        %v1610 = vpop.xlane.xlu0 %1609
        %v1611 = vsel %vm1607, %v1547, -inf
        %1612 = vmax.xlane.f32.xlu0 %v1611
        %v1613 = vpop.xlane.xlu0 %1612
        %v1614 = vsel %vm1607, %v1552, -inf
        %1615 = vmax.xlane.f32.xlu0 %v1614
        %v1616 = vpop.xlane.xlu0 %1615
        %v1617 = vsel %vm1607, %v1555, -inf
        %1618 = vmax.xlane.f32.xlu0 %v1617
        %v1619 = vpop.xlane.xlu0 %1618
        %v1620 = vsel %vm1607, %v1593, -inf
        %1621 = vmax.xlane.f32.xlu0 %v1620
        %v1622 = vpop.xlane.xlu0 %1621
        %v1623 = vsel %vm1607, %v1596, -inf
        %1624 = vmax.xlane.f32.xlu0 %v1623
        %v1625 = vpop.xlane.xlu0 %1624
        %v1626 = vsel %vm1607, %v1601, -inf
        %1627 = vmax.xlane.f32.xlu0 %v1626
        %v1628 = vpop.xlane.xlu0 %1627
        %v1629 = vsel %vm1607, %v1604, -inf
        %1630 = vmax.xlane.f32.xlu0 %v1629
        %v1631 = vpop.xlane.xlu0 %1630
        %v1632 = vsub.f32 %v1544, %v1610
        %v1633 = vsub.f32 %v1547, %v1613
        %v1634 = vsub.f32 %v1552, %v1616
        %v1635 = vsub.f32 %v1555, %v1619
        %v1636 = vsub.f32 %v1593, %v1622
        %v1637 = vsub.f32 %v1596, %v1625
        %v1638 = vsub.f32 %v1601, %v1628
        %v1639 = vsub.f32 %v1604, %v1631
        %v1640 = vmul.f32 %v1632, 1.442695
        %v1641 = vpow.pop %v1640
        %v1642 = vmul.f32 %v1633, 1.442695
        %v1643 = vpow.pop %v1642
        %v1644 = vmul.f32 %v1634, 1.442695
        %v1645 = vpow.pop %v1644
        %v1646 = vmul.f32 %v1635, 1.442695
        %v1647 = vpow.pop %v1646
        %v1648 = vmul.f32 %v1636, 1.442695
        %v1649 = vpow.pop %v1648
        %v1650 = vmul.f32 %v1637, 1.442695
        %v1651 = vpow.pop %v1650
        %v1652 = vmul.f32 %v1638, 1.442695
        %v1653 = vpow.pop %v1652
        %v1654 = vmul.f32 %v1639, 1.442695
        %v1655 = vpow.pop %v1654
        %v1656 = vsel %vm1607, %v1641, 0.0
        %1657 = vadd.xlane.f32.xlu0 %v1656
        %v1658 = vpop.xlane.xlu0 %1657
        %v1659 = vsel %vm1607, %v1643, 0.0
        %1660 = vadd.xlane.f32.xlu0 %v1659
        %v1661 = vpop.xlane.xlu0 %1660
        %v1662 = vsel %vm1607, %v1645, 0.0
        %1663 = vadd.xlane.f32.xlu0 %v1662
        %v1664 = vpop.xlane.xlu0 %1663
        %v1665 = vsel %vm1607, %v1647, 0.0
        %1666 = vadd.xlane.f32.xlu0 %v1665
        %v1667 = vpop.xlane.xlu0 %1666
        %v1668 = vsel %vm1607, %v1649, 0.0
        %1669 = vadd.xlane.f32.xlu0 %v1668
        %v1670 = vpop.xlane.xlu0 %1669
        %v1671 = vsel %vm1607, %v1651, 0.0
        %1672 = vadd.xlane.f32.xlu0 %v1671
        %v1673 = vpop.xlane.xlu0 %1672
        %v1674 = vsel %vm1607, %v1653, 0.0
        %1675 = vadd.xlane.f32.xlu0 %v1674
        %v1676 = vpop.xlane.xlu0 %1675
        %v1677 = vsel %vm1607, %v1655, 0.0
        %1678 = vadd.xlane.f32.xlu0 %v1677
        %v1679 = vpop.xlane.xlu0 %1678
        %v1680 = vrcp.pop %v1658
        %v1681 = vmul.f32 %v1641, %v1680
        %v1682 = vrcp.pop %v1661
        %v1683 = vmul.f32 %v1643, %v1682
        %v1684 = vrcp.pop %v1664
        %v1685 = vmul.f32 %v1645, %v1684
        %v1686 = vrcp.pop %v1667
        %v1687 = vmul.f32 %v1647, %v1686
        %v1688 = vrcp.pop %v1670
        %v1689 = vmul.f32 %v1649, %v1688
        %v1690 = vrcp.pop %v1673
        %v1691 = vmul.f32 %v1651, %v1690
        %v1692 = vrcp.pop %v1676
        %v1693 = vmul.f32 %v1653, %v1692
        %v1694 = vrcp.pop %v1679
        %v1695 = vmul.f32 %v1655, %v1694
        %v1696 = vpack.c.bf16 %v1683, %v1681
        %v1697 = vpack.c.bf16 %v1687, %v1685
        %v1698 = vpack.c.bf16 %v1691, %v1689
        %v1699 = vpack.c.bf16 %v1695, %v1693
        %v1701 = vsel %vm1607, %v1696, 0
        %v1704 = vsel %vm1607, %v1697, 0
        %1706 = vmatprep.subr.bf16.mxu0 0
        %1707 = vmatpush1.bf16.msra.mxu0 %v1505
        %1708 = vmatprep.subr.bf16.mxu0 0
        %1709 = vmatpush1.bf16.msra.mxu0 %v1506
        %1710 = vmatprep.subr.bf16.mxu0 0
        %1711 = vmatpush1.bf16.msra.mxu0 0
        %1712 = vmatprep.subr.bf16.mxu0 0
        %1713 = vmatpush1.bf16.msra.mxu0 0
        %1714 = vmatprep.subr.bf16.mxu0 0
        %1715 = vmatpush1.bf16.msra.mxu0 0
        %1716 = vmatprep.subr.bf16.mxu0 0
        %1717 = vmatpush1.bf16.msra.mxu0 0
        %1718 = vmatprep.subr.bf16.mxu0 0
        %1719 = vmatpush1.bf16.msra.mxu0 0
        %1720 = vmatprep.subr.bf16.mxu0 0
        %1721 = vmatpush1.bf16.msra.mxu0 0
        %1722 = vmatprep.subr.bf16.mxu0 0
        %1723 = vmatpush1.bf16.msra.mxu0 0
        %1724 = vmatprep.subr.bf16.mxu0 0
        %1725 = vmatpush1.bf16.msra.mxu0 0
        %1726 = vmatprep.subr.bf16.mxu0 0
        %1727 = vmatpush1.bf16.msra.mxu0 0
        %1728 = vmatprep.subr.bf16.mxu0 0
        %1729 = vmatpush1.bf16.msra.mxu0 0
        %1730 = vmatprep.subr.bf16.mxu0 0
        %1731 = vmatpush1.bf16.msra.mxu0 0
        %1732 = vmatprep.subr.bf16.mxu0 0
        %1733 = vmatpush1.bf16.msra.mxu0 0
        %1734 = vmatprep.subr.bf16.mxu0 0
        %1735 = vmatpush1.bf16.msra.mxu0 0
        %1736 = vmatprep.subr.bf16.mxu0 0
        %1737 = vmatpush1.bf16.msra.mxu0 0
        %1738 = vmatprep.mubr.bf16.mxu0 0
        %1739 = vmatmul.mubr.bf16.gmra.mrb[0].mxu0 %v1701
        %v1740 = vpop.f32.mrb[0].mxu0
        %v1741 = vadd.f32 0.0, %v1740
        %v1742 = vpop.f32.mrb[0].mxu0
        %v1743 = vpop.f32.mrb[0].mxu0
        %v1744 = vadd.f32 0.0, %v1743
        %v1745 = vpop.f32.mrb[0].mxu0
        %1746 = vmatprep.mubr.bf16.mxu0 0
        %1747 = vmatmul.mubr.bf16.gmra.mrb[0].mxu0 %v1704
        %v1748 = vpop.f32.mrb[0].mxu0
        %v1749 = vadd.f32 0.0, %v1748
        %v1750 = vpop.f32.mrb[0].mxu0
        %v1751 = vpop.f32.mrb[0].mxu0
        %v1752 = vadd.f32 0.0, %v1751
        %v1753 = vpop.f32.mrb[0].mxu0
        %1754 = vdwg.mxu0
        %v1756 = vsel %vm1607, %v1698, 0
        %v1759 = vsel %vm1607, %v1699, 0
        %1761 = vmatprep.subr.bf16.mxu0 0
        %1762 = vmatpush1.bf16.msra.mxu0 %v1507
        %1763 = vmatprep.subr.bf16.mxu0 0
        %1764 = vmatpush1.bf16.msra.mxu0 %v1508
        %1765 = vmatprep.subr.bf16.mxu0 0
        %1766 = vmatpush1.bf16.msra.mxu0 0
        %1767 = vmatprep.subr.bf16.mxu0 0
        %1768 = vmatpush1.bf16.msra.mxu0 0
        %1769 = vmatprep.subr.bf16.mxu0 0
        %1770 = vmatpush1.bf16.msra.mxu0 0
        %1771 = vmatprep.subr.bf16.mxu0 0
        %1772 = vmatpush1.bf16.msra.mxu0 0
        %1773 = vmatprep.subr.bf16.mxu0 0
        %1774 = vmatpush1.bf16.msra.mxu0 0
        %1775 = vmatprep.subr.bf16.mxu0 0
        %1776 = vmatpush1.bf16.msra.mxu0 0
        %1777 = vmatprep.subr.bf16.mxu0 0
        %1778 = vmatpush1.bf16.msra.mxu0 0
        %1779 = vmatprep.subr.bf16.mxu0 0
        %1780 = vmatpush1.bf16.msra.mxu0 0
        %1781 = vmatprep.subr.bf16.mxu0 0
        %1782 = vmatpush1.bf16.msra.mxu0 0
        %1783 = vmatprep.subr.bf16.mxu0 0
        %1784 = vmatpush1.bf16.msra.mxu0 0
        %1785 = vmatprep.subr.bf16.mxu0 0
        %1786 = vmatpush1.bf16.msra.mxu0 0
        %1787 = vmatprep.subr.bf16.mxu0 0
        %1788 = vmatpush1.bf16.msra.mxu0 0
        %1789 = vmatprep.subr.bf16.mxu0 0
        %1790 = vmatpush1.bf16.msra.mxu0 0
        %1791 = vmatprep.subr.bf16.mxu0 0
        %1792 = vmatpush1.bf16.msra.mxu0 0
        %1793 = vmatprep.mubr.bf16.mxu0 0
        %1794 = vmatmul.mubr.bf16.gmra.mrb[0].mxu0 %v1756
        %v1795 = vpop.f32.mrb[0].mxu0
        %v1796 = vadd.f32 0.0, %v1795
        %v1797 = vpop.f32.mrb[0].mxu0
        %v1798 = vpop.f32.mrb[0].mxu0
        %v1799 = vadd.f32 0.0, %v1798
        %v1800 = vpop.f32.mrb[0].mxu0
        %1801 = vmatprep.mubr.bf16.mxu0 0
        %1802 = vmatmul.mubr.bf16.gmra.mrb[0].mxu0 %v1759
        %v1803 = vpop.f32.mrb[0].mxu0
        %v1804 = vadd.f32 0.0, %v1803
        %v1805 = vpop.f32.mrb[0].mxu0
        %v1806 = vpop.f32.mrb[0].mxu0
        %v1807 = vadd.f32 0.0, %v1806
        %v1808 = vpop.f32.mrb[0].mxu0
        %1809 = vdwg.mxu0
        %v1810 = vpack.c.bf16 %v1392, %v1388
        %v1811 = vpack.c.bf16 %v1402, %v1398
        %v1812 = vpack.c.bf16 %v1412, %v1408
        %v1813 = vpack.c.bf16 %v1422, %v1418
        %v1814 = vpack.c.bf16 %v1463, %v1459
        %v1815 = vpack.c.bf16 %v1473, %v1469
        %v1816 = vpack.c.bf16 %v1483, %v1479
        %v1817 = vpack.c.bf16 %v1493, %v1489
        %v1818 = vpack.c.bf16 %v1465, %v1461
        %v1819 = vpack.c.bf16 %v1475, %v1471
        %v1820 = vpack.c.bf16 %v1485, %v1481
        %v1821 = vpack.c.bf16 %v1495, %v1491
        %1822 = vmatprep.subr.bf16.mxu0 0
        %1823 = vmatpush1.bf16.xpose.msra.mxu0 %v1814
        %1824 = vmatprep.subr.bf16.mxu0 0
        %1825 = vmatpush1.bf16.xpose.msra.mxu0 %v1815
        %1826 = vmatprep.subr.bf16.mxu0 0
        %1827 = vmatpush1.bf16.xpose.msra.mxu0 0
        %1828 = vmatprep.subr.bf16.mxu0 0
        %1829 = vmatpush1.bf16.xpose.msra.mxu0 0
        %1830 = vmatprep.subr.bf16.mxu0 0
        %1831 = vmatpush1.bf16.xpose.msra.mxu0 0
        %1832 = vmatprep.subr.bf16.mxu0 0
        %1833 = vmatpush1.bf16.xpose.msra.mxu0 0
        %1834 = vmatprep.subr.bf16.mxu0 0
        %1835 = vmatpush1.bf16.xpose.msra.mxu0 0
        %1836 = vmatprep.subr.bf16.mxu0 0
        %1837 = vmatpush1.bf16.xpose.msra.mxu0 0
        %1838 = vmatprep.subr.bf16.mxu0 0
        %1839 = vmatpush1.bf16.xpose.msra.mxu0 0
        %1840 = vmatprep.subr.bf16.mxu0 0
        %1841 = vmatpush1.bf16.xpose.msra.mxu0 0
        %1842 = vmatprep.subr.bf16.mxu0 0
        %1843 = vmatpush1.bf16.xpose.msra.mxu0 0
        %1844 = vmatprep.subr.bf16.mxu0 0
        %1845 = vmatpush1.bf16.xpose.msra.mxu0 0
        %1846 = vmatprep.subr.bf16.mxu0 0
        %1847 = vmatpush1.bf16.xpose.msra.mxu0 0
        %1848 = vmatprep.subr.bf16.mxu0 0
        %1849 = vmatpush1.bf16.xpose.msra.mxu0 0
        %1850 = vmatprep.subr.bf16.mxu0 0
        %1851 = vmatpush1.bf16.xpose.msra.mxu0 0
        %1852 = vmatprep.subr.bf16.mxu0 0
        %1853 = vmatpush1.bf16.xpose.msra.mxu0 0
        %1854 = vmatprep.mubr.bf16.mxu0 0
        %1855 = vmatmul.mubr.bf16.gmra.mrb[0].mxu0 %v1810
        %v1856 = vpop.f32.mrb[0].mxu0
        %v1857 = vadd.f32 0.0, %v1856
        %v1858 = vpop.f32.mrb[0].mxu0
        %v1859 = vpop.f32.mrb[0].mxu0
        %v1860 = vadd.f32 0.0, %v1859
        %v1861 = vpop.f32.mrb[0].mxu0
        %1862 = vmatprep.mubr.bf16.mxu0 0
        %1863 = vmatmul.mubr.bf16.gmra.mrb[0].mxu0 %v1811
        %v1864 = vpop.f32.mrb[0].mxu0
        %v1865 = vadd.f32 0.0, %v1864
        %v1866 = vpop.f32.mrb[0].mxu0
        %v1867 = vpop.f32.mrb[0].mxu0
        %v1868 = vadd.f32 0.0, %v1867
        %v1869 = vpop.f32.mrb[0].mxu0
        %1870 = vdwg.mxu0
        %1871 = vmatprep.subr.bf16.mxu0 0
        %1872 = vmatpush1.bf16.xpose.msra.mxu0 %v1816
        %1873 = vmatprep.subr.bf16.mxu0 0
        %1874 = vmatpush1.bf16.xpose.msra.mxu0 %v1817
        %1875 = vmatprep.subr.bf16.mxu0 0
        %1876 = vmatpush1.bf16.xpose.msra.mxu0 0
        %1877 = vmatprep.subr.bf16.mxu0 0
        %1878 = vmatpush1.bf16.xpose.msra.mxu0 0
        %1879 = vmatprep.subr.bf16.mxu0 0
        %1880 = vmatpush1.bf16.xpose.msra.mxu0 0
        %1881 = vmatprep.subr.bf16.mxu0 0
        %1882 = vmatpush1.bf16.xpose.msra.mxu0 0
        %1883 = vmatprep.subr.bf16.mxu0 0
        %1884 = vmatpush1.bf16.xpose.msra.mxu0 0
        %1885 = vmatprep.subr.bf16.mxu0 0
        %1886 = vmatpush1.bf16.xpose.msra.mxu0 0
        %1887 = vmatprep.subr.bf16.mxu0 0
        %1888 = vmatpush1.bf16.xpose.msra.mxu0 0
        %1889 = vmatprep.subr.bf16.mxu0 0
        %1890 = vmatpush1.bf16.xpose.msra.mxu0 0
        %1891 = vmatprep.subr.bf16.mxu0 0
        %1892 = vmatpush1.bf16.xpose.msra.mxu0 0
        %1893 = vmatprep.subr.bf16.mxu0 0
        %1894 = vmatpush1.bf16.xpose.msra.mxu0 0
        %1895 = vmatprep.subr.bf16.mxu0 0
        %1896 = vmatpush1.bf16.xpose.msra.mxu0 0
        %1897 = vmatprep.subr.bf16.mxu0 0
        %1898 = vmatpush1.bf16.xpose.msra.mxu0 0
        %1899 = vmatprep.subr.bf16.mxu0 0
        %1900 = vmatpush1.bf16.xpose.msra.mxu0 0
        %1901 = vmatprep.subr.bf16.mxu0 0
        %1902 = vmatpush1.bf16.xpose.msra.mxu0 0
        %1903 = vmatprep.mubr.bf16.mxu0 0
        %1904 = vmatmul.mubr.bf16.gmra.mrb[0].mxu0 %v1812
        %v1905 = vpop.f32.mrb[0].mxu0
        %v1906 = vadd.f32 0.0, %v1905
        %v1907 = vpop.f32.mrb[0].mxu0
        %v1908 = vpop.f32.mrb[0].mxu0
        %v1909 = vadd.f32 0.0, %v1908
        %v1910 = vpop.f32.mrb[0].mxu0
        %1911 = vmatprep.mubr.bf16.mxu0 0
        %1912 = vmatmul.mubr.bf16.gmra.mrb[0].mxu0 %v1813
        %v1913 = vpop.f32.mrb[0].mxu0
        %v1914 = vadd.f32 0.0, %v1913
        %v1915 = vpop.f32.mrb[0].mxu0
        %v1916 = vpop.f32.mrb[0].mxu0
        %v1917 = vadd.f32 0.0, %v1916
        %v1918 = vpop.f32.mrb[0].mxu0
        %1919 = vdwg.mxu0
        %v1920 = vsel %vm1607, %v1857, -inf
        %1921 = vmax.xlane.f32.xlu0 %v1920
        %v1922 = vpop.xlane.xlu0 %1921
        %v1923 = vsel %vm1607, %v1860, -inf
        %1924 = vmax.xlane.f32.xlu0 %v1923
        %v1925 = vpop.xlane.xlu0 %1924
        %v1926 = vsel %vm1607, %v1865, -inf
        %1927 = vmax.xlane.f32.xlu0 %v1926
        %v1928 = vpop.xlane.xlu0 %1927
        %v1929 = vsel %vm1607, %v1868, -inf
        %1930 = vmax.xlane.f32.xlu0 %v1929
        %v1931 = vpop.xlane.xlu0 %1930
        %v1932 = vsel %vm1607, %v1906, -inf
        %1933 = vmax.xlane.f32.xlu0 %v1932
        %v1934 = vpop.xlane.xlu0 %1933
        %v1935 = vsel %vm1607, %v1909, -inf
        %1936 = vmax.xlane.f32.xlu0 %v1935
        %v1937 = vpop.xlane.xlu0 %1936
        %v1938 = vsel %vm1607, %v1914, -inf
        %1939 = vmax.xlane.f32.xlu0 %v1938
        %v1940 = vpop.xlane.xlu0 %1939
        %v1941 = vsel %vm1607, %v1917, -inf
        %1942 = vmax.xlane.f32.xlu0 %v1941
        %v1943 = vpop.xlane.xlu0 %1942
        %v1944 = vsub.f32 %v1857, %v1922
        %v1945 = vsub.f32 %v1860, %v1925
        %v1946 = vsub.f32 %v1865, %v1928
        %v1947 = vsub.f32 %v1868, %v1931
        %v1948 = vsub.f32 %v1906, %v1934
        %v1949 = vsub.f32 %v1909, %v1937
        %v1950 = vsub.f32 %v1914, %v1940
        %v1951 = vsub.f32 %v1917, %v1943
        %v1952 = vmul.f32 %v1944, 1.442695
        %v1953 = vpow.pop %v1952
        %v1954 = vmul.f32 %v1945, 1.442695
        %v1955 = vpow.pop %v1954
        %v1956 = vmul.f32 %v1946, 1.442695
        %v1957 = vpow.pop %v1956
        %v1958 = vmul.f32 %v1947, 1.442695
        %v1959 = vpow.pop %v1958
        %v1960 = vmul.f32 %v1948, 1.442695
        %v1961 = vpow.pop %v1960
        %v1962 = vmul.f32 %v1949, 1.442695
        %v1963 = vpow.pop %v1962
        %v1964 = vmul.f32 %v1950, 1.442695
        %v1965 = vpow.pop %v1964
        %v1966 = vmul.f32 %v1951, 1.442695
        %v1967 = vpow.pop %v1966
        %v1968 = vsel %vm1607, %v1953, 0.0
        %1969 = vadd.xlane.f32.xlu0 %v1968
        %v1970 = vpop.xlane.xlu0 %1969
        %v1971 = vsel %vm1607, %v1955, 0.0
        %1972 = vadd.xlane.f32.xlu0 %v1971
        %v1973 = vpop.xlane.xlu0 %1972
        %v1974 = vsel %vm1607, %v1957, 0.0
        %1975 = vadd.xlane.f32.xlu0 %v1974
        %v1976 = vpop.xlane.xlu0 %1975
        %v1977 = vsel %vm1607, %v1959, 0.0
        %1978 = vadd.xlane.f32.xlu0 %v1977
        %v1979 = vpop.xlane.xlu0 %1978
        %v1980 = vsel %vm1607, %v1961, 0.0
        %1981 = vadd.xlane.f32.xlu0 %v1980
        %v1982 = vpop.xlane.xlu0 %1981
        %v1983 = vsel %vm1607, %v1963, 0.0
        %1984 = vadd.xlane.f32.xlu0 %v1983
        %v1985 = vpop.xlane.xlu0 %1984
        %v1986 = vsel %vm1607, %v1965, 0.0
        %1987 = vadd.xlane.f32.xlu0 %v1986
        %v1988 = vpop.xlane.xlu0 %1987
        %v1989 = vsel %vm1607, %v1967, 0.0
        %1990 = vadd.xlane.f32.xlu0 %v1989
        %v1991 = vpop.xlane.xlu0 %1990
        %v1992 = vrcp.pop %v1970
        %v1993 = vmul.f32 %v1953, %v1992
        %v1994 = vrcp.pop %v1973
        %v1995 = vmul.f32 %v1955, %v1994
        %v1996 = vrcp.pop %v1976
        %v1997 = vmul.f32 %v1957, %v1996
        %v1998 = vrcp.pop %v1979
        %v1999 = vmul.f32 %v1959, %v1998
        %v2000 = vrcp.pop %v1982
        %v2001 = vmul.f32 %v1961, %v2000
        %v2002 = vrcp.pop %v1985
        %v2003 = vmul.f32 %v1963, %v2002
        %v2004 = vrcp.pop %v1988
        %v2005 = vmul.f32 %v1965, %v2004
        %v2006 = vrcp.pop %v1991
        %v2007 = vmul.f32 %v1967, %v2006
        %v2008 = vpack.c.bf16 %v1995, %v1993
        %v2009 = vpack.c.bf16 %v1999, %v1997
        %v2010 = vpack.c.bf16 %v2003, %v2001
        %v2011 = vpack.c.bf16 %v2007, %v2005
        %v2013 = vsel %vm1607, %v2008, 0
        %v2016 = vsel %vm1607, %v2009, 0
        %2018 = vmatprep.subr.bf16.mxu0 0
        %2019 = vmatpush1.bf16.msra.mxu0 %v1818
        %2020 = vmatprep.subr.bf16.mxu0 0
        %2021 = vmatpush1.bf16.msra.mxu0 %v1819
        %2022 = vmatprep.subr.bf16.mxu0 0
        %2023 = vmatpush1.bf16.msra.mxu0 0
        %2024 = vmatprep.subr.bf16.mxu0 0
        %2025 = vmatpush1.bf16.msra.mxu0 0
        %2026 = vmatprep.subr.bf16.mxu0 0
        %2027 = vmatpush1.bf16.msra.mxu0 0
        %2028 = vmatprep.subr.bf16.mxu0 0
        %2029 = vmatpush1.bf16.msra.mxu0 0
        %2030 = vmatprep.subr.bf16.mxu0 0
        %2031 = vmatpush1.bf16.msra.mxu0 0
        %2032 = vmatprep.subr.bf16.mxu0 0
        %2033 = vmatpush1.bf16.msra.mxu0 0
        %2034 = vmatprep.subr.bf16.mxu0 0
        %2035 = vmatpush1.bf16.msra.mxu0 0
        %2036 = vmatprep.subr.bf16.mxu0 0
        %2037 = vmatpush1.bf16.msra.mxu0 0
        %2038 = vmatprep.subr.bf16.mxu0 0
        %2039 = vmatpush1.bf16.msra.mxu0 0
        %2040 = vmatprep.subr.bf16.mxu0 0
        %2041 = vmatpush1.bf16.msra.mxu0 0
        %2042 = vmatprep.subr.bf16.mxu0 0
        %2043 = vmatpush1.bf16.msra.mxu0 0
        %2044 = vmatprep.subr.bf16.mxu0 0
        %2045 = vmatpush1.bf16.msra.mxu0 0
        %2046 = vmatprep.subr.bf16.mxu0 0
        %2047 = vmatpush1.bf16.msra.mxu0 0
        %2048 = vmatprep.subr.bf16.mxu0 0
        %2049 = vmatpush1.bf16.msra.mxu0 0
        %2050 = vmatprep.mubr.bf16.mxu0 0
        %2051 = vmatmul.mubr.bf16.gmra.mrb[0].mxu0 %v2013
        %v2052 = vpop.f32.mrb[0].mxu0
        %v2053 = vadd.f32 0.0, %v2052
        %v2054 = vpop.f32.mrb[0].mxu0
        %v2055 = vpop.f32.mrb[0].mxu0
        %v2056 = vadd.f32 0.0, %v2055
        %v2057 = vpop.f32.mrb[0].mxu0
        %2058 = vmatprep.mubr.bf16.mxu0 0
        %2059 = vmatmul.mubr.bf16.gmra.mrb[0].mxu0 %v2016
        %v2060 = vpop.f32.mrb[0].mxu0
        %v2061 = vadd.f32 0.0, %v2060
        %v2062 = vpop.f32.mrb[0].mxu0
        %v2063 = vpop.f32.mrb[0].mxu0
        %v2064 = vadd.f32 0.0, %v2063
        %v2065 = vpop.f32.mrb[0].mxu0
        %2066 = vdwg.mxu0
        %v2068 = vsel %vm1607, %v2010, 0
        %v2071 = vsel %vm1607, %v2011, 0
        %2073 = vmatprep.subr.bf16.mxu0 0
        %2074 = vmatpush1.bf16.msra.mxu0 %v1820
        %2075 = vmatprep.subr.bf16.mxu0 0
        %2076 = vmatpush1.bf16.msra.mxu0 %v1821
        %2077 = vmatprep.subr.bf16.mxu0 0
        %2078 = vmatpush1.bf16.msra.mxu0 0
        %2079 = vmatprep.subr.bf16.mxu0 0
        %2080 = vmatpush1.bf16.msra.mxu0 0
        %2081 = vmatprep.subr.bf16.mxu0 0
        %2082 = vmatpush1.bf16.msra.mxu0 0
        %2083 = vmatprep.subr.bf16.mxu0 0
        %2084 = vmatpush1.bf16.msra.mxu0 0
        %2085 = vmatprep.subr.bf16.mxu0 0
        %2086 = vmatpush1.bf16.msra.mxu0 0
        %2087 = vmatprep.subr.bf16.mxu0 0
        %2088 = vmatpush1.bf16.msra.mxu0 0
        %2089 = vmatprep.subr.bf16.mxu0 0
        %2090 = vmatpush1.bf16.msra.mxu0 0
        %2091 = vmatprep.subr.bf16.mxu0 0
        %2092 = vmatpush1.bf16.msra.mxu0 0
        %2093 = vmatprep.subr.bf16.mxu0 0
        %2094 = vmatpush1.bf16.msra.mxu0 0
        %2095 = vmatprep.subr.bf16.mxu0 0
        %2096 = vmatpush1.bf16.msra.mxu0 0
        %2097 = vmatprep.subr.bf16.mxu0 0
        %2098 = vmatpush1.bf16.msra.mxu0 0
        %2099 = vmatprep.subr.bf16.mxu0 0
        %2100 = vmatpush1.bf16.msra.mxu0 0
        %2101 = vmatprep.subr.bf16.mxu0 0
        %2102 = vmatpush1.bf16.msra.mxu0 0
        %2103 = vmatprep.subr.bf16.mxu0 0
        %2104 = vmatpush1.bf16.msra.mxu0 0
        %2105 = vmatprep.mubr.bf16.mxu0 0
        %2106 = vmatmul.mubr.bf16.gmra.mrb[0].mxu0 %v2068
        %v2107 = vpop.f32.mrb[0].mxu0
        %v2108 = vadd.f32 0.0, %v2107
        %v2109 = vpop.f32.mrb[0].mxu0
        %v2110 = vpop.f32.mrb[0].mxu0
        %v2111 = vadd.f32 0.0, %v2110
        %v2112 = vpop.f32.mrb[0].mxu0
        %2113 = vmatprep.mubr.bf16.mxu0 0
        %2114 = vmatmul.mubr.bf16.gmra.mrb[0].mxu0 %v2071
        %v2115 = vpop.f32.mrb[0].mxu0
        %v2116 = vadd.f32 0.0, %v2115
        %v2117 = vpop.f32.mrb[0].mxu0
        %v2118 = vpop.f32.mrb[0].mxu0
        %v2119 = vadd.f32 0.0, %v2118
        %v2120 = vpop.f32.mrb[0].mxu0
        %2121 = vdwg.mxu0
        %v2122 = vpack.c.bf16 %v1744, %v1741
        %v2123 = vpack.c.bf16 %v2056, %v2053
        %v2124 = vpack.c.bf16 %v1752, %v1749
        %v2125 = vpack.c.bf16 %v2064, %v2061
        %v2126 = vpack.c.bf16 %v1799, %v1796
        %v2127 = vpack.c.bf16 %v2111, %v2108
        %v2128 = vpack.c.bf16 %v1807, %v1804
        %v2129 = vpack.c.bf16 %v2119, %v2116
        %v2130 = vld [vmem:[%s714] sm:$0xf]
        %v2131 = vld [vmem:[%s714 + $0x4] sm:$0xf]
        %v2132 = vld [vmem:[%s714 + $0x8] sm:$0xf]
        %v2133 = vld [vmem:[%s714 + $0xc] sm:$0xf]
        %v2134 = vld [vmem:[%s714 + $0x10] sm:$0xf]
        %v2135 = vld [vmem:[%s714 + $0x14] sm:$0xf]
        %v2136 = vld [vmem:[%s714 + $0x18] sm:$0xf]
        %v2137 = vld [vmem:[%s714 + $0x1c] sm:$0xf]
        %v2138 = vld [vmem:[%s714 + $0x20] sm:$0xf]
        %v2139 = vld [vmem:[%s714 + $0x24] sm:$0xf]
        %v2140 = vld [vmem:[%s714 + $0x28] sm:$0xf]
        %v2141 = vld [vmem:[%s714 + $0x2c] sm:$0xf]
        %v2142 = vld [vmem:[%s714 + $0x30] sm:$0xf]
        %v2143 = vld [vmem:[%s714 + $0x34] sm:$0xf]
        %v2144 = vld [vmem:[%s714 + $0x38] sm:$0xf]
        %v2145 = vld [vmem:[%s714 + $0x3c] sm:$0xf]
        %v2146 = vld [vmem:[%s714 + $0x40] sm:$0xf]
        %v2147 = vld [vmem:[%s714 + $0x44] sm:$0xf]
        %v2148 = vld [vmem:[%s714 + $0x48] sm:$0xf]
        %v2149 = vld [vmem:[%s714 + $0x4c] sm:$0xf]
        %v2150 = vld [vmem:[%s714 + $0x50] sm:$0xf]
        %v2151 = vld [vmem:[%s714 + $0x54] sm:$0xf]
        %v2152 = vld [vmem:[%s714 + $0x58] sm:$0xf]
        %v2153 = vld [vmem:[%s714 + $0x5c] sm:$0xf]
        %v2154 = vld [vmem:[%s714 + $0x60] sm:$0xf]
        %v2155 = vld [vmem:[%s714 + $0x64] sm:$0xf]
        %v2156 = vld [vmem:[%s714 + $0x68] sm:$0xf]
        %v2157 = vld [vmem:[%s714 + $0x6c] sm:$0xf]
        %v2158 = vld [vmem:[%s714 + $0x70] sm:$0xf]
        %v2159 = vld [vmem:[%s714 + $0x74] sm:$0xf]
        %v2160 = vld [vmem:[%s714 + $0x78] sm:$0xf]
        %v2161 = vld [vmem:[%s714 + $0x7c] sm:$0xf]
        %v2162 = vld [vmem:[%s717] sm:$0x1]
        %v2164 = vlaneseq
        %v2165 = vshrl.u32 %v2164, 7
        %v2166 = vsub.s32 0, %v2165
        %v2167 = vrot.slane %v2162, %v2166
        %v2201 = vunpack.c.l.b16 %v2130
        %v2202 = vunpack.c.l.b16 %v2131
        %v2203 = vunpack.c.l.b16 %v2132
        %v2204 = vunpack.c.l.b16 %v2133
        %v2205 = vunpack.c.l.b16 %v2134
        %v2206 = vunpack.c.l.b16 %v2135
        %v2207 = vunpack.c.l.b16 %v2136
        %v2208 = vunpack.c.l.b16 %v2137
        %v2209 = vunpack.c.l.b16 %v2138
        %v2210 = vunpack.c.l.b16 %v2139
        %v2211 = vunpack.c.l.b16 %v2140
        %v2212 = vunpack.c.l.b16 %v2141
        %v2213 = vunpack.c.l.b16 %v2142
        %v2214 = vunpack.c.l.b16 %v2143
        %v2215 = vunpack.c.l.b16 %v2144
        %v2216 = vunpack.c.l.b16 %v2145
        %v2217 = vunpack.c.l.b16 %v2146
        %v2218 = vunpack.c.l.b16 %v2147
        %v2219 = vunpack.c.l.b16 %v2148
        %v2220 = vunpack.c.l.b16 %v2149
        %v2221 = vunpack.c.l.b16 %v2150
        %v2222 = vunpack.c.l.b16 %v2151
        %v2223 = vunpack.c.l.b16 %v2152
        %v2224 = vunpack.c.l.b16 %v2153
        %v2225 = vunpack.c.l.b16 %v2154
        %v2226 = vunpack.c.l.b16 %v2155
        %v2227 = vunpack.c.l.b16 %v2156
        %v2228 = vunpack.c.l.b16 %v2157
        %v2229 = vunpack.c.l.b16 %v2158
        %v2230 = vunpack.c.l.b16 %v2159
        %v2231 = vunpack.c.l.b16 %v2160
        %v2232 = vunpack.c.l.b16 %v2161
        %v2233 = vpack.c.b16 %v2202, %v2201
        %v2234 = vpack.c.b16 %v2204, %v2203
        %v2235 = vpack.c.b16 %v2206, %v2205
        %v2236 = vpack.c.b16 %v2208, %v2207
        %v2237 = vpack.c.b16 %v2210, %v2209
        %v2238 = vpack.c.b16 %v2212, %v2211
        %v2239 = vpack.c.b16 %v2214, %v2213
        %v2240 = vpack.c.b16 %v2216, %v2215
        %v2241 = vpack.c.b16 %v2218, %v2217
        %v2242 = vpack.c.b16 %v2220, %v2219
        %v2243 = vpack.c.b16 %v2222, %v2221
        %v2244 = vpack.c.b16 %v2224, %v2223
        %v2245 = vpack.c.b16 %v2226, %v2225
        %v2246 = vpack.c.b16 %v2228, %v2227
        %v2247 = vpack.c.b16 %v2230, %v2229
        %v2248 = vpack.c.b16 %v2232, %v2231
        %2265 = vmatprep.subr.bf16.mxu0 0
        %2266 = vmatpush1.bf16.msra.mxu0 %v2233
        %2267 = vmatprep.subr.bf16.mxu0 0
        %2268 = vmatpush1.bf16.msra.mxu0 %v2234
        %2269 = vmatprep.subr.bf16.mxu0 0
        %2270 = vmatpush1.bf16.msra.mxu0 %v2235
        %2271 = vmatprep.subr.bf16.mxu0 0
        %2272 = vmatpush1.bf16.msra.mxu0 %v2236
        %2273 = vmatprep.subr.bf16.mxu0 0
        %2274 = vmatpush1.bf16.msra.mxu0 %v2237
        %2275 = vmatprep.subr.bf16.mxu0 0
        %2276 = vmatpush1.bf16.msra.mxu0 %v2238
        %2277 = vmatprep.subr.bf16.mxu0 0
        %2278 = vmatpush1.bf16.msra.mxu0 %v2239
        %2279 = vmatprep.subr.bf16.mxu0 0
        %2280 = vmatpush1.bf16.msra.mxu0 %v2240
        %2281 = vmatprep.subr.bf16.mxu0 0
        %2282 = vmatpush1.bf16.msra.mxu0 %v2241
        %2283 = vmatprep.subr.bf16.mxu0 0
        %2284 = vmatpush1.bf16.msra.mxu0 %v2242
        %2285 = vmatprep.subr.bf16.mxu0 0
        %2286 = vmatpush1.bf16.msra.mxu0 %v2243
        %2287 = vmatprep.subr.bf16.mxu0 0
        %2288 = vmatpush1.bf16.msra.mxu0 %v2244
        %2289 = vmatprep.subr.bf16.mxu0 0
        %2290 = vmatpush1.bf16.msra.mxu0 %v2245
        %2291 = vmatprep.subr.bf16.mxu0 0
        %2292 = vmatpush1.bf16.msra.mxu0 %v2246
        %2293 = vmatprep.subr.bf16.mxu0 0
        %2294 = vmatpush1.bf16.msra.mxu0 %v2247
        %2295 = vmatprep.subr.bf16.mxu0 0
        %2296 = vmatpush1.bf16.msra.mxu0 %v2248
        %2297 = vmatprep.mubr.bf16.mxu0 %v2123
        %2298 = vmatmul.mubr.bf16.gmra.mrb[0].mxu0 %v2122
        %v2299 = vpop.f32.mrb[0].mxu0
        %v2300 = vadd.f32 %v2167, %v2299
        %v2301 = vpop.f32.mrb[0].mxu0
        %v2302 = vpop.f32.mrb[0].mxu0
        %v2303 = vadd.f32 %v2167, %v2302
        %v2304 = vpop.f32.mrb[0].mxu0
        %2305 = vmatprep.mubr.bf16.mxu0 %v2125
        %2306 = vmatmul.mubr.bf16.gmra.mrb[0].mxu0 %v2124
        %v2307 = vpop.f32.mrb[0].mxu0
        %v2308 = vadd.f32 %v2167, %v2307
        %v2309 = vpop.f32.mrb[0].mxu0
        %v2310 = vpop.f32.mrb[0].mxu0
        %v2311 = vadd.f32 %v2167, %v2310
        %v2312 = vpop.f32.mrb[0].mxu0
        %2313 = vmatprep.mubr.bf16.mxu0 %v2127
        %2314 = vmatmul.mubr.bf16.gmra.mrb[0].mxu0 %v2126
        %v2315 = vpop.f32.mrb[0].mxu0
        %v2316 = vadd.f32 %v2167, %v2315
        %v2317 = vpop.f32.mrb[0].mxu0
        %v2318 = vpop.f32.mrb[0].mxu0
        %v2319 = vadd.f32 %v2167, %v2318
        %v2320 = vpop.f32.mrb[0].mxu0
        %2321 = vmatprep.mubr.bf16.mxu0 %v2129
        %2322 = vmatmul.mubr.bf16.gmra.mrb[0].mxu0 %v2128
        %v2323 = vpop.f32.mrb[0].mxu0
        %v2324 = vadd.f32 %v2167, %v2323
        %v2325 = vpop.f32.mrb[0].mxu0
        %v2326 = vpop.f32.mrb[0].mxu0
        %v2327 = vadd.f32 %v2167, %v2326
        %v2328 = vpop.f32.mrb[0].mxu0
        %2329 = vdwg.mxu0
        %v2330 = vadd.f32 %v2300, %v946
        %v2331 = vadd.f32 %v2303, %v947
        %v2332 = vadd.f32 %v2308, %v948
        %v2333 = vadd.f32 %v2311, %v949
        %v2334 = vadd.f32 %v2316, %v950
        %v2335 = vadd.f32 %v2319, %v951
        %v2336 = vadd.f32 %v2324, %v952
        %v2337 = vadd.f32 %v2327, %v953
        %v2338 = vld [vmem:[%s720] sm:$0x1]
        %v2339 = vld [vmem:[%s723] sm:$0x1]
        %2340 = vadd.xlane.f32.xlu0 %v2330
        %v2341 = vpop.xlane.xlu0 %2340
        %2342 = vadd.xlane.f32.xlu0 %v2331
        %v2343 = vpop.xlane.xlu0 %2342
        %2344 = vadd.xlane.f32.xlu0 %v2332
        %v2345 = vpop.xlane.xlu0 %2344
        %2346 = vadd.xlane.f32.xlu0 %v2333
        %v2347 = vpop.xlane.xlu0 %2346
        %2348 = vadd.xlane.f32.xlu0 %v2334
        %v2349 = vpop.xlane.xlu0 %2348
        %2350 = vadd.xlane.f32.xlu0 %v2335
        %v2351 = vpop.xlane.xlu0 %2350
        %2352 = vadd.xlane.f32.xlu0 %v2336
        %v2353 = vpop.xlane.xlu0 %2352
        %2354 = vadd.xlane.f32.xlu0 %v2337
        %v2355 = vpop.xlane.xlu0 %2354
        %v2356 = vrcp.pop 128.0
        %v2357 = vmul.f32 %v2341, %v2356
        %v2358 = vmul.f32 %v2343, %v2356
        %v2359 = vmul.f32 %v2345, %v2356
        %v2360 = vmul.f32 %v2347, %v2356
        %v2361 = vmul.f32 %v2349, %v2356
        %v2362 = vmul.f32 %v2351, %v2356
        %v2363 = vmul.f32 %v2353, %v2356
        %v2364 = vmul.f32 %v2355, %v2356
        %v2365 = vsub.f32 %v2330, %v2357
        %v2366 = vsub.f32 %v2331, %v2358
        %v2367 = vsub.f32 %v2332, %v2359
        %v2368 = vsub.f32 %v2333, %v2360
        %v2369 = vsub.f32 %v2334, %v2361
        %v2370 = vsub.f32 %v2335, %v2362
        %v2371 = vsub.f32 %v2336, %v2363
        %v2372 = vsub.f32 %v2337, %v2364
        %v2373 = vmul.f32 %v2365, %v2365
        %v2374 = vmul.f32 %v2366, %v2366
        %v2375 = vmul.f32 %v2367, %v2367
        %v2376 = vmul.f32 %v2368, %v2368
        %v2377 = vmul.f32 %v2369, %v2369
        %v2378 = vmul.f32 %v2370, %v2370
        %v2379 = vmul.f32 %v2371, %v2371
        %v2380 = vmul.f32 %v2372, %v2372
        %2381 = vadd.xlane.f32.xlu0 %v2373
        %v2382 = vpop.xlane.xlu0 %2381
        %2383 = vadd.xlane.f32.xlu0 %v2374
        %v2384 = vpop.xlane.xlu0 %2383
        %2385 = vadd.xlane.f32.xlu0 %v2375
        %v2386 = vpop.xlane.xlu0 %2385
        %2387 = vadd.xlane.f32.xlu0 %v2376
        %v2388 = vpop.xlane.xlu0 %2387
        %2389 = vadd.xlane.f32.xlu0 %v2377
        %v2390 = vpop.xlane.xlu0 %2389
        %2391 = vadd.xlane.f32.xlu0 %v2378
        %v2392 = vpop.xlane.xlu0 %2391
        %2393 = vadd.xlane.f32.xlu0 %v2379
        %v2394 = vpop.xlane.xlu0 %2393
        %2395 = vadd.xlane.f32.xlu0 %v2380
        %v2396 = vpop.xlane.xlu0 %2395
        %v2397 = vmul.f32 %v2382, %v2356
        %v2398 = vmul.f32 %v2384, %v2356
        %v2399 = vmul.f32 %v2386, %v2356
        %v2400 = vmul.f32 %v2388, %v2356
        %v2401 = vmul.f32 %v2390, %v2356
        %v2402 = vmul.f32 %v2392, %v2356
        %v2403 = vmul.f32 %v2394, %v2356
        %v2404 = vmul.f32 %v2396, %v2356
        %v2405 = vadd.f32 %v2397, 1e-12
        %v2406 = vadd.f32 %v2398, 1e-12
        %v2407 = vadd.f32 %v2399, 1e-12
        %v2408 = vadd.f32 %v2400, 1e-12
        %v2409 = vadd.f32 %v2401, 1e-12
        %v2410 = vadd.f32 %v2402, 1e-12
        %v2411 = vadd.f32 %v2403, 1e-12
        %v2412 = vadd.f32 %v2404, 1e-12
        %v2413 = vrsqrt.pop %v2405
        %v2414 = vrsqrt.pop %v2406
        %v2415 = vrsqrt.pop %v2407
        %v2416 = vrsqrt.pop %v2408
        %v2417 = vrsqrt.pop %v2409
        %v2418 = vrsqrt.pop %v2410
        %v2419 = vrsqrt.pop %v2411
        %v2420 = vrsqrt.pop %v2412
        %v2421 = vmul.f32 %v2365, %v2413
        %v2422 = vmul.f32 %v2366, %v2414
        %v2423 = vmul.f32 %v2367, %v2415
        %v2424 = vmul.f32 %v2368, %v2416
        %v2425 = vmul.f32 %v2369, %v2417
        %v2426 = vmul.f32 %v2370, %v2418
        %v2427 = vmul.f32 %v2371, %v2419
        %v2428 = vmul.f32 %v2372, %v2420
        %v2430 = vlaneseq
        %v2431 = vshrl.u32 %v2430, 7
        %v2432 = vsub.s32 0, %v2431
        %v2433 = vrot.slane %v2338, %v2432
        %v2435 = vmul.f32 %v2421, %v2433
        %v2436 = vmul.f32 %v2422, %v2433
        %v2437 = vmul.f32 %v2423, %v2433
        %v2438 = vmul.f32 %v2424, %v2433
        %v2439 = vmul.f32 %v2425, %v2433
        %v2440 = vmul.f32 %v2426, %v2433
        %v2441 = vmul.f32 %v2427, %v2433
        %v2442 = vmul.f32 %v2428, %v2433
        %v2444 = vlaneseq
        %v2445 = vshrl.u32 %v2444, 7
        %v2446 = vsub.s32 0, %v2445
        %v2447 = vrot.slane %v2339, %v2446
        %v2449 = vadd.f32 %v2435, %v2447
        %v2450 = vadd.f32 %v2436, %v2447
        %v2451 = vadd.f32 %v2437, %v2447
        %v2452 = vadd.f32 %v2438, %v2447
        %v2453 = vadd.f32 %v2439, %v2447
        %v2454 = vadd.f32 %v2440, %v2447
        %v2455 = vadd.f32 %v2441, %v2447
        %v2456 = vadd.f32 %v2442, %v2447
        %v2457 = vpack.c.bf16 %v2450, %v2449
        %v2458 = vpack.c.bf16 %v2452, %v2451
        %v2459 = vpack.c.bf16 %v2454, %v2453
        %v2460 = vpack.c.bf16 %v2456, %v2455
        %v2461 = vld [vmem:[%s728] sm:$0xff]
        %v2462 = vld [vmem:[%s728 + $0x8] sm:$0xff]
        %v2463 = vld [vmem:[%s728 + $0x10] sm:$0xff]
        %v2464 = vld [vmem:[%s728 + $0x18] sm:$0xff]
        %v2465 = vld [vmem:[%s728 + $0x20] sm:$0xff]
        %v2466 = vld [vmem:[%s728 + $0x28] sm:$0xff]
        %v2467 = vld [vmem:[%s728 + $0x30] sm:$0xff]
        %v2468 = vld [vmem:[%s728 + $0x38] sm:$0xff]
        %v2469 = vld [vmem:[%s728 + $0x40] sm:$0xff]
        %v2470 = vld [vmem:[%s728 + $0x48] sm:$0xff]
        %v2471 = vld [vmem:[%s728 + $0x50] sm:$0xff]
        %v2472 = vld [vmem:[%s728 + $0x58] sm:$0xff]
        %v2473 = vld [vmem:[%s728 + $0x60] sm:$0xff]
        %v2474 = vld [vmem:[%s728 + $0x68] sm:$0xff]
        %v2475 = vld [vmem:[%s728 + $0x70] sm:$0xff]
        %v2476 = vld [vmem:[%s728 + $0x78] sm:$0xff]
        %v2477 = vld [vmem:[%s728 + $0x80] sm:$0xff]
        %v2478 = vld [vmem:[%s728 + $0x88] sm:$0xff]
        %v2479 = vld [vmem:[%s728 + $0x90] sm:$0xff]
        %v2480 = vld [vmem:[%s728 + $0x98] sm:$0xff]
        %v2481 = vld [vmem:[%s728 + $0xa0] sm:$0xff]
        %v2482 = vld [vmem:[%s728 + $0xa8] sm:$0xff]
        %v2483 = vld [vmem:[%s728 + $0xb0] sm:$0xff]
        %v2484 = vld [vmem:[%s728 + $0xb8] sm:$0xff]
        %v2485 = vld [vmem:[%s728 + $0xc0] sm:$0xff]
        %v2486 = vld [vmem:[%s728 + $0xc8] sm:$0xff]
        %v2487 = vld [vmem:[%s728 + $0xd0] sm:$0xff]
        %v2488 = vld [vmem:[%s728 + $0xd8] sm:$0xff]
        %v2489 = vld [vmem:[%s728 + $0xe0] sm:$0xff]
        %v2490 = vld [vmem:[%s728 + $0xe8] sm:$0xff]
        %v2491 = vld [vmem:[%s728 + $0xf0] sm:$0xff]
        %v2492 = vld [vmem:[%s728 + $0xf8] sm:$0xff]
        %v2493 = vld [vmem:[%s732] sm:$0xf]
        %v2495 = vlaneseq
        %v2496 = vshrl.u32 %v2495, 7
        %v2497 = vsub.s32 0, %v2496
        %v2498 = vrot.slane %v2493, %v2497
        %v2499 = vlaneseq
        %v2500 = vshrl.u32 %v2499, 7
        %v2501 = vsub.s32 1, %v2500
        %v2502 = vrot.slane %v2493, %v2501
        %v2503 = vlaneseq
        %v2504 = vshrl.u32 %v2503, 7
        %v2505 = vsub.s32 2, %v2504
        %v2506 = vrot.slane %v2493, %v2505
        %v2507 = vlaneseq
        %v2508 = vshrl.u32 %v2507, 7
        %v2509 = vsub.s32 3, %v2508
        %v2510 = vrot.slane %v2493, %v2509
        %v2547 = vunpack.c.l.b16 %v2461
        %v2548 = vunpack.c.h.b16 %v2461
        %v2549 = vunpack.c.l.b16 %v2462
        %v2550 = vunpack.c.h.b16 %v2462
        %v2551 = vunpack.c.l.b16 %v2463
        %v2552 = vunpack.c.h.b16 %v2463
        %v2553 = vunpack.c.l.b16 %v2464
        %v2554 = vunpack.c.h.b16 %v2464
        %v2555 = vunpack.c.l.b16 %v2465
        %v2556 = vunpack.c.h.b16 %v2465
        %v2557 = vunpack.c.l.b16 %v2466
        %v2558 = vunpack.c.h.b16 %v2466
        %v2559 = vunpack.c.l.b16 %v2467
        %v2560 = vunpack.c.h.b16 %v2467
        %v2561 = vunpack.c.l.b16 %v2468
        %v2562 = vunpack.c.h.b16 %v2468
        %v2563 = vunpack.c.l.b16 %v2469
        %v2564 = vunpack.c.h.b16 %v2469
        %v2565 = vunpack.c.l.b16 %v2470
        %v2566 = vunpack.c.h.b16 %v2470
        %v2567 = vunpack.c.l.b16 %v2471
        %v2568 = vunpack.c.h.b16 %v2471
        %v2569 = vunpack.c.l.b16 %v2472
        %v2570 = vunpack.c.h.b16 %v2472
        %v2571 = vunpack.c.l.b16 %v2473
        %v2572 = vunpack.c.h.b16 %v2473
        %v2573 = vunpack.c.l.b16 %v2474
        %v2574 = vunpack.c.h.b16 %v2474
        %v2575 = vunpack.c.l.b16 %v2475
        %v2576 = vunpack.c.h.b16 %v2475
        %v2577 = vunpack.c.l.b16 %v2476
        %v2578 = vunpack.c.h.b16 %v2476
        %v2579 = vunpack.c.l.b16 %v2477
        %v2580 = vunpack.c.h.b16 %v2477
        %v2581 = vunpack.c.l.b16 %v2478
        %v2582 = vunpack.c.h.b16 %v2478
        %v2583 = vunpack.c.l.b16 %v2479
        %v2584 = vunpack.c.h.b16 %v2479
        %v2585 = vunpack.c.l.b16 %v2480
        %v2586 = vunpack.c.h.b16 %v2480
        %v2587 = vunpack.c.l.b16 %v2481
        %v2588 = vunpack.c.h.b16 %v2481
        %v2589 = vunpack.c.l.b16 %v2482
        %v2590 = vunpack.c.h.b16 %v2482
        %v2591 = vunpack.c.l.b16 %v2483
        %v2592 = vunpack.c.h.b16 %v2483
        %v2593 = vunpack.c.l.b16 %v2484
        %v2594 = vunpack.c.h.b16 %v2484
        %v2595 = vunpack.c.l.b16 %v2485
        %v2596 = vunpack.c.h.b16 %v2485
        %v2597 = vunpack.c.l.b16 %v2486
        %v2598 = vunpack.c.h.b16 %v2486
        %v2599 = vunpack.c.l.b16 %v2487
        %v2600 = vunpack.c.h.b16 %v2487
        %v2601 = vunpack.c.l.b16 %v2488
        %v2602 = vunpack.c.h.b16 %v2488
        %v2603 = vunpack.c.l.b16 %v2489
        %v2604 = vunpack.c.h.b16 %v2489
        %v2605 = vunpack.c.l.b16 %v2490
        %v2606 = vunpack.c.h.b16 %v2490
        %v2607 = vunpack.c.l.b16 %v2491
        %v2608 = vunpack.c.h.b16 %v2491
        %v2609 = vunpack.c.l.b16 %v2492
        %v2610 = vunpack.c.h.b16 %v2492
        %v2611 = vpack.c.b16 %v2551, %v2547
        %v2612 = vpack.c.b16 %v2552, %v2548
        %v2613 = vpack.c.b16 %v2553, %v2549
        %v2614 = vpack.c.b16 %v2554, %v2550
        %v2615 = vpack.c.b16 %v2559, %v2555
        %v2616 = vpack.c.b16 %v2560, %v2556
        %v2617 = vpack.c.b16 %v2561, %v2557
        %v2618 = vpack.c.b16 %v2562, %v2558
        %v2619 = vpack.c.b16 %v2567, %v2563
        %v2620 = vpack.c.b16 %v2568, %v2564
        %v2621 = vpack.c.b16 %v2569, %v2565
        %v2622 = vpack.c.b16 %v2570, %v2566
        %v2623 = vpack.c.b16 %v2575, %v2571
        %v2624 = vpack.c.b16 %v2576, %v2572
        %v2625 = vpack.c.b16 %v2577, %v2573
        %v2626 = vpack.c.b16 %v2578, %v2574
        %v2627 = vpack.c.b16 %v2583, %v2579
        %v2628 = vpack.c.b16 %v2584, %v2580
        %v2629 = vpack.c.b16 %v2585, %v2581
        %v2630 = vpack.c.b16 %v2586, %v2582
        %v2631 = vpack.c.b16 %v2591, %v2587
        %v2632 = vpack.c.b16 %v2592, %v2588
        %v2633 = vpack.c.b16 %v2593, %v2589
        %v2634 = vpack.c.b16 %v2594, %v2590
        %v2635 = vpack.c.b16 %v2599, %v2595
        %v2636 = vpack.c.b16 %v2600, %v2596
        %v2637 = vpack.c.b16 %v2601, %v2597
        %v2638 = vpack.c.b16 %v2602, %v2598
        %v2639 = vpack.c.b16 %v2607, %v2603
        %v2640 = vpack.c.b16 %v2608, %v2604
        %v2641 = vpack.c.b16 %v2609, %v2605
        %v2642 = vpack.c.b16 %v2610, %v2606
        %2675 = vmatprep.subr.bf16.mxu0 %v2612
        %2676 = vmatpush1.bf16.msra.mxu0 %v2611
        %2677 = vmatprep.subr.bf16.mxu0 %v2616
        %2678 = vmatpush1.bf16.msra.mxu0 %v2615
        %2679 = vmatprep.subr.bf16.mxu0 %v2620
        %2680 = vmatpush1.bf16.msra.mxu0 %v2619
        %2681 = vmatprep.subr.bf16.mxu0 %v2624
        %2682 = vmatpush1.bf16.msra.mxu0 %v2623
        %2683 = vmatprep.subr.bf16.mxu0 %v2628
        %2684 = vmatpush1.bf16.msra.mxu0 %v2627
        %2685 = vmatprep.subr.bf16.mxu0 %v2632
        %2686 = vmatpush1.bf16.msra.mxu0 %v2631
        %2687 = vmatprep.subr.bf16.mxu0 %v2636
        %2688 = vmatpush1.bf16.msra.mxu0 %v2635
        %2689 = vmatprep.subr.bf16.mxu0 %v2640
        %2690 = vmatpush1.bf16.msra.mxu0 %v2639
        %2691 = vmatprep.subr.bf16.mxu0 0
        %2692 = vmatpush1.bf16.msra.mxu0 0
        %2693 = vmatprep.subr.bf16.mxu0 0
        %2694 = vmatpush1.bf16.msra.mxu0 0
        %2695 = vmatprep.subr.bf16.mxu0 0
        %2696 = vmatpush1.bf16.msra.mxu0 0
        %2697 = vmatprep.subr.bf16.mxu0 0
        %2698 = vmatpush1.bf16.msra.mxu0 0
        %2699 = vmatprep.subr.bf16.mxu0 0
        %2700 = vmatpush1.bf16.msra.mxu0 0
        %2701 = vmatprep.subr.bf16.mxu0 0
        %2702 = vmatpush1.bf16.msra.mxu0 0
        %2703 = vmatprep.subr.bf16.mxu0 0
        %2704 = vmatpush1.bf16.msra.mxu0 0
        %2705 = vmatprep.subr.bf16.mxu0 0
        %2706 = vmatpush1.bf16.msra.mxu0 0
        %2707 = vmatprep.mubr.bf16.mxu0 0
        %2708 = vmatmul.mubr.bf16.gmra.mrb[0].mxu0 %v2457
        %v2709 = vpop.f32.mrb[0].mxu0
        %v2710 = vadd.f32 %v2498, %v2709
        %v2711 = vpop.f32.mrb[0].mxu0
        %v2712 = vadd.f32 %v2502, %v2711
        %v2713 = vpop.f32.mrb[0].mxu0
        %v2714 = vadd.f32 %v2498, %v2713
        %v2715 = vpop.f32.mrb[0].mxu0
        %v2716 = vadd.f32 %v2502, %v2715
        %2717 = vmatprep.mubr.bf16.mxu0 0
        %2718 = vmatmul.mubr.bf16.gmra.mrb[0].mxu0 %v2458
        %v2719 = vpop.f32.mrb[0].mxu0
        %v2720 = vadd.f32 %v2498, %v2719
        %v2721 = vpop.f32.mrb[0].mxu0
        %v2722 = vadd.f32 %v2502, %v2721
        %v2723 = vpop.f32.mrb[0].mxu0
        %v2724 = vadd.f32 %v2498, %v2723
        %v2725 = vpop.f32.mrb[0].mxu0
        %v2726 = vadd.f32 %v2502, %v2725
        %2727 = vmatprep.mubr.bf16.mxu0 0
        %2728 = vmatmul.mubr.bf16.gmra.mrb[0].mxu0 %v2459
        %v2729 = vpop.f32.mrb[0].mxu0
        %v2730 = vadd.f32 %v2498, %v2729
        %v2731 = vpop.f32.mrb[0].mxu0
        %v2732 = vadd.f32 %v2502, %v2731
        %v2733 = vpop.f32.mrb[0].mxu0
        %v2734 = vadd.f32 %v2498, %v2733
        %v2735 = vpop.f32.mrb[0].mxu0
        %v2736 = vadd.f32 %v2502, %v2735
        %2737 = vmatprep.mubr.bf16.mxu0 0
        %2738 = vmatmul.mubr.bf16.gmra.mrb[0].mxu0 %v2460
        %v2739 = vpop.f32.mrb[0].mxu0
        %v2740 = vadd.f32 %v2498, %v2739
        %v2741 = vpop.f32.mrb[0].mxu0
        %v2742 = vadd.f32 %v2502, %v2741
        %v2743 = vpop.f32.mrb[0].mxu0
        %v2744 = vadd.f32 %v2498, %v2743
        %v2745 = vpop.f32.mrb[0].mxu0
        %v2746 = vadd.f32 %v2502, %v2745
        %2747 = vdwg.mxu0
        %2748 = vmatprep.subr.bf16.mxu0 %v2614
        %2749 = vmatpush1.bf16.msra.mxu0 %v2613
        %2750 = vmatprep.subr.bf16.mxu0 %v2618
        %2751 = vmatpush1.bf16.msra.mxu0 %v2617
        %2752 = vmatprep.subr.bf16.mxu0 %v2622
        %2753 = vmatpush1.bf16.msra.mxu0 %v2621
        %2754 = vmatprep.subr.bf16.mxu0 %v2626
        %2755 = vmatpush1.bf16.msra.mxu0 %v2625
        %2756 = vmatprep.subr.bf16.mxu0 %v2630
        %2757 = vmatpush1.bf16.msra.mxu0 %v2629
        %2758 = vmatprep.subr.bf16.mxu0 %v2634
        %2759 = vmatpush1.bf16.msra.mxu0 %v2633
        %2760 = vmatprep.subr.bf16.mxu0 %v2638
        %2761 = vmatpush1.bf16.msra.mxu0 %v2637
        %2762 = vmatprep.subr.bf16.mxu0 %v2642
        %2763 = vmatpush1.bf16.msra.mxu0 %v2641
        %2764 = vmatprep.subr.bf16.mxu0 0
        %2765 = vmatpush1.bf16.msra.mxu0 0
        %2766 = vmatprep.subr.bf16.mxu0 0
        %2767 = vmatpush1.bf16.msra.mxu0 0
        %2768 = vmatprep.subr.bf16.mxu0 0
        %2769 = vmatpush1.bf16.msra.mxu0 0
        %2770 = vmatprep.subr.bf16.mxu0 0
        %2771 = vmatpush1.bf16.msra.mxu0 0
        %2772 = vmatprep.subr.bf16.mxu0 0
        %2773 = vmatpush1.bf16.msra.mxu0 0
        %2774 = vmatprep.subr.bf16.mxu0 0
        %2775 = vmatpush1.bf16.msra.mxu0 0
        %2776 = vmatprep.subr.bf16.mxu0 0
        %2777 = vmatpush1.bf16.msra.mxu0 0
        %2778 = vmatprep.subr.bf16.mxu0 0
        %2779 = vmatpush1.bf16.msra.mxu0 0
        %2780 = vmatprep.mubr.bf16.mxu0 0
        %2781 = vmatmul.mubr.bf16.gmra.mrb[0].mxu0 %v2457
        %v2782 = vpop.f32.mrb[0].mxu0
        %v2783 = vadd.f32 %v2506, %v2782
        %v2784 = vpop.f32.mrb[0].mxu0
        %v2785 = vadd.f32 %v2510, %v2784
        %v2786 = vpop.f32.mrb[0].mxu0
        %v2787 = vadd.f32 %v2506, %v2786
        %v2788 = vpop.f32.mrb[0].mxu0
        %v2789 = vadd.f32 %v2510, %v2788
        %2790 = vmatprep.mubr.bf16.mxu0 0
        %2791 = vmatmul.mubr.bf16.gmra.mrb[0].mxu0 %v2458
        %v2792 = vpop.f32.mrb[0].mxu0
        %v2793 = vadd.f32 %v2506, %v2792
        %v2794 = vpop.f32.mrb[0].mxu0
        %v2795 = vadd.f32 %v2510, %v2794
        %v2796 = vpop.f32.mrb[0].mxu0
        %v2797 = vadd.f32 %v2506, %v2796
        %v2798 = vpop.f32.mrb[0].mxu0
        %v2799 = vadd.f32 %v2510, %v2798
        %2800 = vmatprep.mubr.bf16.mxu0 0
        %2801 = vmatmul.mubr.bf16.gmra.mrb[0].mxu0 %v2459
        %v2802 = vpop.f32.mrb[0].mxu0
        %v2803 = vadd.f32 %v2506, %v2802
        %v2804 = vpop.f32.mrb[0].mxu0
        %v2805 = vadd.f32 %v2510, %v2804
        %v2806 = vpop.f32.mrb[0].mxu0
        %v2807 = vadd.f32 %v2506, %v2806
        %v2808 = vpop.f32.mrb[0].mxu0
        %v2809 = vadd.f32 %v2510, %v2808
        %2810 = vmatprep.mubr.bf16.mxu0 0
        %2811 = vmatmul.mubr.bf16.gmra.mrb[0].mxu0 %v2460
        %v2812 = vpop.f32.mrb[0].mxu0
        %v2813 = vadd.f32 %v2506, %v2812
        %v2814 = vpop.f32.mrb[0].mxu0
        %v2815 = vadd.f32 %v2510, %v2814
        %v2816 = vpop.f32.mrb[0].mxu0
        %v2817 = vadd.f32 %v2506, %v2816
        %v2818 = vpop.f32.mrb[0].mxu0
        %v2819 = vadd.f32 %v2510, %v2818
        %2820 = vdwg.mxu0
        %v2821 = vmul.f32 %v2710, 0.5
        %v2822 = vmul.f32 %v2712, 0.5
        %v2823 = vmul.f32 %v2783, 0.5
        %v2824 = vmul.f32 %v2785, 0.5
        %v2825 = vmul.f32 %v2714, 0.5
        %v2826 = vmul.f32 %v2716, 0.5
        %v2827 = vmul.f32 %v2787, 0.5
        %v2828 = vmul.f32 %v2789, 0.5
        %v2829 = vmul.f32 %v2720, 0.5
        %v2830 = vmul.f32 %v2722, 0.5
        %v2831 = vmul.f32 %v2793, 0.5
        %v2832 = vmul.f32 %v2795, 0.5
        %v2833 = vmul.f32 %v2724, 0.5
        %v2834 = vmul.f32 %v2726, 0.5
        %v2835 = vmul.f32 %v2797, 0.5
        %v2836 = vmul.f32 %v2799, 0.5
        %v2837 = vmul.f32 %v2730, 0.5
        %v2838 = vmul.f32 %v2732, 0.5
        %v2839 = vmul.f32 %v2803, 0.5
        %v2840 = vmul.f32 %v2805, 0.5
        %v2841 = vmul.f32 %v2734, 0.5
        %v2842 = vmul.f32 %v2736, 0.5
        %v2843 = vmul.f32 %v2807, 0.5
        %v2844 = vmul.f32 %v2809, 0.5
        %v2845 = vmul.f32 %v2740, 0.5
        %v2846 = vmul.f32 %v2742, 0.5
        %v2847 = vmul.f32 %v2813, 0.5
        %v2848 = vmul.f32 %v2815, 0.5
        %v2849 = vmul.f32 %v2744, 0.5
        %v2850 = vmul.f32 %v2746, 0.5
        %v2851 = vmul.f32 %v2817, 0.5
        %v2852 = vmul.f32 %v2819, 0.5
        %v2853 = vmul.f32 %v2710, 0.044715
        %v2854 = vmul.f32 %v2712, 0.044715
        %v2855 = vmul.f32 %v2783, 0.044715
        %v2856 = vmul.f32 %v2785, 0.044715
        %v2857 = vmul.f32 %v2714, 0.044715
        %v2858 = vmul.f32 %v2716, 0.044715
        %v2859 = vmul.f32 %v2787, 0.044715
        %v2860 = vmul.f32 %v2789, 0.044715
        %v2861 = vmul.f32 %v2720, 0.044715
        %v2862 = vmul.f32 %v2722, 0.044715
        %v2863 = vmul.f32 %v2793, 0.044715
        %v2864 = vmul.f32 %v2795, 0.044715
        %v2865 = vmul.f32 %v2724, 0.044715
        %v2866 = vmul.f32 %v2726, 0.044715
        %v2867 = vmul.f32 %v2797, 0.044715
        %v2868 = vmul.f32 %v2799, 0.044715
        %v2869 = vmul.f32 %v2730, 0.044715
        %v2870 = vmul.f32 %v2732, 0.044715
        %v2871 = vmul.f32 %v2803, 0.044715
        %v2872 = vmul.f32 %v2805, 0.044715
        %v2873 = vmul.f32 %v2734, 0.044715
        %v2874 = vmul.f32 %v2736, 0.044715
        %v2875 = vmul.f32 %v2807, 0.044715
        %v2876 = vmul.f32 %v2809, 0.044715
        %v2877 = vmul.f32 %v2740, 0.044715
        %v2878 = vmul.f32 %v2742, 0.044715
        %v2879 = vmul.f32 %v2813, 0.044715
        %v2880 = vmul.f32 %v2815, 0.044715
        %v2881 = vmul.f32 %v2744, 0.044715
        %v2882 = vmul.f32 %v2746, 0.044715
        %v2883 = vmul.f32 %v2817, 0.044715
        %v2884 = vmul.f32 %v2819, 0.044715
        %v2885 = vmul.f32 %v2853, %v2710
        %v2886 = vmul.f32 %v2854, %v2712
        %v2887 = vmul.f32 %v2855, %v2783
        %v2888 = vmul.f32 %v2856, %v2785
        %v2889 = vmul.f32 %v2857, %v2714
        %v2890 = vmul.f32 %v2858, %v2716
        %v2891 = vmul.f32 %v2859, %v2787
        %v2892 = vmul.f32 %v2860, %v2789
        %v2893 = vmul.f32 %v2861, %v2720
        %v2894 = vmul.f32 %v2862, %v2722
        %v2895 = vmul.f32 %v2863, %v2793
        %v2896 = vmul.f32 %v2864, %v2795
        %v2897 = vmul.f32 %v2865, %v2724
        %v2898 = vmul.f32 %v2866, %v2726
        %v2899 = vmul.f32 %v2867, %v2797
        %v2900 = vmul.f32 %v2868, %v2799
        %v2901 = vmul.f32 %v2869, %v2730
        %v2902 = vmul.f32 %v2870, %v2732
        %v2903 = vmul.f32 %v2871, %v2803
        %v2904 = vmul.f32 %v2872, %v2805
        %v2905 = vmul.f32 %v2873, %v2734
        %v2906 = vmul.f32 %v2874, %v2736
        %v2907 = vmul.f32 %v2875, %v2807
        %v2908 = vmul.f32 %v2876, %v2809
        %v2909 = vmul.f32 %v2877, %v2740
        %v2910 = vmul.f32 %v2878, %v2742
        %v2911 = vmul.f32 %v2879, %v2813
        %v2912 = vmul.f32 %v2880, %v2815
        %v2913 = vmul.f32 %v2881, %v2744
        %v2914 = vmul.f32 %v2882, %v2746
        %v2915 = vmul.f32 %v2883, %v2817
        %v2916 = vmul.f32 %v2884, %v2819
        %v2917 = vmul.f32 %v2885, %v2710
        %v2918 = vmul.f32 %v2886, %v2712
        %v2919 = vmul.f32 %v2887, %v2783
        %v2920 = vmul.f32 %v2888, %v2785
        %v2921 = vmul.f32 %v2889, %v2714
        %v2922 = vmul.f32 %v2890, %v2716
        %v2923 = vmul.f32 %v2891, %v2787
        %v2924 = vmul.f32 %v2892, %v2789
        %v2925 = vmul.f32 %v2893, %v2720
        %v2926 = vmul.f32 %v2894, %v2722
        %v2927 = vmul.f32 %v2895, %v2793
        %v2928 = vmul.f32 %v2896, %v2795
        %v2929 = vmul.f32 %v2897, %v2724
        %v2930 = vmul.f32 %v2898, %v2726
        %v2931 = vmul.f32 %v2899, %v2797
        %v2932 = vmul.f32 %v2900, %v2799
        %v2933 = vmul.f32 %v2901, %v2730
        %v2934 = vmul.f32 %v2902, %v2732
        %v2935 = vmul.f32 %v2903, %v2803
        %v2936 = vmul.f32 %v2904, %v2805
        %v2937 = vmul.f32 %v2905, %v2734
        %v2938 = vmul.f32 %v2906, %v2736
        %v2939 = vmul.f32 %v2907, %v2807
        %v2940 = vmul.f32 %v2908, %v2809
        %v2941 = vmul.f32 %v2909, %v2740
        %v2942 = vmul.f32 %v2910, %v2742
        %v2943 = vmul.f32 %v2911, %v2813
        %v2944 = vmul.f32 %v2912, %v2815
        %v2945 = vmul.f32 %v2913, %v2744
        %v2946 = vmul.f32 %v2914, %v2746
        %v2947 = vmul.f32 %v2915, %v2817
        %v2948 = vmul.f32 %v2916, %v2819
        %v2949 = vadd.f32 %v2710, %v2917
        %v2950 = vadd.f32 %v2712, %v2918
        %v2951 = vadd.f32 %v2783, %v2919
        %v2952 = vadd.f32 %v2785, %v2920
        %v2953 = vadd.f32 %v2714, %v2921
        %v2954 = vadd.f32 %v2716, %v2922
        %v2955 = vadd.f32 %v2787, %v2923
        %v2956 = vadd.f32 %v2789, %v2924
        %v2957 = vadd.f32 %v2720, %v2925
        %v2958 = vadd.f32 %v2722, %v2926
        %v2959 = vadd.f32 %v2793, %v2927
        %v2960 = vadd.f32 %v2795, %v2928
        %v2961 = vadd.f32 %v2724, %v2929
        %v2962 = vadd.f32 %v2726, %v2930
        %v2963 = vadd.f32 %v2797, %v2931
        %v2964 = vadd.f32 %v2799, %v2932
        %v2965 = vadd.f32 %v2730, %v2933
        %v2966 = vadd.f32 %v2732, %v2934
        %v2967 = vadd.f32 %v2803, %v2935
        %v2968 = vadd.f32 %v2805, %v2936
        %v2969 = vadd.f32 %v2734, %v2937
        %v2970 = vadd.f32 %v2736, %v2938
        %v2971 = vadd.f32 %v2807, %v2939
        %v2972 = vadd.f32 %v2809, %v2940
        %v2973 = vadd.f32 %v2740, %v2941
        %v2974 = vadd.f32 %v2742, %v2942
        %v2975 = vadd.f32 %v2813, %v2943
        %v2976 = vadd.f32 %v2815, %v2944
        %v2977 = vadd.f32 %v2744, %v2945
        %v2978 = vadd.f32 %v2746, %v2946
        %v2979 = vadd.f32 %v2817, %v2947
        %v2980 = vadd.f32 %v2819, %v2948
        %v2981 = vmul.f32 %v2949, 0.7978846
        %v2982 = vmul.f32 %v2950, 0.7978846
        %v2983 = vmul.f32 %v2951, 0.7978846
        %v2984 = vmul.f32 %v2952, 0.7978846
        %v2985 = vmul.f32 %v2953, 0.7978846
        %v2986 = vmul.f32 %v2954, 0.7978846
        %v2987 = vmul.f32 %v2955, 0.7978846
        %v2988 = vmul.f32 %v2956, 0.7978846
        %v2989 = vmul.f32 %v2957, 0.7978846
        %v2990 = vmul.f32 %v2958, 0.7978846
        %v2991 = vmul.f32 %v2959, 0.7978846
        %v2992 = vmul.f32 %v2960, 0.7978846
        %v2993 = vmul.f32 %v2961, 0.7978846
        %v2994 = vmul.f32 %v2962, 0.7978846
        %v2995 = vmul.f32 %v2963, 0.7978846
        %v2996 = vmul.f32 %v2964, 0.7978846
        %v2997 = vmul.f32 %v2965, 0.7978846
        %v2998 = vmul.f32 %v2966, 0.7978846
        %v2999 = vmul.f32 %v2967, 0.7978846
        %v3000 = vmul.f32 %v2968, 0.7978846
        %v3001 = vmul.f32 %v2969, 0.7978846
        %v3002 = vmul.f32 %v2970, 0.7978846
        %v3003 = vmul.f32 %v2971, 0.7978846
        %v3004 = vmul.f32 %v2972, 0.7978846
        %v3005 = vmul.f32 %v2973, 0.7978846
        %v3006 = vmul.f32 %v2974, 0.7978846
        %v3007 = vmul.f32 %v2975, 0.7978846
        %v3008 = vmul.f32 %v2976, 0.7978846
        %v3009 = vmul.f32 %v2977, 0.7978846
        %v3010 = vmul.f32 %v2978, 0.7978846
        %v3011 = vmul.f32 %v2979, 0.7978846
        %v3012 = vmul.f32 %v2980, 0.7978846
        %v3013 = vtanh.pop %v2981
        %v3014 = vtanh.pop %v2982
        %v3015 = vtanh.pop %v2983
        %v3016 = vtanh.pop %v2984
        %v3017 = vtanh.pop %v2985
        %v3018 = vtanh.pop %v2986
        %v3019 = vtanh.pop %v2987
        %v3020 = vtanh.pop %v2988
        %v3021 = vtanh.pop %v2989
        %v3022 = vtanh.pop %v2990
        %v3023 = vtanh.pop %v2991
        %v3024 = vtanh.pop %v2992
        %v3025 = vtanh.pop %v2993
        %v3026 = vtanh.pop %v2994
        %v3027 = vtanh.pop %v2995
        %v3028 = vtanh.pop %v2996
        %v3029 = vtanh.pop %v2997
        %v3030 = vtanh.pop %v2998
        %v3031 = vtanh.pop %v2999
        %v3032 = vtanh.pop %v3000
        %v3033 = vtanh.pop %v3001
        %v3034 = vtanh.pop %v3002
        %v3035 = vtanh.pop %v3003
        %v3036 = vtanh.pop %v3004
        %v3037 = vtanh.pop %v3005
        %v3038 = vtanh.pop %v3006
        %v3039 = vtanh.pop %v3007
        %v3040 = vtanh.pop %v3008
        %v3041 = vtanh.pop %v3009
        %v3042 = vtanh.pop %v3010
        %v3043 = vtanh.pop %v3011
        %v3044 = vtanh.pop %v3012
        %v3045 = vadd.f32 %v3013, 1.0
        %v3046 = vadd.f32 %v3014, 1.0
        %v3047 = vadd.f32 %v3015, 1.0
        %v3048 = vadd.f32 %v3016, 1.0
        %v3049 = vadd.f32 %v3017, 1.0
        %v3050 = vadd.f32 %v3018, 1.0
        %v3051 = vadd.f32 %v3019, 1.0
        %v3052 = vadd.f32 %v3020, 1.0
        %v3053 = vadd.f32 %v3021, 1.0
        %v3054 = vadd.f32 %v3022, 1.0
        %v3055 = vadd.f32 %v3023, 1.0
        %v3056 = vadd.f32 %v3024, 1.0
        %v3057 = vadd.f32 %v3025, 1.0
        %v3058 = vadd.f32 %v3026, 1.0
        %v3059 = vadd.f32 %v3027, 1.0
        %v3060 = vadd.f32 %v3028, 1.0
        %v3061 = vadd.f32 %v3029, 1.0
        %v3062 = vadd.f32 %v3030, 1.0
        %v3063 = vadd.f32 %v3031, 1.0
        %v3064 = vadd.f32 %v3032, 1.0
        %v3065 = vadd.f32 %v3033, 1.0
        %v3066 = vadd.f32 %v3034, 1.0
        %v3067 = vadd.f32 %v3035, 1.0
        %v3068 = vadd.f32 %v3036, 1.0
        %v3069 = vadd.f32 %v3037, 1.0
        %v3070 = vadd.f32 %v3038, 1.0
        %v3071 = vadd.f32 %v3039, 1.0
        %v3072 = vadd.f32 %v3040, 1.0
        %v3073 = vadd.f32 %v3041, 1.0
        %v3074 = vadd.f32 %v3042, 1.0
        %v3075 = vadd.f32 %v3043, 1.0
        %v3076 = vadd.f32 %v3044, 1.0
        %v3077 = vmul.f32 %v2821, %v3045
        %v3078 = vmul.f32 %v2822, %v3046
        %v3079 = vmul.f32 %v2823, %v3047
        %v3080 = vmul.f32 %v2824, %v3048
        %v3081 = vmul.f32 %v2825, %v3049
        %v3082 = vmul.f32 %v2826, %v3050
        %v3083 = vmul.f32 %v2827, %v3051
        %v3084 = vmul.f32 %v2828, %v3052
        %v3085 = vmul.f32 %v2829, %v3053
        %v3086 = vmul.f32 %v2830, %v3054
        %v3087 = vmul.f32 %v2831, %v3055
        %v3088 = vmul.f32 %v2832, %v3056
        %v3089 = vmul.f32 %v2833, %v3057
        %v3090 = vmul.f32 %v2834, %v3058
        %v3091 = vmul.f32 %v2835, %v3059
        %v3092 = vmul.f32 %v2836, %v3060
        %v3093 = vmul.f32 %v2837, %v3061
        %v3094 = vmul.f32 %v2838, %v3062
        %v3095 = vmul.f32 %v2839, %v3063
        %v3096 = vmul.f32 %v2840, %v3064
        %v3097 = vmul.f32 %v2841, %v3065
        %v3098 = vmul.f32 %v2842, %v3066
        %v3099 = vmul.f32 %v2843, %v3067
        %v3100 = vmul.f32 %v2844, %v3068
        %v3101 = vmul.f32 %v2845, %v3069
        %v3102 = vmul.f32 %v2846, %v3070
        %v3103 = vmul.f32 %v2847, %v3071
        %v3104 = vmul.f32 %v2848, %v3072
        %v3105 = vmul.f32 %v2849, %v3073
        %v3106 = vmul.f32 %v2850, %v3074
        %v3107 = vmul.f32 %v2851, %v3075
        %v3108 = vmul.f32 %v2852, %v3076
        %v3109 = vpack.c.bf16 %v3081, %v3077
        %v3110 = vpack.c.bf16 %v3082, %v3078
        %v3111 = vpack.c.bf16 %v3083, %v3079
        %v3112 = vpack.c.bf16 %v3084, %v3080
        %v3113 = vpack.c.bf16 %v3089, %v3085
        %v3114 = vpack.c.bf16 %v3090, %v3086
        %v3115 = vpack.c.bf16 %v3091, %v3087
        %v3116 = vpack.c.bf16 %v3092, %v3088
        %v3117 = vpack.c.bf16 %v3097, %v3093
        %v3118 = vpack.c.bf16 %v3098, %v3094
        %v3119 = vpack.c.bf16 %v3099, %v3095
        %v3120 = vpack.c.bf16 %v3100, %v3096
        %v3121 = vpack.c.bf16 %v3105, %v3101
        %v3122 = vpack.c.bf16 %v3106, %v3102
        %v3123 = vpack.c.bf16 %v3107, %v3103
        %v3124 = vpack.c.bf16 %v3108, %v3104
        %v3125 = vld [vmem:[%s737] sm:$0xf]
        %v3126 = vld [vmem:[%s737 + $0x4] sm:$0xf]
        %v3127 = vld [vmem:[%s737 + $0x8] sm:$0xf]
        %v3128 = vld [vmem:[%s737 + $0xc] sm:$0xf]
        %v3129 = vld [vmem:[%s737 + $0x10] sm:$0xf]
        %v3130 = vld [vmem:[%s737 + $0x14] sm:$0xf]
        %v3131 = vld [vmem:[%s737 + $0x18] sm:$0xf]
        %v3132 = vld [vmem:[%s737 + $0x1c] sm:$0xf]
        %v3133 = vld [vmem:[%s737 + $0x20] sm:$0xf]
        %v3134 = vld [vmem:[%s737 + $0x24] sm:$0xf]
        %v3135 = vld [vmem:[%s737 + $0x28] sm:$0xf]
        %v3136 = vld [vmem:[%s737 + $0x2c] sm:$0xf]
        %v3137 = vld [vmem:[%s737 + $0x30] sm:$0xf]
        %v3138 = vld [vmem:[%s737 + $0x34] sm:$0xf]
        %v3139 = vld [vmem:[%s737 + $0x38] sm:$0xf]
        %v3140 = vld [vmem:[%s737 + $0x3c] sm:$0xf]
        %v3141 = vld [vmem:[%s737 + $0x40] sm:$0xf]
        %v3142 = vld [vmem:[%s737 + $0x44] sm:$0xf]
        %v3143 = vld [vmem:[%s737 + $0x48] sm:$0xf]
        %v3144 = vld [vmem:[%s737 + $0x4c] sm:$0xf]
        %v3145 = vld [vmem:[%s737 + $0x50] sm:$0xf]
        %v3146 = vld [vmem:[%s737 + $0x54] sm:$0xf]
        %v3147 = vld [vmem:[%s737 + $0x58] sm:$0xf]
        %v3148 = vld [vmem:[%s737 + $0x5c] sm:$0xf]
        %v3149 = vld [vmem:[%s737 + $0x60] sm:$0xf]
        %v3150 = vld [vmem:[%s737 + $0x64] sm:$0xf]
        %v3151 = vld [vmem:[%s737 + $0x68] sm:$0xf]
        %v3152 = vld [vmem:[%s737 + $0x6c] sm:$0xf]
        %v3153 = vld [vmem:[%s737 + $0x70] sm:$0xf]
        %v3154 = vld [vmem:[%s737 + $0x74] sm:$0xf]
        %v3155 = vld [vmem:[%s737 + $0x78] sm:$0xf]
        %v3156 = vld [vmem:[%s737 + $0x7c] sm:$0xf]
        %v3157 = vld [vmem:[%s737 + $0x80] sm:$0xf]
        %v3158 = vld [vmem:[%s737 + $0x84] sm:$0xf]
        %v3159 = vld [vmem:[%s737 + $0x88] sm:$0xf]
        %v3160 = vld [vmem:[%s737 + $0x8c] sm:$0xf]
        %v3161 = vld [vmem:[%s737 + $0x90] sm:$0xf]
        %v3162 = vld [vmem:[%s737 + $0x94] sm:$0xf]
        %v3163 = vld [vmem:[%s737 + $0x98] sm:$0xf]
        %v3164 = vld [vmem:[%s737 + $0x9c] sm:$0xf]
        %v3165 = vld [vmem:[%s737 + $0xa0] sm:$0xf]
        %v3166 = vld [vmem:[%s737 + $0xa4] sm:$0xf]
        %v3167 = vld [vmem:[%s737 + $0xa8] sm:$0xf]
        %v3168 = vld [vmem:[%s737 + $0xac] sm:$0xf]
        %v3169 = vld [vmem:[%s737 + $0xb0] sm:$0xf]
        %v3170 = vld [vmem:[%s737 + $0xb4] sm:$0xf]
        %v3171 = vld [vmem:[%s737 + $0xb8] sm:$0xf]
        %v3172 = vld [vmem:[%s737 + $0xbc] sm:$0xf]
        %v3173 = vld [vmem:[%s737 + $0xc0] sm:$0xf]
        %v3174 = vld [vmem:[%s737 + $0xc4] sm:$0xf]
        %v3175 = vld [vmem:[%s737 + $0xc8] sm:$0xf]
        %v3176 = vld [vmem:[%s737 + $0xcc] sm:$0xf]
        %v3177 = vld [vmem:[%s737 + $0xd0] sm:$0xf]
        %v3178 = vld [vmem:[%s737 + $0xd4] sm:$0xf]
        %v3179 = vld [vmem:[%s737 + $0xd8] sm:$0xf]
        %v3180 = vld [vmem:[%s737 + $0xdc] sm:$0xf]
        %v3181 = vld [vmem:[%s737 + $0xe0] sm:$0xf]
        %v3182 = vld [vmem:[%s737 + $0xe4] sm:$0xf]
        %v3183 = vld [vmem:[%s737 + $0xe8] sm:$0xf]
        %v3184 = vld [vmem:[%s737 + $0xec] sm:$0xf]
        %v3185 = vld [vmem:[%s737 + $0xf0] sm:$0xf]
        %v3186 = vld [vmem:[%s737 + $0xf4] sm:$0xf]
        %v3187 = vld [vmem:[%s737 + $0xf8] sm:$0xf]
        %v3188 = vld [vmem:[%s737 + $0xfc] sm:$0xf]
        %v3189 = vld [vmem:[%s740] sm:$0x1]
        %v3191 = vlaneseq
        %v3192 = vshrl.u32 %v3191, 7
        %v3193 = vsub.s32 0, %v3192
        %v3194 = vrot.slane %v3189, %v3193
        %v3260 = vunpack.c.l.b16 %v3125
        %v3261 = vunpack.c.l.b16 %v3126
        %v3262 = vunpack.c.l.b16 %v3127
        %v3263 = vunpack.c.l.b16 %v3128
        %v3264 = vunpack.c.l.b16 %v3129
        %v3265 = vunpack.c.l.b16 %v3130
        %v3266 = vunpack.c.l.b16 %v3131
        %v3267 = vunpack.c.l.b16 %v3132
        %v3268 = vunpack.c.l.b16 %v3133
        %v3269 = vunpack.c.l.b16 %v3134
        %v3270 = vunpack.c.l.b16 %v3135
        %v3271 = vunpack.c.l.b16 %v3136
        %v3272 = vunpack.c.l.b16 %v3137
        %v3273 = vunpack.c.l.b16 %v3138
        %v3274 = vunpack.c.l.b16 %v3139
        %v3275 = vunpack.c.l.b16 %v3140
        %v3276 = vunpack.c.l.b16 %v3141
        %v3277 = vunpack.c.l.b16 %v3142
        %v3278 = vunpack.c.l.b16 %v3143
        %v3279 = vunpack.c.l.b16 %v3144
        %v3280 = vunpack.c.l.b16 %v3145
        %v3281 = vunpack.c.l.b16 %v3146
        %v3282 = vunpack.c.l.b16 %v3147
        %v3283 = vunpack.c.l.b16 %v3148
        %v3284 = vunpack.c.l.b16 %v3149
        %v3285 = vunpack.c.l.b16 %v3150
        %v3286 = vunpack.c.l.b16 %v3151
        %v3287 = vunpack.c.l.b16 %v3152
        %v3288 = vunpack.c.l.b16 %v3153
        %v3289 = vunpack.c.l.b16 %v3154
        %v3290 = vunpack.c.l.b16 %v3155
        %v3291 = vunpack.c.l.b16 %v3156
        %v3292 = vunpack.c.l.b16 %v3157
        %v3293 = vunpack.c.l.b16 %v3158
        %v3294 = vunpack.c.l.b16 %v3159
        %v3295 = vunpack.c.l.b16 %v3160
        %v3296 = vunpack.c.l.b16 %v3161
        %v3297 = vunpack.c.l.b16 %v3162
        %v3298 = vunpack.c.l.b16 %v3163
        %v3299 = vunpack.c.l.b16 %v3164
        %v3300 = vunpack.c.l.b16 %v3165
        %v3301 = vunpack.c.l.b16 %v3166
        %v3302 = vunpack.c.l.b16 %v3167
        %v3303 = vunpack.c.l.b16 %v3168
        %v3304 = vunpack.c.l.b16 %v3169
        %v3305 = vunpack.c.l.b16 %v3170
        %v3306 = vunpack.c.l.b16 %v3171
        %v3307 = vunpack.c.l.b16 %v3172
        %v3308 = vunpack.c.l.b16 %v3173
        %v3309 = vunpack.c.l.b16 %v3174
        %v3310 = vunpack.c.l.b16 %v3175
        %v3311 = vunpack.c.l.b16 %v3176
        %v3312 = vunpack.c.l.b16 %v3177
        %v3313 = vunpack.c.l.b16 %v3178
        %v3314 = vunpack.c.l.b16 %v3179
        %v3315 = vunpack.c.l.b16 %v3180
        %v3316 = vunpack.c.l.b16 %v3181
        %v3317 = vunpack.c.l.b16 %v3182
        %v3318 = vunpack.c.l.b16 %v3183
        %v3319 = vunpack.c.l.b16 %v3184
        %v3320 = vunpack.c.l.b16 %v3185
        %v3321 = vunpack.c.l.b16 %v3186
        %v3322 = vunpack.c.l.b16 %v3187
        %v3323 = vunpack.c.l.b16 %v3188
        %v3324 = vpack.c.b16 %v3261, %v3260
        %v3325 = vpack.c.b16 %v3263, %v3262
        %v3326 = vpack.c.b16 %v3265, %v3264
        %v3327 = vpack.c.b16 %v3267, %v3266
        %v3328 = vpack.c.b16 %v3269, %v3268
        %v3329 = vpack.c.b16 %v3271, %v3270
        %v3330 = vpack.c.b16 %v3273, %v3272
        %v3331 = vpack.c.b16 %v3275, %v3274
        %v3332 = vpack.c.b16 %v3277, %v3276
        %v3333 = vpack.c.b16 %v3279, %v3278
        %v3334 = vpack.c.b16 %v3281, %v3280
        %v3335 = vpack.c.b16 %v3283, %v3282
        %v3336 = vpack.c.b16 %v3285, %v3284
        %v3337 = vpack.c.b16 %v3287, %v3286
        %v3338 = vpack.c.b16 %v3289, %v3288
        %v3339 = vpack.c.b16 %v3291, %v3290
        %v3340 = vpack.c.b16 %v3293, %v3292
        %v3341 = vpack.c.b16 %v3295, %v3294
        %v3342 = vpack.c.b16 %v3297, %v3296
        %v3343 = vpack.c.b16 %v3299, %v3298
        %v3344 = vpack.c.b16 %v3301, %v3300
        %v3345 = vpack.c.b16 %v3303, %v3302
        %v3346 = vpack.c.b16 %v3305, %v3304
        %v3347 = vpack.c.b16 %v3307, %v3306
        %v3348 = vpack.c.b16 %v3309, %v3308
        %v3349 = vpack.c.b16 %v3311, %v3310
        %v3350 = vpack.c.b16 %v3313, %v3312
        %v3351 = vpack.c.b16 %v3315, %v3314
        %v3352 = vpack.c.b16 %v3317, %v3316
        %v3353 = vpack.c.b16 %v3319, %v3318
        %v3354 = vpack.c.b16 %v3321, %v3320
        %v3355 = vpack.c.b16 %v3323, %v3322
        %3388 = vmatprep.subr.bf16.mxu0 0
        %3389 = vmatpush1.bf16.msra.mxu0 %v3324
        %3390 = vmatprep.subr.bf16.mxu0 0
        %3391 = vmatpush1.bf16.msra.mxu0 %v3325
        %3392 = vmatprep.subr.bf16.mxu0 0
        %3393 = vmatpush1.bf16.msra.mxu0 %v3326
        %3394 = vmatprep.subr.bf16.mxu0 0
        %3395 = vmatpush1.bf16.msra.mxu0 %v3327
        %3396 = vmatprep.subr.bf16.mxu0 0
        %3397 = vmatpush1.bf16.msra.mxu0 %v3328
        %3398 = vmatprep.subr.bf16.mxu0 0
        %3399 = vmatpush1.bf16.msra.mxu0 %v3329
        %3400 = vmatprep.subr.bf16.mxu0 0
        %3401 = vmatpush1.bf16.msra.mxu0 %v3330
        %3402 = vmatprep.subr.bf16.mxu0 0
        %3403 = vmatpush1.bf16.msra.mxu0 %v3331
        %3404 = vmatprep.subr.bf16.mxu0 0
        %3405 = vmatpush1.bf16.msra.mxu0 %v3332
        %3406 = vmatprep.subr.bf16.mxu0 0
        %3407 = vmatpush1.bf16.msra.mxu0 %v3333
        %3408 = vmatprep.subr.bf16.mxu0 0
        %3409 = vmatpush1.bf16.msra.mxu0 %v3334
        %3410 = vmatprep.subr.bf16.mxu0 0
        %3411 = vmatpush1.bf16.msra.mxu0 %v3335
        %3412 = vmatprep.subr.bf16.mxu0 0
        %3413 = vmatpush1.bf16.msra.mxu0 %v3336
        %3414 = vmatprep.subr.bf16.mxu0 0
        %3415 = vmatpush1.bf16.msra.mxu0 %v3337
        %3416 = vmatprep.subr.bf16.mxu0 0
        %3417 = vmatpush1.bf16.msra.mxu0 %v3338
        %3418 = vmatprep.subr.bf16.mxu0 0
        %3419 = vmatpush1.bf16.msra.mxu0 %v3339
        %3420 = vmatprep.mubr.bf16.mxu0 %v3110
        %3421 = vmatmul.mubr.bf16.gmra.mrb[0].mxu0 %v3109
        %v3422 = vpop.f32.mrb[0].mxu0
        %v3423 = vadd.f32 %v3194, %v3422
        %v3424 = vpop.f32.mrb[0].mxu0
        %v3425 = vpop.f32.mrb[0].mxu0
        %v3426 = vadd.f32 %v3194, %v3425
        %v3427 = vpop.f32.mrb[0].mxu0
        %3428 = vmatprep.mubr.bf16.mxu0 %v3114
        %3429 = vmatmul.mubr.bf16.gmra.mrb[0].mxu0 %v3113
        %v3430 = vpop.f32.mrb[0].mxu0
        %v3431 = vadd.f32 %v3194, %v3430
        %v3432 = vpop.f32.mrb[0].mxu0
        %v3433 = vpop.f32.mrb[0].mxu0
        %v3434 = vadd.f32 %v3194, %v3433
        %v3435 = vpop.f32.mrb[0].mxu0
        %3436 = vmatprep.mubr.bf16.mxu0 %v3118
        %3437 = vmatmul.mubr.bf16.gmra.mrb[0].mxu0 %v3117
        %v3438 = vpop.f32.mrb[0].mxu0
        %v3439 = vadd.f32 %v3194, %v3438
        %v3440 = vpop.f32.mrb[0].mxu0
        %v3441 = vpop.f32.mrb[0].mxu0
        %v3442 = vadd.f32 %v3194, %v3441
        %v3443 = vpop.f32.mrb[0].mxu0
        %3444 = vmatprep.mubr.bf16.mxu0 %v3122
        %3445 = vmatmul.mubr.bf16.gmra.mrb[0].mxu0 %v3121
        %v3446 = vpop.f32.mrb[0].mxu0
        %v3447 = vadd.f32 %v3194, %v3446
        %v3448 = vpop.f32.mrb[0].mxu0
        %v3449 = vpop.f32.mrb[0].mxu0
        %v3450 = vadd.f32 %v3194, %v3449
        %v3451 = vpop.f32.mrb[0].mxu0
        %3452 = vdwg.mxu0
        %3453 = vmatprep.subr.bf16.mxu0 0
        %3454 = vmatpush1.bf16.msra.mxu0 %v3340
        %3455 = vmatprep.subr.bf16.mxu0 0
        %3456 = vmatpush1.bf16.msra.mxu0 %v3341
        %3457 = vmatprep.subr.bf16.mxu0 0
        %3458 = vmatpush1.bf16.msra.mxu0 %v3342
        %3459 = vmatprep.subr.bf16.mxu0 0
        %3460 = vmatpush1.bf16.msra.mxu0 %v3343
        %3461 = vmatprep.subr.bf16.mxu0 0
        %3462 = vmatpush1.bf16.msra.mxu0 %v3344
        %3463 = vmatprep.subr.bf16.mxu0 0
        %3464 = vmatpush1.bf16.msra.mxu0 %v3345
        %3465 = vmatprep.subr.bf16.mxu0 0
        %3466 = vmatpush1.bf16.msra.mxu0 %v3346
        %3467 = vmatprep.subr.bf16.mxu0 0
        %3468 = vmatpush1.bf16.msra.mxu0 %v3347
        %3469 = vmatprep.subr.bf16.mxu0 0
        %3470 = vmatpush1.bf16.msra.mxu0 %v3348
        %3471 = vmatprep.subr.bf16.mxu0 0
        %3472 = vmatpush1.bf16.msra.mxu0 %v3349
        %3473 = vmatprep.subr.bf16.mxu0 0
        %3474 = vmatpush1.bf16.msra.mxu0 %v3350
        %3475 = vmatprep.subr.bf16.mxu0 0
        %3476 = vmatpush1.bf16.msra.mxu0 %v3351
        %3477 = vmatprep.subr.bf16.mxu0 0
        %3478 = vmatpush1.bf16.msra.mxu0 %v3352
        %3479 = vmatprep.subr.bf16.mxu0 0
        %3480 = vmatpush1.bf16.msra.mxu0 %v3353
        %3481 = vmatprep.subr.bf16.mxu0 0
        %3482 = vmatpush1.bf16.msra.mxu0 %v3354
        %3483 = vmatprep.subr.bf16.mxu0 0
        %3484 = vmatpush1.bf16.msra.mxu0 %v3355
        %3485 = vmatprep.mubr.bf16.mxu0 %v3112
        %3486 = vmatmul.mubr.bf16.gmra.mrb[0].mxu0 %v3111
        %v3487 = vpop.f32.mrb[0].mxu0
        %v3488 = vadd.f32 %v3423, %v3487
        %v3489 = vpop.f32.mrb[0].mxu0
        %v3490 = vpop.f32.mrb[0].mxu0
        %v3491 = vadd.f32 %v3426, %v3490
        %v3492 = vpop.f32.mrb[0].mxu0
        %3493 = vmatprep.mubr.bf16.mxu0 %v3116
        %3494 = vmatmul.mubr.bf16.gmra.mrb[0].mxu0 %v3115
        %v3495 = vpop.f32.mrb[0].mxu0
        %v3496 = vadd.f32 %v3431, %v3495
        %v3497 = vpop.f32.mrb[0].mxu0
        %v3498 = vpop.f32.mrb[0].mxu0
        %v3499 = vadd.f32 %v3434, %v3498
        %v3500 = vpop.f32.mrb[0].mxu0
        %3501 = vmatprep.mubr.bf16.mxu0 %v3120
        %3502 = vmatmul.mubr.bf16.gmra.mrb[0].mxu0 %v3119
        %v3503 = vpop.f32.mrb[0].mxu0
        %v3504 = vadd.f32 %v3439, %v3503
        %v3505 = vpop.f32.mrb[0].mxu0
        %v3506 = vpop.f32.mrb[0].mxu0
        %v3507 = vadd.f32 %v3442, %v3506
        %v3508 = vpop.f32.mrb[0].mxu0
        %3509 = vmatprep.mubr.bf16.mxu0 %v3124
        %3510 = vmatmul.mubr.bf16.gmra.mrb[0].mxu0 %v3123
        %v3511 = vpop.f32.mrb[0].mxu0
        %v3512 = vadd.f32 %v3447, %v3511
        %v3513 = vpop.f32.mrb[0].mxu0
        %v3514 = vpop.f32.mrb[0].mxu0
        %v3515 = vadd.f32 %v3450, %v3514
        %v3516 = vpop.f32.mrb[0].mxu0
        %3517 = vdwg.mxu0
        %v3518 = vadd.f32 %v3488, %v2449
        %v3519 = vadd.f32 %v3491, %v2450
        %v3520 = vadd.f32 %v3496, %v2451
        %v3521 = vadd.f32 %v3499, %v2452
        %v3522 = vadd.f32 %v3504, %v2453
        %v3523 = vadd.f32 %v3507, %v2454
        %v3524 = vadd.f32 %v3512, %v2455
        %v3525 = vadd.f32 %v3515, %v2456
        %v3526 = vld [vmem:[%s743] sm:$0x1]
        %v3527 = vld [vmem:[%s746] sm:$0x1]
        %3528 = vadd.xlane.f32.xlu0 %v3518
        %v3529 = vpop.xlane.xlu0 %3528
        %3530 = vadd.xlane.f32.xlu0 %v3519
        %v3531 = vpop.xlane.xlu0 %3530
        %3532 = vadd.xlane.f32.xlu0 %v3520
        %v3533 = vpop.xlane.xlu0 %3532
        %3534 = vadd.xlane.f32.xlu0 %v3521
        %v3535 = vpop.xlane.xlu0 %3534
        %3536 = vadd.xlane.f32.xlu0 %v3522
        %v3537 = vpop.xlane.xlu0 %3536
        %3538 = vadd.xlane.f32.xlu0 %v3523
        %v3539 = vpop.xlane.xlu0 %3538
        %3540 = vadd.xlane.f32.xlu0 %v3524
        %v3541 = vpop.xlane.xlu0 %3540
        %3542 = vadd.xlane.f32.xlu0 %v3525
        %v3543 = vpop.xlane.xlu0 %3542
        %v3544 = vmul.f32 %v3529, %v2356
        %v3545 = vmul.f32 %v3531, %v2356
        %v3546 = vmul.f32 %v3533, %v2356
        %v3547 = vmul.f32 %v3535, %v2356
        %v3548 = vmul.f32 %v3537, %v2356
        %v3549 = vmul.f32 %v3539, %v2356
        %v3550 = vmul.f32 %v3541, %v2356
        %v3551 = vmul.f32 %v3543, %v2356
        %v3552 = vsub.f32 %v3518, %v3544
        %v3553 = vsub.f32 %v3519, %v3545
        %v3554 = vsub.f32 %v3520, %v3546
        %v3555 = vsub.f32 %v3521, %v3547
        %v3556 = vsub.f32 %v3522, %v3548
        %v3557 = vsub.f32 %v3523, %v3549
        %v3558 = vsub.f32 %v3524, %v3550
        %v3559 = vsub.f32 %v3525, %v3551
        %v3560 = vmul.f32 %v3552, %v3552
        %v3561 = vmul.f32 %v3553, %v3553
        %v3562 = vmul.f32 %v3554, %v3554
        %v3563 = vmul.f32 %v3555, %v3555
        %v3564 = vmul.f32 %v3556, %v3556
        %v3565 = vmul.f32 %v3557, %v3557
        %v3566 = vmul.f32 %v3558, %v3558
        %v3567 = vmul.f32 %v3559, %v3559
        %3568 = vadd.xlane.f32.xlu0 %v3560
        %v3569 = vpop.xlane.xlu0 %3568
        %3570 = vadd.xlane.f32.xlu0 %v3561
        %v3571 = vpop.xlane.xlu0 %3570
        %3572 = vadd.xlane.f32.xlu0 %v3562
        %v3573 = vpop.xlane.xlu0 %3572
        %3574 = vadd.xlane.f32.xlu0 %v3563
        %v3575 = vpop.xlane.xlu0 %3574
        %3576 = vadd.xlane.f32.xlu0 %v3564
        %v3577 = vpop.xlane.xlu0 %3576
        %3578 = vadd.xlane.f32.xlu0 %v3565
        %v3579 = vpop.xlane.xlu0 %3578
        %3580 = vadd.xlane.f32.xlu0 %v3566
        %v3581 = vpop.xlane.xlu0 %3580
        %3582 = vadd.xlane.f32.xlu0 %v3567
        %v3583 = vpop.xlane.xlu0 %3582
        %v3584 = vmul.f32 %v3569, %v2356
        %v3585 = vmul.f32 %v3571, %v2356
        %v3586 = vmul.f32 %v3573, %v2356
        %v3587 = vmul.f32 %v3575, %v2356
        %v3588 = vmul.f32 %v3577, %v2356
        %v3589 = vmul.f32 %v3579, %v2356
        %v3590 = vmul.f32 %v3581, %v2356
        %v3591 = vmul.f32 %v3583, %v2356
        %v3592 = vadd.f32 %v3584, 1e-12
        %v3593 = vadd.f32 %v3585, 1e-12
        %v3594 = vadd.f32 %v3586, 1e-12
        %v3595 = vadd.f32 %v3587, 1e-12
        %v3596 = vadd.f32 %v3588, 1e-12
        %v3597 = vadd.f32 %v3589, 1e-12
        %v3598 = vadd.f32 %v3590, 1e-12
        %v3599 = vadd.f32 %v3591, 1e-12
        %v3600 = vrsqrt.pop %v3592
        %v3601 = vrsqrt.pop %v3593
        %v3602 = vrsqrt.pop %v3594
        %v3603 = vrsqrt.pop %v3595
        %v3604 = vrsqrt.pop %v3596
        %v3605 = vrsqrt.pop %v3597
        %v3606 = vrsqrt.pop %v3598
        %v3607 = vrsqrt.pop %v3599
        %v3608 = vmul.f32 %v3552, %v3600
        %v3609 = vmul.f32 %v3553, %v3601
        %v3610 = vmul.f32 %v3554, %v3602
        %v3611 = vmul.f32 %v3555, %v3603
        %v3612 = vmul.f32 %v3556, %v3604
        %v3613 = vmul.f32 %v3557, %v3605
        %v3614 = vmul.f32 %v3558, %v3606
        %v3615 = vmul.f32 %v3559, %v3607
        %v3617 = vlaneseq
        %v3618 = vshrl.u32 %v3617, 7
        %v3619 = vsub.s32 0, %v3618
        %v3620 = vrot.slane %v3526, %v3619
        %v3622 = vmul.f32 %v3608, %v3620
        %v3623 = vmul.f32 %v3609, %v3620
        %v3624 = vmul.f32 %v3610, %v3620
        %v3625 = vmul.f32 %v3611, %v3620
        %v3626 = vmul.f32 %v3612, %v3620
        %v3627 = vmul.f32 %v3613, %v3620
        %v3628 = vmul.f32 %v3614, %v3620
        %v3629 = vmul.f32 %v3615, %v3620
        %v3631 = vlaneseq
        %v3632 = vshrl.u32 %v3631, 7
        %v3633 = vsub.s32 0, %v3632
        %v3634 = vrot.slane %v3527, %v3633
        %v3636 = vadd.f32 %v3622, %v3634
        %v3637 = vadd.f32 %v3623, %v3634
        %v3638 = vadd.f32 %v3624, %v3634
        %v3639 = vadd.f32 %v3625, %v3634
        %v3640 = vadd.f32 %v3626, %v3634
        %v3641 = vadd.f32 %v3627, %v3634
        %v3642 = vadd.f32 %v3628, %v3634
        %v3643 = vadd.f32 %v3629, %v3634
        %3644 = vst [vmem:[#allocation2] sm:$0xff] %v3636
        %3645 = vst [vmem:[#allocation2 + $0x8] sm:$0xff] %v3637
        %3646 = vst [vmem:[#allocation2 + $0x10] sm:$0xff] %v3638
        %3647 = vst [vmem:[#allocation2 + $0x18] sm:$0xff] %v3639
        %3648 = vst [vmem:[#allocation2 + $0x20] sm:$0xff] %v3640
        %3649 = vst [vmem:[#allocation2 + $0x28] sm:$0xff] %v3641
        %3650 = vst [vmem:[#allocation2 + $0x30] sm:$0xff] %v3642
        %3651 = vst [vmem:[#allocation2 + $0x38] sm:$0xff] %v3643
        %p3652 = scmp.eq.s32.totalorder %s39, 1
        // Predicated region
        $region140: #{bert_encoder_forward_pallas.1} parent=83 // pred_check
          %p3653 = pneg %p3652
        $region141: #{bert_encoder_forward_pallas.1} parent=83 // pred_check_branch
          %3655 = sbr.rel (%p3653) target = $region143
        $region142: #{bert_encoder_forward_pallas.1} parent=83 // pred_region
          %v3656 = vld [vmem:[#allocation2] sm:$0xff]
          %v3657 = vld [vmem:[#allocation2 + $0x8] sm:$0xff]
          %v3658 = vld [vmem:[#allocation2 + $0x10] sm:$0xff]
          %v3659 = vld [vmem:[#allocation2 + $0x18] sm:$0xff]
          %v3660 = vld [vmem:[#allocation2 + $0x20] sm:$0xff]
          %v3661 = vld [vmem:[#allocation2 + $0x28] sm:$0xff]
          %v3662 = vld [vmem:[#allocation2 + $0x30] sm:$0xff]
          %v3663 = vld [vmem:[#allocation2 + $0x38] sm:$0xff]
          %v3664 = vlaneseq
          %v3665 = vshrl.u32 %v3664, 7
          %v3666 = vadd.s32 %v3665, 8
          %v3667 = vadd.s32 %v3665, 16
          %v3668 = vadd.s32 %v3665, 24
          %v3669 = vadd.s32 %v3665, 32
          %v3670 = vadd.s32 %v3665, 40
          %v3671 = vadd.s32 %v3665, 48
          %v3672 = vadd.s32 %v3665, 56
          %s3673 = sld [smem:[#allocation4]]
          %v3674 = vstv %s3673
          %vm3675 = vcmp.eq.s32.totalorder %v3665, %v3674
          %vm3676 = vcmp.eq.s32.totalorder %v3666, %v3674
          %vm3677 = vcmp.eq.s32.totalorder %v3667, %v3674
          %vm3678 = vcmp.eq.s32.totalorder %v3668, %v3674
          %vm3679 = vcmp.eq.s32.totalorder %v3669, %v3674
          %vm3680 = vcmp.eq.s32.totalorder %v3670, %v3674
          %vm3681 = vcmp.eq.s32.totalorder %v3671, %v3674
          %vm3682 = vcmp.eq.s32.totalorder %v3672, %v3674
          %v3683 = vsel %vm3675, 1, 0
          %v3684 = vsel %vm3676, 1, 0
          %v3685 = vsel %vm3677, 1, 0
          %v3686 = vsel %vm3678, 1, 0
          %v3687 = vsel %vm3679, 1, 0
          %v3688 = vsel %vm3680, 1, 0
          %v3689 = vsel %vm3681, 1, 0
          %v3690 = vsel %vm3682, 1, 0
          %vm3691 = vcmp.eq.s32.totalorder %v3683, 1
          %vm3692 = vcmp.eq.s32.totalorder %v3684, 1
          %vm3693 = vcmp.eq.s32.totalorder %v3685, 1
          %vm3694 = vcmp.eq.s32.totalorder %v3686, 1
          %vm3695 = vcmp.eq.s32.totalorder %v3687, 1
          %vm3696 = vcmp.eq.s32.totalorder %v3688, 1
          %vm3697 = vcmp.eq.s32.totalorder %v3689, 1
          %vm3698 = vcmp.eq.s32.totalorder %v3690, 1
          %v3699 = vsel %vm3691, %v3656, 0.0
          %v3700 = vsel %vm3692, %v3657, 0.0
          %v3701 = vsel %vm3693, %v3658, 0.0
          %v3702 = vsel %vm3694, %v3659, 0.0
          %v3703 = vsel %vm3695, %v3660, 0.0
          %v3704 = vsel %vm3696, %v3661, 0.0
          %v3705 = vsel %vm3697, %v3662, 0.0
          %v3706 = vsel %vm3698, %v3663, 0.0
          %v3707 = vadd.f32 %v3699, %v3700
          %v3708 = vadd.f32 %v3707, %v3701
          %v3709 = vadd.f32 %v3708, %v3702
          %v3710 = vadd.f32 %v3709, %v3703
          %v3711 = vadd.f32 %v3710, %v3704
          %v3712 = vadd.f32 %v3711, %v3705
          %v3713 = vadd.f32 %v3712, %v3706
          %v3714 = vrot.slane %v3713, 4
          %v3715 = vadd.f32 %v3713, %v3714
          %v3716 = vrot.slane %v3715, 2
          %v3717 = vadd.f32 %v3715, %v3716
          %v3718 = vrot.slane %v3717, 1
          %v3719 = vadd.f32 %v3717, %v3718
          %s3720 = sld [smem:[#allocation4 + $0x1]]
          %v3721 = vstv %s3720
          %vm3722 = vcmp.eq.s32.totalorder %v3665, %v3721
          %vm3723 = vcmp.eq.s32.totalorder %v3666, %v3721
          %vm3724 = vcmp.eq.s32.totalorder %v3667, %v3721
          %vm3725 = vcmp.eq.s32.totalorder %v3668, %v3721
          %vm3726 = vcmp.eq.s32.totalorder %v3669, %v3721
          %vm3727 = vcmp.eq.s32.totalorder %v3670, %v3721
          %vm3728 = vcmp.eq.s32.totalorder %v3671, %v3721
          %vm3729 = vcmp.eq.s32.totalorder %v3672, %v3721
          %v3730 = vsel %vm3722, 1, 0
          %v3731 = vsel %vm3723, 1, 0
          %v3732 = vsel %vm3724, 1, 0
          %v3733 = vsel %vm3725, 1, 0
          %v3734 = vsel %vm3726, 1, 0
          %v3735 = vsel %vm3727, 1, 0
          %v3736 = vsel %vm3728, 1, 0
          %v3737 = vsel %vm3729, 1, 0
          %vm3738 = vcmp.eq.s32.totalorder %v3730, 1
          %vm3739 = vcmp.eq.s32.totalorder %v3731, 1
          %vm3740 = vcmp.eq.s32.totalorder %v3732, 1
          %vm3741 = vcmp.eq.s32.totalorder %v3733, 1
          %vm3742 = vcmp.eq.s32.totalorder %v3734, 1
          %vm3743 = vcmp.eq.s32.totalorder %v3735, 1
          %vm3744 = vcmp.eq.s32.totalorder %v3736, 1
          %vm3745 = vcmp.eq.s32.totalorder %v3737, 1
          %v3746 = vsel %vm3738, %v3656, 0.0
          %v3747 = vsel %vm3739, %v3657, 0.0
          %v3748 = vsel %vm3740, %v3658, 0.0
          %v3749 = vsel %vm3741, %v3659, 0.0
          %v3750 = vsel %vm3742, %v3660, 0.0
          %v3751 = vsel %vm3743, %v3661, 0.0
          %v3752 = vsel %vm3744, %v3662, 0.0
          %v3753 = vsel %vm3745, %v3663, 0.0
          %v3754 = vadd.f32 %v3746, %v3747
          %v3755 = vadd.f32 %v3754, %v3748
          %v3756 = vadd.f32 %v3755, %v3749
          %v3757 = vadd.f32 %v3756, %v3750
          %v3758 = vadd.f32 %v3757, %v3751
          %v3759 = vadd.f32 %v3758, %v3752
          %v3760 = vadd.f32 %v3759, %v3753
          %v3761 = vrot.slane %v3760, 4
          %v3762 = vadd.f32 %v3760, %v3761
          %v3763 = vrot.slane %v3762, 2
          %v3764 = vadd.f32 %v3762, %v3763
          %v3765 = vrot.slane %v3764, 1
          %v3766 = vadd.f32 %v3764, %v3765
          %vm3767 = vcmask 1040384
          %v3768 = vsel %vm3767, %v3719, %v3766
          %s3769 = sld [smem:[#allocation4 + $0x2]]
          %v3770 = vstv %s3769
          %vm3771 = vcmp.eq.s32.totalorder %v3665, %v3770
          %vm3772 = vcmp.eq.s32.totalorder %v3666, %v3770
          %vm3773 = vcmp.eq.s32.totalorder %v3667, %v3770
          %vm3774 = vcmp.eq.s32.totalorder %v3668, %v3770
          %vm3775 = vcmp.eq.s32.totalorder %v3669, %v3770
          %vm3776 = vcmp.eq.s32.totalorder %v3670, %v3770
          %vm3777 = vcmp.eq.s32.totalorder %v3671, %v3770
          %vm3778 = vcmp.eq.s32.totalorder %v3672, %v3770
          %v3779 = vsel %vm3771, 1, 0
          %v3780 = vsel %vm3772, 1, 0
          %v3781 = vsel %vm3773, 1, 0
          %v3782 = vsel %vm3774, 1, 0
          %v3783 = vsel %vm3775, 1, 0
          %v3784 = vsel %vm3776, 1, 0
          %v3785 = vsel %vm3777, 1, 0
          %v3786 = vsel %vm3778, 1, 0
          %vm3787 = vcmp.eq.s32.totalorder %v3779, 1
          %vm3788 = vcmp.eq.s32.totalorder %v3780, 1
          %vm3789 = vcmp.eq.s32.totalorder %v3781, 1
          %vm3790 = vcmp.eq.s32.totalorder %v3782, 1
          %vm3791 = vcmp.eq.s32.totalorder %v3783, 1
          %vm3792 = vcmp.eq.s32.totalorder %v3784, 1
          %vm3793 = vcmp.eq.s32.totalorder %v3785, 1
          %vm3794 = vcmp.eq.s32.totalorder %v3786, 1
          %v3795 = vsel %vm3787, %v3656, 0.0
          %v3796 = vsel %vm3788, %v3657, 0.0
          %v3797 = vsel %vm3789, %v3658, 0.0
          %v3798 = vsel %vm3790, %v3659, 0.0
          %v3799 = vsel %vm3791, %v3660, 0.0
          %v3800 = vsel %vm3792, %v3661, 0.0
          %v3801 = vsel %vm3793, %v3662, 0.0
          %v3802 = vsel %vm3794, %v3663, 0.0
          %v3803 = vadd.f32 %v3795, %v3796
          %v3804 = vadd.f32 %v3803, %v3797
          %v3805 = vadd.f32 %v3804, %v3798
          %v3806 = vadd.f32 %v3805, %v3799
          %v3807 = vadd.f32 %v3806, %v3800
          %v3808 = vadd.f32 %v3807, %v3801
          %v3809 = vadd.f32 %v3808, %v3802
          %v3810 = vrot.slane %v3809, 4
          %v3811 = vadd.f32 %v3809, %v3810
          %v3812 = vrot.slane %v3811, 2
          %v3813 = vadd.f32 %v3811, %v3812
          %v3814 = vrot.slane %v3813, 1
          %v3815 = vadd.f32 %v3813, %v3814
          %s3816 = sld [smem:[#allocation4 + $0x3]]
          %v3817 = vstv %s3816
          %vm3818 = vcmp.eq.s32.totalorder %v3665, %v3817
          %vm3819 = vcmp.eq.s32.totalorder %v3666, %v3817
          %vm3820 = vcmp.eq.s32.totalorder %v3667, %v3817
          %vm3821 = vcmp.eq.s32.totalorder %v3668, %v3817
          %vm3822 = vcmp.eq.s32.totalorder %v3669, %v3817
          %vm3823 = vcmp.eq.s32.totalorder %v3670, %v3817
          %vm3824 = vcmp.eq.s32.totalorder %v3671, %v3817
          %vm3825 = vcmp.eq.s32.totalorder %v3672, %v3817
          %v3826 = vsel %vm3818, 1, 0
          %v3827 = vsel %vm3819, 1, 0
          %v3828 = vsel %vm3820, 1, 0
          %v3829 = vsel %vm3821, 1, 0
          %v3830 = vsel %vm3822, 1, 0
          %v3831 = vsel %vm3823, 1, 0
          %v3832 = vsel %vm3824, 1, 0
          %v3833 = vsel %vm3825, 1, 0
          %vm3834 = vcmp.eq.s32.totalorder %v3826, 1
          %vm3835 = vcmp.eq.s32.totalorder %v3827, 1
          %vm3836 = vcmp.eq.s32.totalorder %v3828, 1
          %vm3837 = vcmp.eq.s32.totalorder %v3829, 1
          %vm3838 = vcmp.eq.s32.totalorder %v3830, 1
          %vm3839 = vcmp.eq.s32.totalorder %v3831, 1
          %vm3840 = vcmp.eq.s32.totalorder %v3832, 1
          %vm3841 = vcmp.eq.s32.totalorder %v3833, 1
          %v3842 = vsel %vm3834, %v3656, 0.0
          %v3843 = vsel %vm3835, %v3657, 0.0
          %v3844 = vsel %vm3836, %v3658, 0.0
          %v3845 = vsel %vm3837, %v3659, 0.0
          %v3846 = vsel %vm3838, %v3660, 0.0
          %v3847 = vsel %vm3839, %v3661, 0.0
          %v3848 = vsel %vm3840, %v3662, 0.0
          %v3849 = vsel %vm3841, %v3663, 0.0
          %v3850 = vadd.f32 %v3842, %v3843
          %v3851 = vadd.f32 %v3850, %v3844
          %v3852 = vadd.f32 %v3851, %v3845
          %v3853 = vadd.f32 %v3852, %v3846
          %v3854 = vadd.f32 %v3853, %v3847
          %v3855 = vadd.f32 %v3854, %v3848
          %v3856 = vadd.f32 %v3855, %v3849
          %v3857 = vrot.slane %v3856, 4
          %v3858 = vadd.f32 %v3856, %v3857
          %v3859 = vrot.slane %v3858, 2
          %v3860 = vadd.f32 %v3858, %v3859
          %v3861 = vrot.slane %v3860, 1
          %v3862 = vadd.f32 %v3860, %v3861
          %v3863 = vsel %vm3767, %v3815, %v3862
          %v3864 = vld [vmem:[#allocation10] sm:$0xff]
          %v3865 = vld [vmem:[#allocation10 + $0x8] sm:$0xff]
          %v3866 = vld [vmem:[#allocation10 + $0x10] sm:$0xff]
          %v3867 = vld [vmem:[#allocation10 + $0x18] sm:$0xff]
          %v3868 = vld [vmem:[#allocation10 + $0x20] sm:$0xff]
          %v3869 = vld [vmem:[#allocation10 + $0x28] sm:$0xff]
          %v3870 = vld [vmem:[#allocation10 + $0x30] sm:$0xff]
          %v3871 = vld [vmem:[#allocation10 + $0x38] sm:$0xff]
          %v3872 = vld [vmem:[#allocation10 + $0x40] sm:$0xff]
          %v3873 = vld [vmem:[#allocation10 + $0x48] sm:$0xff]
          %v3874 = vld [vmem:[#allocation10 + $0x50] sm:$0xff]
          %v3875 = vld [vmem:[#allocation10 + $0x58] sm:$0xff]
          %v3876 = vld [vmem:[#allocation10 + $0x60] sm:$0xff]
          %v3877 = vld [vmem:[#allocation10 + $0x68] sm:$0xff]
          %v3878 = vld [vmem:[#allocation10 + $0x70] sm:$0xff]
          %v3879 = vld [vmem:[#allocation10 + $0x78] sm:$0xff]
          %v3880 = vld [vmem:[#allocation10 + $0x80] sm:$0xff]
          %v3881 = vld [vmem:[#allocation10 + $0x88] sm:$0xff]
          %v3882 = vld [vmem:[#allocation10 + $0x90] sm:$0xff]
          %v3883 = vld [vmem:[#allocation10 + $0x98] sm:$0xff]
          %v3884 = vld [vmem:[#allocation10 + $0xa0] sm:$0xff]
          %v3885 = vld [vmem:[#allocation10 + $0xa8] sm:$0xff]
          %v3886 = vld [vmem:[#allocation10 + $0xb0] sm:$0xff]
          %v3887 = vld [vmem:[#allocation10 + $0xb8] sm:$0xff]
          %v3888 = vld [vmem:[#allocation10 + $0xc0] sm:$0xff]
          %v3889 = vld [vmem:[#allocation10 + $0xc8] sm:$0xff]
          %v3890 = vld [vmem:[#allocation10 + $0xd0] sm:$0xff]
          %v3891 = vld [vmem:[#allocation10 + $0xd8] sm:$0xff]
          %v3892 = vld [vmem:[#allocation10 + $0xe0] sm:$0xff]
          %v3893 = vld [vmem:[#allocation10 + $0xe8] sm:$0xff]
          %v3894 = vld [vmem:[#allocation10 + $0xf0] sm:$0xff]
          %v3895 = vld [vmem:[#allocation10 + $0xf8] sm:$0xff]
          %3896 = vmatprep.subr.mxu0 0.0
          %3897 = vmatpush1.msra.mxu0 %v3880
          %3898 = vmatprep.subr.mxu0 0.0
          %3899 = vmatpush1.msra.mxu0 %v3881
          %3900 = vmatprep.subr.mxu0 0.0
          %3901 = vmatpush1.msra.mxu0 %v3882
          %3902 = vmatprep.subr.mxu0 0.0
          %3903 = vmatpush1.msra.mxu0 %v3883
          %3904 = vmatprep.subr.mxu0 0.0
          %3905 = vmatpush1.msra.mxu0 %v3884
          %3906 = vmatprep.subr.mxu0 0.0
          %3907 = vmatpush1.msra.mxu0 %v3885
          %3908 = vmatprep.subr.mxu0 0.0
          %3909 = vmatpush1.msra.mxu0 %v3886
          %3910 = vmatprep.subr.mxu0 0.0
          %3911 = vmatpush1.msra.mxu0 %v3887
          %3912 = vmatprep.subr.mxu0 0.0
          %3913 = vmatpush1.msra.mxu0 %v3888
          %3914 = vmatprep.subr.mxu0 0.0
          %3915 = vmatpush1.msra.mxu0 %v3889
          %3916 = vmatprep.subr.mxu0 0.0
          %3917 = vmatpush1.msra.mxu0 %v3890
          %3918 = vmatprep.subr.mxu0 0.0
          %3919 = vmatpush1.msra.mxu0 %v3891
          %3920 = vmatprep.subr.mxu0 0.0
          %3921 = vmatpush1.msra.mxu0 %v3892
          %3922 = vmatprep.subr.mxu0 0.0
          %3923 = vmatpush1.msra.mxu0 %v3893
          %3924 = vmatprep.subr.mxu0 0.0
          %3925 = vmatpush1.msra.mxu0 %v3894
          %3926 = vmatprep.subr.mxu0 0.0
          %3927 = vmatpush1.msra.mxu0 %v3895
          %3928 = vmatprep.subr.mxu0 0.0
          %3929 = vmatpush1.msra.mxu0 0.0
          %3930 = vmatprep.subr.mxu0 0.0
          %3931 = vmatpush1.msra.mxu0 0.0
          %3932 = vmatprep.subr.mxu0 0.0
          %3933 = vmatpush1.msra.mxu0 0.0
          %3934 = vmatprep.subr.mxu0 0.0
          %3935 = vmatpush1.msra.mxu0 0.0
          %3936 = vmatprep.subr.mxu0 0.0
          %3937 = vmatpush1.msra.mxu0 0.0
          %3938 = vmatprep.subr.mxu0 0.0
          %3939 = vmatpush1.msra.mxu0 0.0
          %3940 = vmatprep.subr.mxu0 0.0
          %3941 = vmatpush1.msra.mxu0 0.0
          %3942 = vmatprep.subr.mxu0 0.0
          %3943 = vmatpush1.msra.mxu0 0.0
          %3944 = vmatprep.subr.mxu0 0.0
          %3945 = vmatpush1.msra.mxu0 0.0
          %3946 = vmatprep.subr.mxu0 0.0
          %3947 = vmatpush1.msra.mxu0 0.0
          %3948 = vmatprep.subr.mxu0 0.0
          %3949 = vmatpush1.msra.mxu0 0.0
          %3950 = vmatprep.subr.mxu0 0.0
          %3951 = vmatpush1.msra.mxu0 0.0
          %3952 = vmatprep.subr.mxu0 0.0
          %3953 = vmatpush1.msra.mxu0 0.0
          %3954 = vmatprep.subr.mxu0 0.0
          %3955 = vmatpush1.msra.mxu0 0.0
          %3956 = vmatprep.subr.mxu0 0.0
          %3957 = vmatpush1.msra.mxu0 0.0
          %3958 = vmatprep.subr.mxu0 0.0
          %3959 = vmatpush1.msra.mxu0 0.0
          %3960 = vmatprep.mubr.f32.mxu0 0.0
          %3961 = vmatmul.mubr.f32.gmra.mrb[0].mxu0 %v3863
          %v3962 = vpop.f32.mrb[0].mxu0
          %v3963 = vadd.f32 0.0, %v3962
          %v3964 = vpop.f32.mrb[0].mxu0
          %3965 = vdwg.mxu0
          %3966 = vmatprep.subr.mxu0 0.0
          %3967 = vmatpush1.msra.mxu0 %v3864
          %3968 = vmatprep.subr.mxu0 0.0
          %3969 = vmatpush1.msra.mxu0 %v3865
          %3970 = vmatprep.subr.mxu0 0.0
          %3971 = vmatpush1.msra.mxu0 %v3866
          %3972 = vmatprep.subr.mxu0 0.0
          %3973 = vmatpush1.msra.mxu0 %v3867
          %3974 = vmatprep.subr.mxu0 0.0
          %3975 = vmatpush1.msra.mxu0 %v3868
          %3976 = vmatprep.subr.mxu0 0.0
          %3977 = vmatpush1.msra.mxu0 %v3869
          %3978 = vmatprep.subr.mxu0 0.0
          %3979 = vmatpush1.msra.mxu0 %v3870
          %3980 = vmatprep.subr.mxu0 0.0
          %3981 = vmatpush1.msra.mxu0 %v3871
          %3982 = vmatprep.subr.mxu0 0.0
          %3983 = vmatpush1.msra.mxu0 %v3872
          %3984 = vmatprep.subr.mxu0 0.0
          %3985 = vmatpush1.msra.mxu0 %v3873
          %3986 = vmatprep.subr.mxu0 0.0
          %3987 = vmatpush1.msra.mxu0 %v3874
          %3988 = vmatprep.subr.mxu0 0.0
          %3989 = vmatpush1.msra.mxu0 %v3875
          %3990 = vmatprep.subr.mxu0 0.0
          %3991 = vmatpush1.msra.mxu0 %v3876
          %3992 = vmatprep.subr.mxu0 0.0
          %3993 = vmatpush1.msra.mxu0 %v3877
          %3994 = vmatprep.subr.mxu0 0.0
          %3995 = vmatpush1.msra.mxu0 %v3878
          %3996 = vmatprep.subr.mxu0 0.0
          %3997 = vmatpush1.msra.mxu0 %v3879
          %3998 = vmatprep.subr.mxu0 0.0
          %3999 = vmatpush1.msra.mxu0 0.0
          %4000 = vmatprep.subr.mxu0 0.0
          %4001 = vmatpush1.msra.mxu0 0.0
          %4002 = vmatprep.subr.mxu0 0.0
          %4003 = vmatpush1.msra.mxu0 0.0
          %4004 = vmatprep.subr.mxu0 0.0
          %4005 = vmatpush1.msra.mxu0 0.0
          %4006 = vmatprep.subr.mxu0 0.0
          %4007 = vmatpush1.msra.mxu0 0.0
          %4008 = vmatprep.subr.mxu0 0.0
          %4009 = vmatpush1.msra.mxu0 0.0
          %4010 = vmatprep.subr.mxu0 0.0
          %4011 = vmatpush1.msra.mxu0 0.0
          %4012 = vmatprep.subr.mxu0 0.0
          %4013 = vmatpush1.msra.mxu0 0.0
          %4014 = vmatprep.subr.mxu0 0.0
          %4015 = vmatpush1.msra.mxu0 0.0
          %4016 = vmatprep.subr.mxu0 0.0
          %4017 = vmatpush1.msra.mxu0 0.0
          %4018 = vmatprep.subr.mxu0 0.0
          %4019 = vmatpush1.msra.mxu0 0.0
          %4020 = vmatprep.subr.mxu0 0.0
          %4021 = vmatpush1.msra.mxu0 0.0
          %4022 = vmatprep.subr.mxu0 0.0
          %4023 = vmatpush1.msra.mxu0 0.0
          %4024 = vmatprep.subr.mxu0 0.0
          %4025 = vmatpush1.msra.mxu0 0.0
          %4026 = vmatprep.subr.mxu0 0.0
          %4027 = vmatpush1.msra.mxu0 0.0
          %4028 = vmatprep.subr.mxu0 0.0
          %4029 = vmatpush1.msra.mxu0 0.0
          %4030 = vmatprep.mubr.f32.mxu0 0.0
          %4031 = vmatmul.mubr.f32.gmra.mrb[0].mxu0 %v3768
          %v4032 = vpop.f32.mrb[0].mxu0
          %v4033 = vadd.f32 %v3963, %v4032
          %v4034 = vpop.f32.mrb[0].mxu0
          %4035 = vdwg.mxu0
          %v4036 = vld [vmem:[#allocation11] sm:$0x1]
          %v4038 = vlaneseq
          %v4039 = vshrl.u32 %v4038, 7
          %v4040 = vsub.s32 0, %v4039
          %v4041 = vrot.slane %v4036, %v4040
          %v4043 = vadd.f32 %v4033, %v4041
          %4044 = vst [vmem:[#allocation13] sm:$0x3] %v4043
        $region143: #{bert_encoder_forward_pallas.1} parent=83 // pred_fallthru
          _
        // Predicated region
        $region144: #{bert_encoder_forward_pallas.1} parent=83 // pred_check
          %p4045 = pneg %p448
        $region145: #{bert_encoder_forward_pallas.1} parent=83 // pred_check_branch
          %4047 = sbr.rel (%p4045) target = $region147
        $region146: #{bert_encoder_forward_pallas.1} parent=83 // pred_region
          %s4049 = ssub.s32 32, 32
          %4050 = vsyncadd [#allocation7], %s4049
          %s4052 = sshll.u32 [#allocation13], 4
          %s4053 = int_to_ptr.vmem [resolvable:$true] %s4052
          %4055 = dma.vmem_to_hbm [thread:$0]  %s4053, 32, %s18, [#allocation7]
        $region147: #{bert_encoder_forward_pallas.1} parent=83 // pred_fallthru
          _
        // Predicated region
        $region148: #{bert_encoder_forward_pallas.1} parent=83 // pred_check
          %p4056 = pneg %p448
        $region149: #{bert_encoder_forward_pallas.1} parent=83 // pred_check_branch
          %4058 = sbr.rel (%p4056) target = $region151
        $region150: #{bert_encoder_forward_pallas.1} parent=83 // pred_region
          %4059 = dma.done [#allocation7], 32
        $region151: #{bert_encoder_forward_pallas.1} parent=83 // pred_fallthru
          _
      $region84: #{bert_encoder_forward_pallas.1} parent=5 // pred_fallthru
        _
      %p4060 = scmp.le.s32.totalorder 2, %s34
      // Predicated region
      $region152: #{bert_encoder_forward_pallas.1} parent=5 // pred_check
        %p4061 = pneg %p4060
      $region153: #{bert_encoder_forward_pallas.1} parent=5 // pred_check_branch
        %4063 = sbr.rel (%p4061) target = $region155
      $region154: #{bert_encoder_forward_pallas.1} parent=5 // pred_region
        %s4064 = ssub.s32 %s34, 2
      $region155: #{bert_encoder_forward_pallas.1} parent=5 // pred_fallthru
        _
    $region6: #{bert_encoder_forward_pallas.1} parent=1 // loop_footer
      %s38 = sadd.s32 1, %s34
    $region7: #{bert_encoder_forward_pallas.1} parent=1 // loop_footer_branch
      %33 = sbr.rel target = $region3
    $region8: #{bert_encoder_forward_pallas.1} parent=1 // loop_exit
      _
    %4065 = vsyncpa [#allocation6], 1
    %s4066 = scalar_lea.sflag [#allocation6], 1
    %4067 = vsyncpa %s4066, 1
    %4068 = vsyncpa [#allocation9], 1
    %4069 = vsyncpa [#allocation12], 1
    %4070 = vsyncpa [#allocation7], 1
    %s4071 = scalar_lea.sflag [#allocation7], 1
    %4072 = vsyncpa %s4071, 1

</llo_original>
